<compile_context>
chip_gen: v6e
topology: v6e:2x2x1
jax: 0.10.0
libtpu: 0.0.40
codegen_flags: <defaults>
</compile_context>

<pallas_src>
import functools

import jax
import jax.numpy as jnp
from jax import lax
from jax.experimental import pallas as pl
from jax.experimental.pallas import tpu as pltpu

_BN_EPS = 1e-5

# CompilerParams across jax versions (newer: CompilerParams, older: TPUCompilerParams).
_CompilerParams = getattr(pltpu, "CompilerParams", None) or getattr(
    pltpu, "TPUCompilerParams", None)


def _round_up(x, m):
    return (x + m - 1) // m * m


def _pick_tile(total, cap, multiple=1):
    """Largest divisor of `total` <= cap that is a multiple of `multiple`.
    Falls back to `total` (full dim satisfies the block-shape rule)."""
    for cand in range(min(cap, total), 0, -1):
        if total % cand == 0 and cand % multiple == 0:
            return cand
    return total


def _vmem_limit_bytes(need_bytes):
    """Generation-aware VMEM limit: 2x the estimated per-step footprint, clamped
    below the physical per-core VMEM capacity with headroom for Mosaic scratch."""
    try:
        cap = int(pltpu.get_tpu_info().vmem_capacity_bytes)
    except Exception:  # older jax / query unavailable -> conservative v7x value
        cap = 64 * 1024 * 1024
    hi = cap - 8 * 1024 * 1024
    return int(min(hi, max(32 * 1024 * 1024, 2 * need_bytes)))


# ---------------------------------------------------------------------------
# Conv3x3 kernel (optionally fused with the *previous* block's BN+ReLU on its
# input).  Emits the raw conv output in padded layout (bf16, zero border) plus
# per-image BN partial sums [sum, sum_sq] taken from the f32 accumulator.
# ---------------------------------------------------------------------------
def _conv3x3_kernel(x_ref, scale_ref, shift_ref, w_ref, y_ref, stats_ref, *,
                    h, w, cin, coutp, fuse_input_act):
    # x_ref:     (1, h+2, w+2, cin)    bf16  padded input tile (zero border)
    # scale_ref: (1, coutp)            f32   folded BN scale of the producer
    # shift_ref: (1, coutp)            f32   folded BN shift of the producer
    # w_ref:     (9*cin, coutp)        bf16  im2col-packed conv weights (resident)
    # y_ref:     (1, h+2, w+2, coutp)  bf16  padded raw conv output (zero border)
    # stats_ref: (1, 2, coutp)         f32   per-image [sum, sum_sq] partials
    if fuse_input_act:
        # Fused consumer-side BN+ReLU of the previous block's raw conv output.
        # The zero-padding ring must stay exactly zero (it is the conv padding
        # of the *activation*), so mask by the padded spatial coordinate.
        xf = x_ref[0].astype(jnp.float32)
        act = jnp.maximum(xf * scale_ref[...] + shift_ref[...], 0.0)
        rows = lax.broadcasted_iota(jnp.int32, (h + 2, w + 2, 1), 0)
        cols = lax.broadcasted_iota(jnp.int32, (h + 2, w + 2, 1), 1)
        interior = (rows >= 1) & (rows <= h) & (cols >= 1) & (cols <= w)
        xb = jnp.where(interior, act, 0.0).astype(jnp.bfloat16)
    else:
        xb = x_ref[0]                                    # (h+2, w+2, cin) bf16

    # In-kernel im2col: one (h*w, 9*cin) slab -> a single wide-K MXU matmul.
    taps = [xb[dy:dy + h, dx:dx + w, :] for dy in range(3) for dx in range(3)]
    patch = jnp.concatenate(taps, axis=-1).reshape(h * w, 9 * cin)
    acc = jnp.dot(patch, w_ref[...], preferred_element_type=jnp.float32)

    # BN partial sums from the f32 accumulator (interior pixels only); two row
    # stores instead of a concatenate.
    stats_ref[0, 0:1, :] = jnp.sum(acc, axis=0, keepdims=True)
    stats_ref[0, 1:2, :] = jnp.sum(acc * acc, axis=0, keepdims=True)

    # Store the raw conv output directly in padded layout (zero border) so the
    # consuming conv needs no extra HBM padding / halo-stack copy.
    y_ref[0] = jnp.zeros((h + 2, w + 2, coutp), y_ref.dtype)
    y_ref[0, 1:h + 1, 1:w + 1, :] = acc.astype(y_ref.dtype).reshape(h, w, coutp)


def _conv_block(x_pad, scale, shift, w_mat, *, h, w, cin, coutp, fuse_input_act):
    """One conv pass over grid=(batch,), whole padded image per grid step."""
    n = x_pad.shape[0]
    kernel = functools.partial(_conv3x3_kernel, h=h, w=w, cin=cin, coutp=coutp,
                               fuse_input_act=fuse_input_act)
    need = (2 * (h + 2) * (w + 2) * (cin + coutp) * 2   # dbl-buffered in/out tiles
            + 2 * 9 * cin * coutp * 2                   # resident weights
            + h * w * 9 * cin * 2                       # im2col slab (bf16)
            + 2 * h * w * coutp * 4                     # f32 acc / temps
            + (h + 2) * (w + 2) * coutp * 4)            # f32 activation temp
    y, stats = pl.pallas_call(
        kernel,
        grid=(n,),
        in_specs=[
            pl.BlockSpec((1, h + 2, w + 2, cin), lambda b: (b, 0, 0, 0)),
            pl.BlockSpec((1, coutp), lambda b: (0, 0)),
            pl.BlockSpec((1, coutp), lambda b: (0, 0)),
            pl.BlockSpec((9 * cin, coutp), lambda b: (0, 0)),
        ],
        out_specs=[
            pl.BlockSpec((1, h + 2, w + 2, coutp), lambda b: (b, 0, 0, 0)),
            pl.BlockSpec((1, 2, coutp), lambda b: (b, 0, 0)),
        ],
        out_shape=[
            jax.ShapeDtypeStruct((n, h + 2, w + 2, coutp), jnp.bfloat16),
            jax.ShapeDtypeStruct((n, 2, coutp), jnp.float32),
        ],
        compiler_params=_CompilerParams(
            dimension_semantics=("parallel",),
            vmem_limit_bytes=_vmem_limit_bytes(need)),
    )(x_pad, scale, shift, w_mat)
    return y, stats


# ---------------------------------------------------------------------------
# Final BN+ReLU apply (only standalone apply pass left): lane-dense scale*y+shift.
# ---------------------------------------------------------------------------
def _bn_relu_kernel(y_ref, scale_ref, shift_ref, o_ref):
    y = y_ref[...].astype(jnp.float32)
    o_ref[...] = jnp.maximum(y * scale_ref[...] + shift_ref[...],
                             0.0).astype(o_ref.dtype)


def _bn_relu_apply(y_flat, scale, shift, out_dtype, *, tile_cap=4096):
    m, coutp = y_flat.shape
    cap = max(8, min(tile_cap, m // 2 if m >= 16 else m))  # >=2 tiles for v7x 2-TC
    tm = _pick_tile(m, cap, multiple=8)
    need = 2 * tm * coutp * (2 + 4) + 4 * coutp * 4
    return pl.pallas_call(
        _bn_relu_kernel,
        grid=(m // tm,),
        in_specs=[
            pl.BlockSpec((tm, coutp), lambda i: (i, 0)),
            pl.BlockSpec((1, coutp), lambda i: (0, 0)),
            pl.BlockSpec((1, coutp), lambda i: (0, 0)),
        ],
        out_specs=pl.BlockSpec((tm, coutp), lambda i: (i, 0)),
        out_shape=jax.ShapeDtypeStruct((m, coutp), out_dtype),
        compiler_params=_CompilerParams(
            dimension_semantics=("parallel",),
            vmem_limit_bytes=_vmem_limit_bytes(need)),
    )(y_flat, scale, shift)


# ---------------------------------------------------------------------------
# Glue: weight packing and BN stat folding (tiny per-channel math in plain JAX).
# ---------------------------------------------------------------------------
def _pack_weight(w_oihw, coutp, cin_padded=None):
    """PyTorch (Cout, Cin, 3, 3) -> im2col-packed (9*Cin_pad, Coutp) bf16."""
    cout, cin = w_oihw.shape[0], w_oihw.shape[1]
    ci = cin if cin_padded is None else cin_padded
    wt = jnp.transpose(w_oihw.astype(jnp.float32), (2, 3, 1, 0))  # (3,3,cin,cout)
    wt = jnp.pad(wt, ((0, 0), (0, 0), (0, ci - cin), (0, coutp - cout)))
    return wt.reshape(9 * ci, coutp).astype(jnp.bfloat16)


def _fold_bn(stats, gamma_p, beta_p, count):
    s = jnp.sum(stats, axis=0)                           # (2, coutp)
    mean = s[0] / count
    var = jnp.maximum(s[1] / count - mean * mean, 0.0)   # biased (training) var
    scale = gamma_p * lax.rsqrt(var + _BN_EPS)
    shift = beta_p - mean * scale
    return scale.reshape(1, -1), shift.reshape(1, -1)


def double_conv(x_nchw, params):
    """PyTorch DoubleConv forward: (Conv3x3 -> BN(batch stats) -> ReLU) x 2."""
    x = jnp.transpose(x_nchw, (0, 2, 3, 1))                      # NHWC
    n, h, w, cin = x.shape
    cout = params["w1"].shape[0]
    coutp = _round_up(cout, 128)                                  # lane-dense channels
    m = n * h * w

    # One cheap zero-pad of the (small) network input; every later intermediate
    # is produced directly in padded layout by the kernels (no halo stacking).
    xp = jnp.pad(x.astype(jnp.bfloat16), ((0, 0), (1, 1), (1, 1), (0, 0)))

    w1m = _pack_weight(params["w1"], coutp)                       # (9*cin,   coutp)
    w2m = _pack_weight(params["w2"], coutp, cin_padded=coutp)     # (9*coutp, coutp)

    g1p = jnp.pad(params["g1"].astype(jnp.float32), (0, coutp - cout),
                  constant_values=1.0)
    b1p = jnp.pad(params["b1"].astype(jnp.float32), (0, coutp - cout))
    g2p = jnp.pad(params["g2"].astype(jnp.float32), (0, coutp - cout),
                  constant_values=1.0)
    b2p = jnp.pad(params["b2"].astype(jnp.float32), (0, coutp - cout))

    one = jnp.ones((1, coutp), jnp.float32)
    zero = jnp.zeros((1, coutp), jnp.float32)

    # Block 1: conv1 -> raw padded bf16 output + per-image BN partial sums.
    y1p, stats1 = _conv_block(xp, one, zero, w1m, h=h, w=w, cin=cin,
                              coutp=coutp, fuse_input_act=False)
    scale1, shift1 = _fold_bn(stats1, g1p, b1p, m)

    # Block 2: BN1+ReLU1 fused into conv2's input path; activation keeps all
    # coutp channels so the contraction runs at full K = 9*coutp MXU depth.
    y2p, stats2 = _conv_block(y1p, scale1, shift1, w2m, h=h, w=w, cin=coutp,
                              coutp=coutp, fuse_input_act=True)
    scale2, shift2 = _fold_bn(stats2, g2p, b2p, m)

    # Final BN2+ReLU2 apply; padded ring / padded channels are sliced off after.
    out_flat = _bn_relu_apply(y2p.reshape(n * (h + 2) * (w + 2), coutp),
                              scale2, shift2, jnp.float32)
    out = out_flat.reshape(n, h + 2, w + 2, coutp)[:, 1:h + 1, 1:w + 1, :cout]
    # TODO(synk): BatchNorm running_mean/running_var momentum updates are a
    # training-time buffer side effect with no effect on the forward output.
    # TODO(synk): for images whose whole-image tile exceeds the VMEM budget, add
    # spatial row tiling with manual halo DMA (memory_space=pl.ANY + async copy).
    return jnp.transpose(out, (0, 3, 1, 2))                       # NCHW


def _ref_double_conv(x_nchw, params):
    # Pure-JAX reference with the same bf16 rounding points as the kernel path.
    x = jnp.transpose(x_nchw, (0, 2, 3, 1)).astype(jnp.float32)

    def block(a_in, w_oihw, g, b):
        xb = a_in.astype(jnp.bfloat16).astype(jnp.float32)
        wb = w_oihw.astype(jnp.bfloat16).astype(jnp.float32)
        y = lax.conv_general_dilated(
            xb, jnp.transpose(wb, (2, 3, 1, 0)), window_strides=(1, 1),
            padding="SAME", dimension_numbers=("NHWC", "HWIO", "NHWC"))
        mean = jnp.mean(y, axis=(0, 1, 2))
        var = jnp.mean(jnp.square(y - mean), axis=(0, 1, 2))
        scale = g * lax.rsqrt(var + _BN_EPS)
        shift = b - mean * scale
        yq = y.astype(jnp.bfloat16).astype(jnp.float32)   # conv out stored as bf16
        return jnp.maximum(yq * scale + shift, 0.0)

    a1 = block(x, params["w1"], params["g1"], params["b1"])
    y2 = block(a1, params["w2"], params["g2"], params["b2"])
    return jnp.transpose(y2, (0, 3, 1, 2))


if __name__ == "__main__":
    N, Cin, Cout, H, W = 2, 4, 8, 16, 16

    key = jax.random.PRNGKey(0)
    kx, kw1, kw2, kg1, kb1, kg2, kb2 = jax.random.split(key, 7)

    x = jax.random.normal(kx, (N, Cin, H, W), dtype=jnp.float32)
    params = {
        "w1": 0.1 * jax.random.normal(kw1, (Cout, Cin, 3, 3), dtype=jnp.float32),
        "g1": 1.0 + 0.1 * jax.random.normal(kg1, (Cout,), dtype=jnp.float32),
        "b1": 0.1 * jax.random.normal(kb1, (Cout,), dtype=jnp.float32),
        "w2": 0.1 * jax.random.normal(kw2, (Cout, Cout, 3, 3), dtype=jnp.float32),
        "g2": 1.0 + 0.1 * jax.random.normal(kg2, (Cout,), dtype=jnp.float32),
        "b2": 0.1 * jax.random.normal(kb2, (Cout,), dtype=jnp.float32),
    }

    out = jax.block_until_ready(jax.jit(double_conv)(x, params))
    ref = jax.block_until_ready(_ref_double_conv(x, params))

    assert out.shape == (N, Cout, H, W), out.shape
    max_err = float(jnp.max(jnp.abs(out - ref)))
    assert jnp.allclose(out, ref, atol=1e-2, rtol=1e-2), f"max_err={max_err}"

    print("KERNEL_OK")
</pallas_src>

<mosaic_0001>
module attributes {stable_mosaic.version = 11 : i64} {
  func.func @_conv3x3_kernel(%arg0: i32, %arg1: memref<1x18x18x4xbf16, #tpu.memory_space<vmem>>, %arg2: memref<1x128xf32, #tpu.memory_space<vmem>>, %arg3: memref<1x128xf32, #tpu.memory_space<vmem>>, %arg4: memref<36x128xbf16, #tpu.memory_space<vmem>>, %arg5: memref<1x18x18x128xbf16, #tpu.memory_space<vmem>>, %arg6: memref<1x2x128xf32, #tpu.memory_space<vmem>>) attributes {dimension_semantics = [#tpu.dimension_semantics<parallel>], iteration_bounds = array<i64: 2>, scalar_prefetch = 0 : i64, scratch_operands = 0 : i64, tpu.core_type = #tpu.core_type<tc>, window_params = [{transform_indices = @transform_0, window_bounds = array<i64: 1, 18, 18, 4>}, {pipeline_mode = #tpu.pipeline_mode<synchronous>, transform_indices = @transform_1, window_bounds = array<i64: 1, 128>}, {pipeline_mode = #tpu.pipeline_mode<synchronous>, transform_indices = @transform_2, window_bounds = array<i64: 1, 128>}, {pipeline_mode = #tpu.pipeline_mode<synchronous>, transform_indices = @transform_3, window_bounds = array<i64: 36, 128>}, {transform_indices = @transform_4, window_bounds = array<i64: 1, 18, 18, 128>}, {transform_indices = @transform_5, window_bounds = array<i64: 1, 2, 128>}]} {
    %c0 = arith.constant 0 : index
    %c0_0 = arith.constant 0 : index
    %c0_1 = arith.constant 0 : index
    %c0_2 = arith.constant 0 : index
    %0 = vector.load %arg1[%c0, %c0_0, %c0_1, %c0_2] : memref<1x18x18x4xbf16, #tpu.memory_space<vmem>>, vector<1x18x18x4xbf16>
    %1 = vector.shape_cast %0 : vector<1x18x18x4xbf16> to vector<18x18x4xbf16>
    %2 = vector.extract_strided_slice %1 {offsets = [0, 0, 0], sizes = [16, 16, 4], strides = [1, 1, 1]} : vector<18x18x4xbf16> to vector<16x16x4xbf16>
    %3 = vector.extract_strided_slice %1 {offsets = [0, 1, 0], sizes = [16, 16, 4], strides = [1, 1, 1]} : vector<18x18x4xbf16> to vector<16x16x4xbf16>
    %4 = vector.extract_strided_slice %1 {offsets = [0, 2, 0], sizes = [16, 16, 4], strides = [1, 1, 1]} : vector<18x18x4xbf16> to vector<16x16x4xbf16>
    %5 = vector.extract_strided_slice %1 {offsets = [1, 0, 0], sizes = [16, 16, 4], strides = [1, 1, 1]} : vector<18x18x4xbf16> to vector<16x16x4xbf16>
    %6 = vector.extract_strided_slice %1 {offsets = [1, 1, 0], sizes = [16, 16, 4], strides = [1, 1, 1]} : vector<18x18x4xbf16> to vector<16x16x4xbf16>
    %7 = vector.extract_strided_slice %1 {offsets = [1, 2, 0], sizes = [16, 16, 4], strides = [1, 1, 1]} : vector<18x18x4xbf16> to vector<16x16x4xbf16>
    %8 = vector.extract_strided_slice %1 {offsets = [2, 0, 0], sizes = [16, 16, 4], strides = [1, 1, 1]} : vector<18x18x4xbf16> to vector<16x16x4xbf16>
    %9 = vector.extract_strided_slice %1 {offsets = [2, 1, 0], sizes = [16, 16, 4], strides = [1, 1, 1]} : vector<18x18x4xbf16> to vector<16x16x4xbf16>
    %10 = vector.extract_strided_slice %1 {offsets = [2, 2, 0], sizes = [16, 16, 4], strides = [1, 1, 1]} : vector<18x18x4xbf16> to vector<16x16x4xbf16>
    %11 = tpu.concatenate %2, %3, %4, %5, %6, %7, %8, %9, %10 in 2 : vector<16x16x4xbf16>, vector<16x16x4xbf16>, vector<16x16x4xbf16>, vector<16x16x4xbf16>, vector<16x16x4xbf16>, vector<16x16x4xbf16>, vector<16x16x4xbf16>, vector<16x16x4xbf16>, vector<16x16x4xbf16> -> vector<16x16x36xbf16>
    %12 = vector.shape_cast %11 : vector<16x16x36xbf16> to vector<256x36xbf16>
    %c0_3 = arith.constant 0 : index
    %c0_4 = arith.constant 0 : index
    %13 = vector.load %arg4[%c0_3, %c0_4] : memref<36x128xbf16, #tpu.memory_space<vmem>>, vector<36x128xbf16>
    %cst = arith.constant dense<0.000000e+00> : vector<256x128xf32>
    %14 = tpu.matmul %12, %13, %cst {dimension_numbers = #tpu.dot_dimension_numbers<[1], [0], [0], [1], [0, 0, 1, 1], [], []>} : vector<256x36xbf16>, vector<36x128xbf16>, vector<256x128xf32> -> vector<256x128xf32>
    %cst_5 = arith.constant dense<0.000000e+00> : vector<128xf32>
    %15 = vector.multi_reduction <add>, %14, %cst_5 [0] : vector<256x128xf32> to vector<128xf32>
    %16 = vector.shape_cast %15 : vector<128xf32> to vector<1x128xf32>
    %c0_6 = arith.constant 0 : index
    %c0_7 = arith.constant 0 : index
    %c0_8 = arith.constant 0 : index
    %17 = vector.load %arg6[%c0_6, %c0_7, %c0_8] : memref<1x2x128xf32, #tpu.memory_space<vmem>>, vector<1x1x128xf32>
    %18 = vector.shape_cast %17 : vector<1x1x128xf32> to vector<1x128xf32>
    %19 = vector.shape_cast %16 : vector<1x128xf32> to vector<1x1x128xf32>
    tpu.vector_store %arg6[%c0_6, %c0_7, %c0_8], %19 {strides = array<i32>} : memref<1x2x128xf32, #tpu.memory_space<vmem>>, vector<1x1x128xf32>,
    %20 = arith.mulf %14, %14 : vector<256x128xf32>
    %cst_9 = arith.constant dense<0.000000e+00> : vector<128xf32>
    %21 = vector.multi_reduction <add>, %20, %cst_9 [0] : vector<256x128xf32> to vector<128xf32>
    %22 = vector.shape_cast %21 : vector<128xf32> to vector<1x128xf32>
    %c0_10 = arith.constant 0 : index
    %c1 = arith.constant 1 : index
    %c0_11 = arith.constant 0 : index
    %23 = vector.load %arg6[%c0_10, %c1, %c0_11] : memref<1x2x128xf32, #tpu.memory_space<vmem>>, vector<1x1x128xf32>
    %24 = vector.shape_cast %23 : vector<1x1x128xf32> to vector<1x128xf32>
    %25 = vector.shape_cast %22 : vector<1x128xf32> to vector<1x1x128xf32>
    tpu.vector_store %arg6[%c0_10, %c1, %c0_11], %25 {strides = array<i32>} : memref<1x2x128xf32, #tpu.memory_space<vmem>>, vector<1x1x128xf32>,
    %cst_12 = arith.constant 0.000000e+00 : bf16
    %26 = vector.broadcast %cst_12 : bf16 to vector<18x18x128xbf16>
    %c0_13 = arith.constant 0 : index
    %c0_14 = arith.constant 0 : index
    %c0_15 = arith.constant 0 : index
    %c0_16 = arith.constant 0 : index
    %27 = vector.load %arg5[%c0_13, %c0_14, %c0_15, %c0_16] : memref<1x18x18x128xbf16, #tpu.memory_space<vmem>>, vector<1x18x18x128xbf16>
    %28 = vector.shape_cast %27 : vector<1x18x18x128xbf16> to vector<18x18x128xbf16>
    %29 = vector.shape_cast %26 : vector<18x18x128xbf16> to vector<1x18x18x128xbf16>
    tpu.vector_store %arg5[%c0_13, %c0_14, %c0_15, %c0_16], %29 {strides = array<i32>} : memref<1x18x18x128xbf16, #tpu.memory_space<vmem>>, vector<1x18x18x128xbf16>,
    %30 = arith.truncf %14 : vector<256x128xf32> to vector<256x128xbf16>
    %31 = vector.shape_cast %30 : vector<256x128xbf16> to vector<16x16x128xbf16>
    %c0_17 = arith.constant 0 : index
    %c1_18 = arith.constant 1 : index
    %c1_19 = arith.constant 1 : index
    %c0_20 = arith.constant 0 : index
    %32 = vector.load %arg5[%c0_17, %c1_18, %c1_19, %c0_20] : memref<1x18x18x128xbf16, #tpu.memory_space<vmem>>, vector<1x16x16x128xbf16>
    %33 = vector.shape_cast %32 : vector<1x16x16x128xbf16> to vector<16x16x128xbf16>
    %34 = vector.shape_cast %31 : vector<16x16x128xbf16> to vector<1x16x16x128xbf16>
    tpu.vector_store %arg5[%c0_17, %c1_18, %c1_19, %c0_20], %34 {strides = array<i32>} : memref<1x18x18x128xbf16, #tpu.memory_space<vmem>>, vector<1x16x16x128xbf16>,
    return
  }
  func.func @transform_0(%arg0: i32) -> (i32, i32, i32, i32) {
    %c0_i32 = arith.constant 0 : i32
    %c0_i32_0 = arith.constant 0 : i32
    %c0_i32_1 = arith.constant 0 : i32
    %c0_i32_2 = arith.constant 0 : i32
    return %arg0, %c0_i32, %c0_i32_0, %c0_i32_1 : i32, i32, i32, i32
  }
  func.func @transform_1(%arg0: i32) -> (i32, i32) {
    %c0_i32 = arith.constant 0 : i32
    %c0_i32_0 = arith.constant 0 : i32
    %c0_i32_1 = arith.constant 0 : i32
    return %c0_i32, %c0_i32_0 : i32, i32
  }
  func.func @transform_2(%arg0: i32) -> (i32, i32) {
    %c0_i32 = arith.constant 0 : i32
    %c0_i32_0 = arith.constant 0 : i32
    %c0_i32_1 = arith.constant 0 : i32
    return %c0_i32, %c0_i32_0 : i32, i32
  }
  func.func @transform_3(%arg0: i32) -> (i32, i32) {
    %c0_i32 = arith.constant 0 : i32
    %c0_i32_0 = arith.constant 0 : i32
    %c0_i32_1 = arith.constant 0 : i32
    return %c0_i32, %c0_i32_0 : i32, i32
  }
  func.func @transform_4(%arg0: i32) -> (i32, i32, i32, i32) {
    %c0_i32 = arith.constant 0 : i32
    %c0_i32_0 = arith.constant 0 : i32
    %c0_i32_1 = arith.constant 0 : i32
    %c0_i32_2 = arith.constant 0 : i32
    return %arg0, %c0_i32, %c0_i32_0, %c0_i32_1 : i32, i32, i32, i32
  }
  func.func @transform_5(%arg0: i32) -> (i32, i32, i32) {
    %c0_i32 = arith.constant 0 : i32
    %c0_i32_0 = arith.constant 0 : i32
    %c0_i32_1 = arith.constant 0 : i32
    return %arg0, %c0_i32, %c0_i32_0 : i32, i32, i32
  }
}

module attributes {stable_mosaic.version = 11 : i64} {
  func.func @_conv3x3_kernel(%arg0: i32, %arg1: memref<1x18x18x128xbf16, #tpu.memory_space<vmem>>, %arg2: memref<1x128xf32, #tpu.memory_space<vmem>>, %arg3: memref<1x128xf32, #tpu.memory_space<vmem>>, %arg4: memref<1152x128xbf16, #tpu.memory_space<vmem>>, %arg5: memref<1x18x18x128xbf16, #tpu.memory_space<vmem>>, %arg6: memref<1x2x128xf32, #tpu.memory_space<vmem>>) attributes {dimension_semantics = [#tpu.dimension_semantics<parallel>], iteration_bounds = array<i64: 2>, scalar_prefetch = 0 : i64, scratch_operands = 0 : i64, tpu.core_type = #tpu.core_type<tc>, window_params = [{transform_indices = @transform_0, window_bounds = array<i64: 1, 18, 18, 128>}, {pipeline_mode = #tpu.pipeline_mode<synchronous>, transform_indices = @transform_1, window_bounds = array<i64: 1, 128>}, {pipeline_mode = #tpu.pipeline_mode<synchronous>, transform_indices = @transform_2, window_bounds = array<i64: 1, 128>}, {pipeline_mode = #tpu.pipeline_mode<synchronous>, transform_indices = @transform_3, window_bounds = array<i64: 1152, 128>}, {transform_indices = @transform_4, window_bounds = array<i64: 1, 18, 18, 128>}, {transform_indices = @transform_5, window_bounds = array<i64: 1, 2, 128>}]} {
    %c0 = arith.constant 0 : index
    %c0_0 = arith.constant 0 : index
    %c0_1 = arith.constant 0 : index
    %c0_2 = arith.constant 0 : index
    %0 = vector.load %arg1[%c0, %c0_0, %c0_1, %c0_2] : memref<1x18x18x128xbf16, #tpu.memory_space<vmem>>, vector<1x18x18x128xbf16>
    %1 = vector.shape_cast %0 : vector<1x18x18x128xbf16> to vector<18x18x128xbf16>
    %2 = arith.extf %1 : vector<18x18x128xbf16> to vector<18x18x128xf32>
    %c0_3 = arith.constant 0 : index
    %c0_4 = arith.constant 0 : index
    %3 = vector.load %arg2[%c0_3, %c0_4] : memref<1x128xf32, #tpu.memory_space<vmem>>, vector<1x128xf32>
    %4 = vector.shape_cast %3 : vector<1x128xf32> to vector<1x1x128xf32>
    %5 = vector.broadcast %4 : vector<1x1x128xf32> to vector<18x18x128xf32>
    %6 = arith.mulf %2, %5 : vector<18x18x128xf32>
    %c0_5 = arith.constant 0 : index
    %c0_6 = arith.constant 0 : index
    %7 = vector.load %arg3[%c0_5, %c0_6] : memref<1x128xf32, #tpu.memory_space<vmem>>, vector<1x128xf32>
    %8 = vector.shape_cast %7 : vector<1x128xf32> to vector<1x1x128xf32>
    %9 = vector.broadcast %8 : vector<1x1x128xf32> to vector<18x18x128xf32>
    %10 = arith.addf %6, %9 : vector<18x18x128xf32>
    %cst = arith.constant 0.000000e+00 : f32
    %11 = vector.broadcast %cst : f32 to vector<18x18x128xf32>
    %12 = arith.maximumf %10, %11 : vector<18x18x128xf32>
    %13 = tpu.iota {dimensions = array<i32: 0>} : vector<18x18x1xi32>
    %14 = tpu.iota {dimensions = array<i32: 1>} : vector<18x18x1xi32>
    %c1_i32 = arith.constant 1 : i32
    %15 = vector.broadcast %c1_i32 : i32 to vector<18x18x1xi32>
    %16 = arith.cmpi sge, %13, %15 : vector<18x18x1xi32>
    %c16_i32 = arith.constant 16 : i32
    %17 = vector.broadcast %c16_i32 : i32 to vector<18x18x1xi32>
    %18 = arith.cmpi sle, %13, %17 : vector<18x18x1xi32>
    %19 = arith.andi %16, %18 : vector<18x18x1xi1>
    %c1_i32_7 = arith.constant 1 : i32
    %20 = vector.broadcast %c1_i32_7 : i32 to vector<18x18x1xi32>
    %21 = arith.cmpi sge, %14, %20 : vector<18x18x1xi32>
    %22 = arith.andi %19, %21 : vector<18x18x1xi1>
    %c16_i32_8 = arith.constant 16 : i32
    %23 = vector.broadcast %c16_i32_8 : i32 to vector<18x18x1xi32>
    %24 = arith.cmpi sle, %14, %23 : vector<18x18x1xi32>
    %25 = arith.andi %22, %24 : vector<18x18x1xi1>
    %cst_9 = arith.constant 0.000000e+00 : f32
    %26 = vector.shape_cast %25 : vector<18x18x1xi1> to vector<18x18x1xi1>
    %27 = vector.broadcast %26 : vector<18x18x1xi1> to vector<18x18x128xi1>
    %28 = vector.broadcast %cst_9 : f32 to vector<18x18x128xf32>
    %29 = arith.select %27, %12, %28 : vector<18x18x128xi1>, vector<18x18x128xf32>
    %30 = arith.truncf %29 : vector<18x18x128xf32> to vector<18x18x128xbf16>
    %31 = vector.extract_strided_slice %30 {offsets = [0, 0, 0], sizes = [16, 16, 128], strides = [1, 1, 1]} : vector<18x18x128xbf16> to vector<16x16x128xbf16>
    %32 = vector.extract_strided_slice %30 {offsets = [0, 1, 0], sizes = [16, 16, 128], strides = [1, 1, 1]} : vector<18x18x128xbf16> to vector<16x16x128xbf16>
    %33 = vector.extract_strided_slice %30 {offsets = [0, 2, 0], sizes = [16, 16, 128], strides = [1, 1, 1]} : vector<18x18x128xbf16> to vector<16x16x128xbf16>
    %34 = vector.extract_strided_slice %30 {offsets = [1, 0, 0], sizes = [16, 16, 128], strides = [1, 1, 1]} : vector<18x18x128xbf16> to vector<16x16x128xbf16>
    %35 = vector.extract_strided_slice %30 {offsets = [1, 1, 0], sizes = [16, 16, 128], strides = [1, 1, 1]} : vector<18x18x128xbf16> to vector<16x16x128xbf16>
    %36 = vector.extract_strided_slice %30 {offsets = [1, 2, 0], sizes = [16, 16, 128], strides = [1, 1, 1]} : vector<18x18x128xbf16> to vector<16x16x128xbf16>
    %37 = vector.extract_strided_slice %30 {offsets = [2, 0, 0], sizes = [16, 16, 128], strides = [1, 1, 1]} : vector<18x18x128xbf16> to vector<16x16x128xbf16>
    %38 = vector.extract_strided_slice %30 {offsets = [2, 1, 0], sizes = [16, 16, 128], strides = [1, 1, 1]} : vector<18x18x128xbf16> to vector<16x16x128xbf16>
    %39 = vector.extract_strided_slice %30 {offsets = [2, 2, 0], sizes = [16, 16, 128], strides = [1, 1, 1]} : vector<18x18x128xbf16> to vector<16x16x128xbf16>
    %40 = tpu.concatenate %31, %32, %33, %34, %35, %36, %37, %38, %39 in 2 : vector<16x16x128xbf16>, vector<16x16x128xbf16>, vector<16x16x128xbf16>, vector<16x16x128xbf16>, vector<16x16x128xbf16>, vector<16x16x128xbf16>, vector<16x16x128xbf16>, vector<16x16x128xbf16>, vector<16x16x128xbf16> -> vector<16x16x1152xbf16>
    %41 = vector.shape_cast %40 : vector<16x16x1152xbf16> to vector<256x1152xbf16>
    %c0_10 = arith.constant 0 : index
    %c0_11 = arith.constant 0 : index
    %42 = vector.load %arg4[%c0_10, %c0_11] : memref<1152x128xbf16, #tpu.memory_space<vmem>>, vector<1152x128xbf16>
    %cst_12 = arith.constant dense<0.000000e+00> : vector<256x128xf32>
    %43 = tpu.matmul %41, %42, %cst_12 {dimension_numbers = #tpu.dot_dimension_numbers<[1], [0], [0], [1], [0, 0, 1, 1], [], []>} : vector<256x1152xbf16>, vector<1152x128xbf16>, vector<256x128xf32> -> vector<256x128xf32>
    %cst_13 = arith.constant dense<0.000000e+00> : vector<128xf32>
    %44 = vector.multi_reduction <add>, %43, %cst_13 [0] : vector<256x128xf32> to vector<128xf32>
    %45 = vector.shape_cast %44 : vector<128xf32> to vector<1x128xf32>
    %c0_14 = arith.constant 0 : index
    %c0_15 = arith.constant 0 : index
    %c0_16 = arith.constant 0 : index
    %46 = vector.load %arg6[%c0_14, %c0_15, %c0_16] : memref<1x2x128xf32, #tpu.memory_space<vmem>>, vector<1x1x128xf32>
    %47 = vector.shape_cast %46 : vector<1x1x128xf32> to vector<1x128xf32>
    %48 = vector.shape_cast %45 : vector<1x128xf32> to vector<1x1x128xf32>
    tpu.vector_store %arg6[%c0_14, %c0_15, %c0_16], %48 {strides = array<i32>} : memref<1x2x128xf32, #tpu.memory_space<vmem>>, vector<1x1x128xf32>,
    %49 = arith.mulf %43, %43 : vector<256x128xf32>
    %cst_17 = arith.constant dense<0.000000e+00> : vector<128xf32>
    %50 = vector.multi_reduction <add>, %49, %cst_17 [0] : vector<256x128xf32> to vector<128xf32>
    %51 = vector.shape_cast %50 : vector<128xf32> to vector<1x128xf32>
    %c0_18 = arith.constant 0 : index
    %c1 = arith.constant 1 : index
    %c0_19 = arith.constant 0 : index
    %52 = vector.load %arg6[%c0_18, %c1, %c0_19] : memref<1x2x128xf32, #tpu.memory_space<vmem>>, vector<1x1x128xf32>
    %53 = vector.shape_cast %52 : vector<1x1x128xf32> to vector<1x128xf32>
    %54 = vector.shape_cast %51 : vector<1x128xf32> to vector<1x1x128xf32>
    tpu.vector_store %arg6[%c0_18, %c1, %c0_19], %54 {strides = array<i32>} : memref<1x2x128xf32, #tpu.memory_space<vmem>>, vector<1x1x128xf32>,
    %cst_20 = arith.constant 0.000000e+00 : bf16
    %55 = vector.broadcast %cst_20 : bf16 to vector<18x18x128xbf16>
    %c0_21 = arith.constant 0 : index
    %c0_22 = arith.constant 0 : index
    %c0_23 = arith.constant 0 : index
    %c0_24 = arith.constant 0 : index
    %56 = vector.load %arg5[%c0_21, %c0_22, %c0_23, %c0_24] : memref<1x18x18x128xbf16, #tpu.memory_space<vmem>>, vector<1x18x18x128xbf16>
    %57 = vector.shape_cast %56 : vector<1x18x18x128xbf16> to vector<18x18x128xbf16>
    %58 = vector.shape_cast %55 : vector<18x18x128xbf16> to vector<1x18x18x128xbf16>
    tpu.vector_store %arg5[%c0_21, %c0_22, %c0_23, %c0_24], %58 {strides = array<i32>} : memref<1x18x18x128xbf16, #tpu.memory_space<vmem>>, vector<1x18x18x128xbf16>,
    %59 = arith.truncf %43 : vector<256x128xf32> to vector<256x128xbf16>
    %60 = vector.shape_cast %59 : vector<256x128xbf16> to vector<16x16x128xbf16>
    %c0_25 = arith.constant 0 : index
    %c1_26 = arith.constant 1 : index
    %c1_27 = arith.constant 1 : index
    %c0_28 = arith.constant 0 : index
    %61 = vector.load %arg5[%c0_25, %c1_26, %c1_27, %c0_28] : memref<1x18x18x128xbf16, #tpu.memory_space<vmem>>, vector<1x16x16x128xbf16>
    %62 = vector.shape_cast %61 : vector<1x16x16x128xbf16> to vector<16x16x128xbf16>
    %63 = vector.shape_cast %60 : vector<16x16x128xbf16> to vector<1x16x16x128xbf16>
    tpu.vector_store %arg5[%c0_25, %c1_26, %c1_27, %c0_28], %63 {strides = array<i32>} : memref<1x18x18x128xbf16, #tpu.memory_space<vmem>>, vector<1x16x16x128xbf16>,
    return
  }
  func.func @transform_0(%arg0: i32) -> (i32, i32, i32, i32) {
    %c0_i32 = arith.constant 0 : i32
    %c0_i32_0 = arith.constant 0 : i32
    %c0_i32_1 = arith.constant 0 : i32
    %c0_i32_2 = arith.constant 0 : i32
    return %arg0, %c0_i32, %c0_i32_0, %c0_i32_1 : i32, i32, i32, i32
  }
  func.func @transform_1(%arg0: i32) -> (i32, i32) {
    %c0_i32 = arith.constant 0 : i32
    %c0_i32_0 = arith.constant 0 : i32
    %c0_i32_1 = arith.constant 0 : i32
    return %c0_i32, %c0_i32_0 : i32, i32
  }
  func.func @transform_2(%arg0: i32) -> (i32, i32) {
    %c0_i32 = arith.constant 0 : i32
    %c0_i32_0 = arith.constant 0 : i32
    %c0_i32_1 = arith.constant 0 : i32
    return %c0_i32, %c0_i32_0 : i32, i32
  }
  func.func @transform_3(%arg0: i32) -> (i32, i32) {
    %c0_i32 = arith.constant 0 : i32
    %c0_i32_0 = arith.constant 0 : i32
    %c0_i32_1 = arith.constant 0 : i32
    return %c0_i32, %c0_i32_0 : i32, i32
  }
  func.func @transform_4(%arg0: i32) -> (i32, i32, i32, i32) {
    %c0_i32 = arith.constant 0 : i32
    %c0_i32_0 = arith.constant 0 : i32
    %c0_i32_1 = arith.constant 0 : i32
    %c0_i32_2 = arith.constant 0 : i32
    return %arg0, %c0_i32, %c0_i32_0, %c0_i32_1 : i32, i32, i32, i32
  }
  func.func @transform_5(%arg0: i32) -> (i32, i32, i32) {
    %c0_i32 = arith.constant 0 : i32
    %c0_i32_0 = arith.constant 0 : i32
    %c0_i32_1 = arith.constant 0 : i32
    return %arg0, %c0_i32, %c0_i32_0 : i32, i32, i32
  }
}

module attributes {stable_mosaic.version = 11 : i64} {
  func.func @_bn_relu_kernel(%arg0: i32, %arg1: memref<216x128xbf16, #tpu.memory_space<vmem>>, %arg2: memref<1x128xf32, #tpu.memory_space<vmem>>, %arg3: memref<1x128xf32, #tpu.memory_space<vmem>>, %arg4: memref<216x128xf32, #tpu.memory_space<vmem>>) attributes {dimension_semantics = [#tpu.dimension_semantics<parallel>], iteration_bounds = array<i64: 3>, scalar_prefetch = 0 : i64, scratch_operands = 0 : i64, tpu.core_type = #tpu.core_type<tc>, window_params = [{transform_indices = @transform_0, window_bounds = array<i64: 216, 128>}, {pipeline_mode = #tpu.pipeline_mode<synchronous>, transform_indices = @transform_1, window_bounds = array<i64: 1, 128>}, {pipeline_mode = #tpu.pipeline_mode<synchronous>, transform_indices = @transform_2, window_bounds = array<i64: 1, 128>}, {transform_indices = @transform_3, window_bounds = array<i64: 216, 128>}]} {
    %c0 = arith.constant 0 : index
    %c0_0 = arith.constant 0 : index
    %0 = vector.load %arg1[%c0, %c0_0] : memref<216x128xbf16, #tpu.memory_space<vmem>>, vector<216x128xbf16>
    %1 = arith.extf %0 : vector<216x128xbf16> to vector<216x128xf32>
    %c0_1 = arith.constant 0 : index
    %c0_2 = arith.constant 0 : index
    %2 = vector.load %arg2[%c0_1, %c0_2] : memref<1x128xf32, #tpu.memory_space<vmem>>, vector<1x128xf32>
    %3 = vector.broadcast %2 : vector<1x128xf32> to vector<216x128xf32>
    %4 = arith.mulf %1, %3 : vector<216x128xf32>
    %c0_3 = arith.constant 0 : index
    %c0_4 = arith.constant 0 : index
    %5 = vector.load %arg3[%c0_3, %c0_4] : memref<1x128xf32, #tpu.memory_space<vmem>>, vector<1x128xf32>
    %6 = vector.broadcast %5 : vector<1x128xf32> to vector<216x128xf32>
    %7 = arith.addf %4, %6 : vector<216x128xf32>
    %cst = arith.constant 0.000000e+00 : f32
    %8 = vector.broadcast %cst : f32 to vector<216x128xf32>
    %9 = arith.maximumf %7, %8 : vector<216x128xf32>
    %c0_5 = arith.constant 0 : index
    %c0_6 = arith.constant 0 : index
    %10 = vector.load %arg4[%c0_5, %c0_6] : memref<216x128xf32, #tpu.memory_space<vmem>>, vector<216x128xf32>
    tpu.vector_store %arg4[%c0_5, %c0_6], %9 {strides = array<i32>} : memref<216x128xf32, #tpu.memory_space<vmem>>, vector<216x128xf32>,
    return
  }
  func.func @transform_0(%arg0: i32) -> (i32, i32) {
    %c0_i32 = arith.constant 0 : i32
    %c0_i32_0 = arith.constant 0 : i32
    return %arg0, %c0_i32 : i32, i32
  }
  func.func @transform_1(%arg0: i32) -> (i32, i32) {
    %c0_i32 = arith.constant 0 : i32
    %c0_i32_0 = arith.constant 0 : i32
    %c0_i32_1 = arith.constant 0 : i32
    return %c0_i32, %c0_i32_0 : i32, i32
  }
  func.func @transform_2(%arg0: i32) -> (i32, i32) {
    %c0_i32 = arith.constant 0 : i32
    %c0_i32_0 = arith.constant 0 : i32
    %c0_i32_1 = arith.constant 0 : i32
    return %c0_i32, %c0_i32_0 : i32, i32
  }
  func.func @transform_3(%arg0: i32) -> (i32, i32) {
    %c0_i32 = arith.constant 0 : i32
    %c0_i32_0 = arith.constant 0 : i32
    return %arg0, %c0_i32 : i32, i32
  }
}

</mosaic_0001>

<llo_original>
// kernel: double_conv.5
$region0: #{double_conv.5}
  #allocation0 [shape = 'u32[]', space=smem, size = 0x4, offset = 0x4, fixed_abs, tag = 'smem constant byte address 0x4 - core index']
  #allocation1 [shape = 'u32[144,128]{1,0:T(1,128)}', space=vmem, size = 0x12000, scoped, tag = 'internal scratch']
  %s0 = inlined_call_operand.vmem [shape: bf16[648,128], index: 0, kind: input, shape index: {}]
  %s1 = inlined_call_operand.vmem [shape: f32[1,128], index: 1, kind: input, shape index: {}]
  %s2 = inlined_call_operand.vmem [shape: f32[1,128], index: 2, kind: input, shape index: {}]
  %s3 = inlined_call_operand.vmem [shape: f32[648,128], index: 3, kind: output, shape index: {}]
  %s4 = sld [smem:[#allocation0]]
  $region45: #{double_conv.5} parent=0
    _
  %s6 = ssub.s32 1, %s4
  %s7 = scalar_select 0, %s6, %s4
  loop: start=0, step=1, limit=5
  $region2: #{double_conv.5} parent=0 // loop_pre_header
    _
  $region3: #{double_conv.5} parent=0 // loop_header
    %s9 = sphi 0, %s13
    %p10 = scmp.ge.s32.totalorder %s9, 5
    %s19 = sphi 0, %s21
    %s22 = sphi 0, %s19
    %s23 = sphi 0, %s22
    %s39 = sphi 0, %s23
    %s43 = sphi 0, %s43
    %s45 = sphi 0, %s43
    %s46 = sphi 0, %s45
    %s60 = sphi 0, %s46
    %s64 = sphi 0, %s64
    %s66 = sphi 0, %s64
    %s67 = sphi 0, %s66
    %s81 = sphi 0, %s67
    %s87 = sphi 0, %s89
    %s90 = sphi 0, %s87
    %s91 = sphi 0, %s90
    %s107 = sphi 0, %s91
  $region4: #{double_conv.5} parent=0 // loop_header_branch
    %12 = sbr.rel (%p10) target = $region8
  $region5: #{double_conv.5} parent=0 // loop_body
    %s14 = ssub.s32 %s9, 1
    %s15 = ssub.s32 %s9, 2
    %s16 = sadd.s32 %s9, 1
    %s17 = ssub.s32 %s9, %s16
    %p18 = scmp.eq.s32.totalorder %s17, 0
    %s20 = sadd.s32 %s19, 1
    %s21 = scalar_select %p18, %s19, %s20
    %p24 = pneg %p18
    %p25 = scmp.eq.s32.totalorder %s9, 2
    %p26 = por %p24, %p25
    %p27 = scmp.ne.s32.totalorder %s19, %s22
    %p28 = scmp.eq.s32.totalorder %s9, 0
    %p29 = por %p27, %p28
    %p30 = scmp.ne.s32.totalorder %s19, %s22
    %p31 = scmp.eq.s32.totalorder %s14, 2
    %p32 = por %p30, %p31
    %p33 = scmp.ne.s32.totalorder %s22, %s23
    %p34 = scmp.eq.s32.totalorder %s14, 0
    %p35 = por %p33, %p34
    %p36 = scmp.ne.s32.totalorder %s22, %s23
    %p37 = scmp.eq.s32.totalorder %s15, 2
    %p38 = por %p36, %p37
    %p40 = scmp.ne.s32.totalorder %s23, %s39
    %p41 = scmp.eq.s32.totalorder %s15, 0
    %p42 = por %p40, %p41
    %s44 = sadd.s32 %s43, 1
    %p47 = scmp.eq.s32.totalorder %s9, 2
    %p48 = scmp.ne.s32.totalorder %s43, %s45
    %p49 = scmp.eq.s32.totalorder %s9, 0
    %p50 = por %p48, %p49
    %p51 = scmp.ne.s32.totalorder %s43, %s45
    %p52 = scmp.eq.s32.totalorder %s14, 2
    %p53 = por %p51, %p52
    %p54 = scmp.ne.s32.totalorder %s45, %s46
    %p55 = scmp.eq.s32.totalorder %s14, 0
    %p56 = por %p54, %p55
    %p57 = scmp.ne.s32.totalorder %s45, %s46
    %p58 = scmp.eq.s32.totalorder %s15, 2
    %p59 = por %p57, %p58
    %p61 = scmp.ne.s32.totalorder %s46, %s60
    %p62 = scmp.eq.s32.totalorder %s15, 0
    %p63 = por %p61, %p62
    %s65 = sadd.s32 %s64, 1
    %p68 = scmp.eq.s32.totalorder %s9, 2
    %p69 = scmp.ne.s32.totalorder %s64, %s66
    %p70 = scmp.eq.s32.totalorder %s9, 0
    %p71 = por %p69, %p70
    %p72 = scmp.ne.s32.totalorder %s64, %s66
    %p73 = scmp.eq.s32.totalorder %s14, 2
    %p74 = por %p72, %p73
    %p75 = scmp.ne.s32.totalorder %s66, %s67
    %p76 = scmp.eq.s32.totalorder %s14, 0
    %p77 = por %p75, %p76
    %p78 = scmp.ne.s32.totalorder %s66, %s67
    %p79 = scmp.eq.s32.totalorder %s15, 2
    %p80 = por %p78, %p79
    %p82 = scmp.ne.s32.totalorder %s67, %s81
    %p83 = scmp.eq.s32.totalorder %s15, 0
    %p84 = por %p82, %p83
    %s85 = ssub.s32 %s9, %s16
    %p86 = scmp.eq.s32.totalorder %s85, 0
    %s88 = sadd.s32 %s87, 1
    %s89 = scalar_select %p86, %s87, %s88
    %p92 = pneg %p86
    %p93 = scmp.eq.s32.totalorder %s9, 2
    %p94 = por %p92, %p93
    %p95 = scmp.ne.s32.totalorder %s87, %s90
    %p96 = scmp.eq.s32.totalorder %s9, 0
    %p97 = por %p95, %p96
    %p98 = scmp.ne.s32.totalorder %s87, %s90
    %p99 = scmp.eq.s32.totalorder %s14, 2
    %p100 = por %p98, %p99
    %p101 = scmp.ne.s32.totalorder %s90, %s91
    %p102 = scmp.eq.s32.totalorder %s14, 0
    %p103 = por %p101, %p102
    %p104 = scmp.ne.s32.totalorder %s90, %s91
    %p105 = scmp.eq.s32.totalorder %s15, 2
    %p106 = por %p104, %p105
    %p108 = scmp.ne.s32.totalorder %s91, %s107
    %p109 = scmp.eq.s32.totalorder %s15, 0
    %p110 = por %p108, %p109
    %p111 = scmp.le.s32.totalorder 1, %s9
    %p112 = scmp.lt.s32.totalorder %s9, 4
    %p113 = pnand %p111, %p112
    %p114 = pneg %p113
    // Predicated region
    $region9: #{double_conv.5} parent=5 // pred_check
      _
    $region10: #{double_conv.5} parent=5 // pred_check_branch
      %116 = sbr.rel (%p113) target = $region12
    $region11: #{double_conv.5} parent=5 // pred_region
      %s117 = ssub.s32 %s9, 1
      // Predicated region
      $region13: #{double_conv.5} parent=11 // pred_check
        %p118 = pneg %p56
      $region14: #{double_conv.5} parent=11 // pred_check_branch
        %120 = sbr.rel (%p118) target = $region16
      $region15: #{double_conv.5} parent=11 // pred_region
        _
      $region16: #{double_conv.5} parent=11 // pred_fallthru
        _
      // Predicated region
      $region17: #{double_conv.5} parent=11 // pred_check
        %p121 = pneg %p77
      $region18: #{double_conv.5} parent=11 // pred_check_branch
        %123 = sbr.rel (%p121) target = $region20
      $region19: #{double_conv.5} parent=11 // pred_region
        _
      $region20: #{double_conv.5} parent=11 // pred_fallthru
        _
    $region12: #{double_conv.5} parent=5 // pred_fallthru
      _
    %p124 = scmp.lt.s32.totalorder %s9, 3
    // Predicated region
    $region21: #{double_conv.5} parent=5 // pred_check
      %p125 = pneg %p124
    $region22: #{double_conv.5} parent=5 // pred_check_branch
      %127 = sbr.rel (%p125) target = $region24
    $region23: #{double_conv.5} parent=5 // pred_region
      // Predicated region
      $region25: #{double_conv.5} parent=23 // pred_check
        %p128 = pneg %p29
      $region26: #{double_conv.5} parent=23 // pred_check_branch
        %130 = sbr.rel (%p128) target = $region28
      $region27: #{double_conv.5} parent=23 // pred_region
        %s131 = smul.u32 27, %s9
        %p132 = scmp.lt.s32.totalorder %s131, 80
        %s133 = scalar_select %p132, %s131, 80
        %s134 = smul.addr %s133, 4
        %s135 = scalar_lea.vmem %s0, %s134
        %s136 = smul.u32 27, %s9
      $region28: #{double_conv.5} parent=23 // pred_fallthru
        _
    $region24: #{double_conv.5} parent=5 // pred_fallthru
      _
    %p137 = scmp.le.s32.totalorder 1, %s9
    %p138 = scmp.lt.s32.totalorder %s9, 4
    %p139 = pnand %p137, %p138
    %p140 = pneg %p139
    // Predicated region
    $region29: #{double_conv.5} parent=5 // pred_check
      _
    $region30: #{double_conv.5} parent=5 // pred_check_branch
      %142 = sbr.rel (%p139) target = $region32
    $region31: #{double_conv.5} parent=5 // pred_region
      %s143 = ssub.s32 %s9, 1
      %s144 = smul.u32 27, %s14
      %p145 = scmp.lt.s32.totalorder %s144, 80
      %s146 = scalar_select %p145, %s144, 80
      %s147 = smul.addr %s146, 4
      %s148 = scalar_lea.vmem %s0, %s147
      %p149 = pneg %p35
      %p150 = pneg %p32
      %p151 = pneg %p56
      %p152 = pneg %p53
      %p153 = pneg %p77
      %p154 = pneg %p74
      %p155 = pneg %p103
      %p156 = pneg %p100
      %s157 = smul.u32 27, %s14
      %p158 = scmp.lt.s32.totalorder %s157, 80
      %s159 = scalar_select %p158, %s157, 80
      %s160 = smul.addr %s159, 8
      %s161 = scalar_lea.vmem %s3, %s160
      %s162 = smul.u32 27, %s14
      %p163 = scmp.lt.s32.totalorder %s162, 80
      %s164 = scalar_select %p163, %s162, 80
      %s165 = smul.addr %s164, 4
      %s166 = scalar_lea.vmem %s0, %s165
      %s167 = smul.u32 27, %s14
      %s168 = smul.u32 27, %s14
      %p169 = scmp.lt.s32.totalorder %s168, 80
      %s170 = scalar_select %p169, %s168, 80
      %s171 = smul.addr %s170, 8
      %s172 = scalar_lea.vmem %s3, %s171
      %s173 = smul.u32 27, %s14
      %v174 = vld [vmem:[%s166] sm:$0xf]
      %v175 = vld [vmem:[%s166 + $0x4] sm:$0xf]
      %v176 = vld [vmem:[%s166 + $0x8] sm:$0xf]
      %v177 = vld [vmem:[%s166 + $0xc] sm:$0xf]
      %v178 = vld [vmem:[%s166 + $0x10] sm:$0xf]
      %v179 = vld [vmem:[%s166 + $0x14] sm:$0xf]
      %v180 = vld [vmem:[%s166 + $0x18] sm:$0xf]
      %v181 = vld [vmem:[%s166 + $0x1c] sm:$0xf]
      %v182 = vld [vmem:[%s166 + $0x20] sm:$0xf]
      %v183 = vld [vmem:[%s166 + $0x24] sm:$0xf]
      %v184 = vld [vmem:[%s166 + $0x28] sm:$0xf]
      %v185 = vld [vmem:[%s166 + $0x2c] sm:$0xf]
      %v186 = vld [vmem:[%s166 + $0x30] sm:$0xf]
      %v187 = vld [vmem:[%s166 + $0x34] sm:$0xf]
      %v188 = vld [vmem:[%s166 + $0x38] sm:$0xf]
      %v189 = vld [vmem:[%s166 + $0x3c] sm:$0xf]
      %v190 = vld [vmem:[%s166 + $0x40] sm:$0xf]
      %v191 = vld [vmem:[%s166 + $0x44] sm:$0xf]
      %v192 = vld [vmem:[%s166 + $0x48] sm:$0xf]
      %v193 = vld [vmem:[%s166 + $0x4c] sm:$0xf]
      %v194 = vld [vmem:[%s166 + $0x50] sm:$0xf]
      %v195 = vld [vmem:[%s166 + $0x54] sm:$0xf]
      %v196 = vld [vmem:[%s166 + $0x58] sm:$0xf]
      %v197 = vld [vmem:[%s166 + $0x5c] sm:$0xf]
      %v198 = vld [vmem:[%s166 + $0x60] sm:$0xf]
      %v199 = vld [vmem:[%s166 + $0x64] sm:$0xf]
      %v200 = vld [vmem:[%s166 + $0x68] sm:$0xf]
      %v201 = vunpack.c.l.bf16 %v174
      %v202 = vunpack.c.l.bf16 %v175
      %v203 = vunpack.c.l.bf16 %v176
      %v204 = vunpack.c.l.bf16 %v177
      %v205 = vunpack.c.l.bf16 %v178
      %v206 = vunpack.c.l.bf16 %v179
      %v207 = vunpack.c.l.bf16 %v180
      %v208 = vunpack.c.l.bf16 %v181
      %v209 = vunpack.c.l.bf16 %v182
      %v210 = vunpack.c.l.bf16 %v183
      %v211 = vunpack.c.l.bf16 %v184
      %v212 = vunpack.c.l.bf16 %v185
      %v213 = vunpack.c.l.bf16 %v186
      %v214 = vunpack.c.l.bf16 %v187
      %v215 = vunpack.c.l.bf16 %v188
      %v216 = vunpack.c.l.bf16 %v189
      %v217 = vunpack.c.l.bf16 %v190
      %v218 = vunpack.c.l.bf16 %v191
      %v219 = vunpack.c.l.bf16 %v192
      %v220 = vunpack.c.l.bf16 %v193
      %v221 = vunpack.c.l.bf16 %v194
      %v222 = vunpack.c.l.bf16 %v195
      %v223 = vunpack.c.l.bf16 %v196
      %v224 = vunpack.c.l.bf16 %v197
      %v225 = vunpack.c.l.bf16 %v198
      %v226 = vunpack.c.l.bf16 %v199
      %v227 = vunpack.c.l.bf16 %v200
      %v228 = vld [vmem:[%s1] sm:$0x1]
      %v230 = vlaneseq
      %v231 = vshrl.u32 %v230, 7
      %v232 = vsub.s32 0, %v231
      %v233 = vrot.slane %v228, %v232
      %v235 = vmul.f32 %v201, %v233
      %v236 = vmul.f32 %v202, %v233
      %v237 = vmul.f32 %v203, %v233
      %v238 = vmul.f32 %v204, %v233
      %v239 = vmul.f32 %v205, %v233
      %v240 = vmul.f32 %v206, %v233
      %v241 = vmul.f32 %v207, %v233
      %v242 = vmul.f32 %v208, %v233
      %v243 = vmul.f32 %v209, %v233
      %v244 = vmul.f32 %v210, %v233
      %v245 = vmul.f32 %v211, %v233
      %v246 = vmul.f32 %v212, %v233
      %v247 = vmul.f32 %v213, %v233
      %v248 = vmul.f32 %v214, %v233
      %v249 = vmul.f32 %v215, %v233
      %v250 = vmul.f32 %v216, %v233
      %v251 = vmul.f32 %v217, %v233
      %v252 = vmul.f32 %v218, %v233
      %v253 = vmul.f32 %v219, %v233
      %v254 = vmul.f32 %v220, %v233
      %v255 = vmul.f32 %v221, %v233
      %v256 = vmul.f32 %v222, %v233
      %v257 = vmul.f32 %v223, %v233
      %v258 = vmul.f32 %v224, %v233
      %v259 = vmul.f32 %v225, %v233
      %v260 = vmul.f32 %v226, %v233
      %v261 = vmul.f32 %v227, %v233
      %v262 = vld [vmem:[%s2] sm:$0x1]
      %v264 = vlaneseq
      %v265 = vshrl.u32 %v264, 7
      %v266 = vsub.s32 0, %v265
      %v267 = vrot.slane %v262, %v266
      %v269 = vadd.f32 %v235, %v267
      %v270 = vadd.f32 %v236, %v267
      %v271 = vadd.f32 %v237, %v267
      %v272 = vadd.f32 %v238, %v267
      %v273 = vadd.f32 %v239, %v267
      %v274 = vadd.f32 %v240, %v267
      %v275 = vadd.f32 %v241, %v267
      %v276 = vadd.f32 %v242, %v267
      %v277 = vadd.f32 %v243, %v267
      %v278 = vadd.f32 %v244, %v267
      %v279 = vadd.f32 %v245, %v267
      %v280 = vadd.f32 %v246, %v267
      %v281 = vadd.f32 %v247, %v267
      %v282 = vadd.f32 %v248, %v267
      %v283 = vadd.f32 %v249, %v267
      %v284 = vadd.f32 %v250, %v267
      %v285 = vadd.f32 %v251, %v267
      %v286 = vadd.f32 %v252, %v267
      %v287 = vadd.f32 %v253, %v267
      %v288 = vadd.f32 %v254, %v267
      %v289 = vadd.f32 %v255, %v267
      %v290 = vadd.f32 %v256, %v267
      %v291 = vadd.f32 %v257, %v267
      %v292 = vadd.f32 %v258, %v267
      %v293 = vadd.f32 %v259, %v267
      %v294 = vadd.f32 %v260, %v267
      %v295 = vadd.f32 %v261, %v267
      %v296 = vmax.f32 %v269, 0.0
      %v297 = vmax.f32 %v270, 0.0
      %v298 = vmax.f32 %v271, 0.0
      %v299 = vmax.f32 %v272, 0.0
      %v300 = vmax.f32 %v273, 0.0
      %v301 = vmax.f32 %v274, 0.0
      %v302 = vmax.f32 %v275, 0.0
      %v303 = vmax.f32 %v276, 0.0
      %v304 = vmax.f32 %v277, 0.0
      %v305 = vmax.f32 %v278, 0.0
      %v306 = vmax.f32 %v279, 0.0
      %v307 = vmax.f32 %v280, 0.0
      %v308 = vmax.f32 %v281, 0.0
      %v309 = vmax.f32 %v282, 0.0
      %v310 = vmax.f32 %v283, 0.0
      %v311 = vmax.f32 %v284, 0.0
      %v312 = vmax.f32 %v285, 0.0
      %v313 = vmax.f32 %v286, 0.0
      %v314 = vmax.f32 %v287, 0.0
      %v315 = vmax.f32 %v288, 0.0
      %v316 = vmax.f32 %v289, 0.0
      %v317 = vmax.f32 %v290, 0.0
      %v318 = vmax.f32 %v291, 0.0
      %v319 = vmax.f32 %v292, 0.0
      %v320 = vmax.f32 %v293, 0.0
      %v321 = vmax.f32 %v294, 0.0
      %v322 = vmax.f32 %v295, 0.0
      %323 = vst [vmem:[%s172] sm:$0xff] %v296
      %324 = vst [vmem:[%s172 + $0x8] sm:$0xff] %v297
      %325 = vst [vmem:[%s172 + $0x10] sm:$0xff] %v298
      %326 = vst [vmem:[%s172 + $0x18] sm:$0xff] %v299
      %327 = vst [vmem:[%s172 + $0x20] sm:$0xff] %v300
      %328 = vst [vmem:[%s172 + $0x28] sm:$0xff] %v301
      %329 = vst [vmem:[%s172 + $0x30] sm:$0xff] %v302
      %330 = vst [vmem:[%s172 + $0x38] sm:$0xff] %v303
      %331 = vst [vmem:[%s172 + $0x40] sm:$0xff] %v304
      %332 = vst [vmem:[%s172 + $0x48] sm:$0xff] %v305
      %333 = vst [vmem:[%s172 + $0x50] sm:$0xff] %v306
      %334 = vst [vmem:[%s172 + $0x58] sm:$0xff] %v307
      %335 = vst [vmem:[%s172 + $0x60] sm:$0xff] %v308
      %336 = vst [vmem:[%s172 + $0x68] sm:$0xff] %v309
      %337 = vst [vmem:[%s172 + $0x70] sm:$0xff] %v310
      %338 = vst [vmem:[%s172 + $0x78] sm:$0xff] %v311
      %339 = vst [vmem:[%s172 + $0x80] sm:$0xff] %v312
      %340 = vst [vmem:[%s172 + $0x88] sm:$0xff] %v313
      %341 = vst [vmem:[%s172 + $0x90] sm:$0xff] %v314
      %342 = vst [vmem:[%s172 + $0x98] sm:$0xff] %v315
      %343 = vst [vmem:[%s172 + $0xa0] sm:$0xff] %v316
      %344 = vst [vmem:[%s172 + $0xa8] sm:$0xff] %v317
      %345 = vst [vmem:[%s172 + $0xb0] sm:$0xff] %v318
      %346 = vst [vmem:[%s172 + $0xb8] sm:$0xff] %v319
      %347 = vst [vmem:[%s172 + $0xc0] sm:$0xff] %v320
      %348 = vst [vmem:[%s172 + $0xc8] sm:$0xff] %v321
      %349 = vst [vmem:[%s172 + $0xd0] sm:$0xff] %v322
      %s350 = smul.u32 27, %s14
      %p351 = scmp.lt.s32.totalorder %s350, 80
      %s352 = scalar_select %p351, %s350, 80
      %s353 = smul.addr %s352, 8
      %s354 = scalar_lea.vmem %s3, %s353
      // Predicated region
      $region33: #{double_conv.5} parent=31 // pred_check
        %p355 = pneg %p100
      $region34: #{double_conv.5} parent=31 // pred_check_branch
        %357 = sbr.rel (%p355) target = $region36
      $region35: #{double_conv.5} parent=31 // pred_region
        %s358 = smul.u32 27, %s14
      $region36: #{double_conv.5} parent=31 // pred_fallthru
        _
    $region32: #{double_conv.5} parent=5 // pred_fallthru
      _
    %p359 = scmp.le.s32.totalorder 2, %s9
    // Predicated region
    $region37: #{double_conv.5} parent=5 // pred_check
      %p360 = pneg %p359
    $region38: #{double_conv.5} parent=5 // pred_check_branch
      %362 = sbr.rel (%p360) target = $region40
    $region39: #{double_conv.5} parent=5 // pred_region
      %s363 = ssub.s32 %s9, 2
      // Predicated region
      $region41: #{double_conv.5} parent=39 // pred_check
        %p364 = pneg %p106
      $region42: #{double_conv.5} parent=39 // pred_check_branch
        %366 = sbr.rel (%p364) target = $region44
      $region43: #{double_conv.5} parent=39 // pred_region
        %s367 = smul.u32 27, %s15
        %p368 = scmp.lt.s32.totalorder %s367, 80
        %s369 = scalar_select %p368, %s367, 80
        %s370 = smul.addr %s369, 8
        %s371 = scalar_lea.vmem %s3, %s370
      $region44: #{double_conv.5} parent=39 // pred_fallthru
        _
    $region40: #{double_conv.5} parent=5 // pred_fallthru
      _
  $region6: #{double_conv.5} parent=0 // loop_footer
    %s13 = sadd.s32 1, %s9
  $region7: #{double_conv.5} parent=0 // loop_footer_branch
    %8 = sbr.rel target = $region3
  $region8: #{double_conv.5} parent=0 // loop_exit
    _

// kernel: double_conv.3
$region0: #{double_conv.3}
  #allocation0 [shape = 'u32[]', space=smem, size = 0x4, offset = 0x4, fixed_abs, tag = 'smem constant byte address 0x4 - core index']
  #allocation1 [shape = 'u32[144,128]{1,0:T(1,128)}', space=vmem, size = 0x12000, scoped, tag = 'internal scratch']
  %s0 = inlined_call_operand.vmem [shape: bf16[2,18,18,4], index: 0, kind: input, shape index: {}]
  %s1 = inlined_call_operand.vmem [shape: f32[1,128], index: 1, kind: input, shape index: {}]
  %s2 = inlined_call_operand.vmem [shape: f32[1,128], index: 2, kind: input, shape index: {}]
  %s3 = inlined_call_operand.vmem [shape: bf16[36,128], index: 3, kind: input, shape index: {}]
  %s4 = inlined_call_operand.vmem [shape: bf16[2,18,18,128], index: 4, kind: output, shape index: {0}]
  %s5 = inlined_call_operand.vmem [shape: f32[2,2,128], index: 5, kind: output, shape index: {1}]
  %6 = xla_tuple %s4, %s5
  %s7 = sld [smem:[#allocation0]]
  $region57: #{double_conv.3} parent=0
    _
  %s9 = ssub.s32 1, %s7
  %s10 = scalar_select 0, %s9, %s7
  loop: start=0, step=1, limit=4
  $region2: #{double_conv.3} parent=0 // loop_pre_header
    _
  $region3: #{double_conv.3} parent=0 // loop_header
    %s12 = sphi 0, %s16
    %p13 = scmp.ge.s32.totalorder %s12, 4
    %s22 = sphi 0, %s24
    %s25 = sphi 0, %s22
    %s26 = sphi 0, %s25
    %s42 = sphi 0, %s26
    %s46 = sphi 0, %s46
    %s48 = sphi 0, %s46
    %s49 = sphi 0, %s48
    %s63 = sphi 0, %s49
    %s67 = sphi 0, %s67
    %s69 = sphi 0, %s67
    %s70 = sphi 0, %s69
    %s84 = sphi 0, %s70
    %s88 = sphi 0, %s88
    %s90 = sphi 0, %s88
    %s91 = sphi 0, %s90
    %s105 = sphi 0, %s91
    %s111 = sphi 0, %s113
    %s114 = sphi 0, %s111
    %s115 = sphi 0, %s114
    %s131 = sphi 0, %s115
    %s137 = sphi 0, %s139
    %s140 = sphi 0, %s137
    %s141 = sphi 0, %s140
    %s157 = sphi 0, %s141
  $region4: #{double_conv.3} parent=0 // loop_header_branch
    %15 = sbr.rel (%p13) target = $region8
  $region5: #{double_conv.3} parent=0 // loop_body
    %s17 = ssub.s32 %s12, 1
    %s18 = ssub.s32 %s12, 2
    %s19 = sadd.s32 %s12, 1
    %s20 = ssub.s32 %s12, %s19
    %p21 = scmp.eq.s32.totalorder %s20, 0
    %s23 = sadd.s32 %s22, 1
    %s24 = scalar_select %p21, %s22, %s23
    %p27 = pneg %p21
    %p28 = scmp.eq.s32.totalorder %s12, 1
    %p29 = por %p27, %p28
    %p30 = scmp.ne.s32.totalorder %s22, %s25
    %p31 = scmp.eq.s32.totalorder %s12, 0
    %p32 = por %p30, %p31
    %p33 = scmp.ne.s32.totalorder %s22, %s25
    %p34 = scmp.eq.s32.totalorder %s17, 1
    %p35 = por %p33, %p34
    %p36 = scmp.ne.s32.totalorder %s25, %s26
    %p37 = scmp.eq.s32.totalorder %s17, 0
    %p38 = por %p36, %p37
    %p39 = scmp.ne.s32.totalorder %s25, %s26
    %p40 = scmp.eq.s32.totalorder %s18, 1
    %p41 = por %p39, %p40
    %p43 = scmp.ne.s32.totalorder %s26, %s42
    %p44 = scmp.eq.s32.totalorder %s18, 0
    %p45 = por %p43, %p44
    %s47 = sadd.s32 %s46, 1
    %p50 = scmp.eq.s32.totalorder %s12, 1
    %p51 = scmp.ne.s32.totalorder %s46, %s48
    %p52 = scmp.eq.s32.totalorder %s12, 0
    %p53 = por %p51, %p52
    %p54 = scmp.ne.s32.totalorder %s46, %s48
    %p55 = scmp.eq.s32.totalorder %s17, 1
    %p56 = por %p54, %p55
    %p57 = scmp.ne.s32.totalorder %s48, %s49
    %p58 = scmp.eq.s32.totalorder %s17, 0
    %p59 = por %p57, %p58
    %p60 = scmp.ne.s32.totalorder %s48, %s49
    %p61 = scmp.eq.s32.totalorder %s18, 1
    %p62 = por %p60, %p61
    %p64 = scmp.ne.s32.totalorder %s49, %s63
    %p65 = scmp.eq.s32.totalorder %s18, 0
    %p66 = por %p64, %p65
    %s68 = sadd.s32 %s67, 1
    %p71 = scmp.eq.s32.totalorder %s12, 1
    %p72 = scmp.ne.s32.totalorder %s67, %s69
    %p73 = scmp.eq.s32.totalorder %s12, 0
    %p74 = por %p72, %p73
    %p75 = scmp.ne.s32.totalorder %s67, %s69
    %p76 = scmp.eq.s32.totalorder %s17, 1
    %p77 = por %p75, %p76
    %p78 = scmp.ne.s32.totalorder %s69, %s70
    %p79 = scmp.eq.s32.totalorder %s17, 0
    %p80 = por %p78, %p79
    %p81 = scmp.ne.s32.totalorder %s69, %s70
    %p82 = scmp.eq.s32.totalorder %s18, 1
    %p83 = por %p81, %p82
    %p85 = scmp.ne.s32.totalorder %s70, %s84
    %p86 = scmp.eq.s32.totalorder %s18, 0
    %p87 = por %p85, %p86
    %s89 = sadd.s32 %s88, 1
    %p92 = scmp.eq.s32.totalorder %s12, 1
    %p93 = scmp.ne.s32.totalorder %s88, %s90
    %p94 = scmp.eq.s32.totalorder %s12, 0
    %p95 = por %p93, %p94
    %p96 = scmp.ne.s32.totalorder %s88, %s90
    %p97 = scmp.eq.s32.totalorder %s17, 1
    %p98 = por %p96, %p97
    %p99 = scmp.ne.s32.totalorder %s90, %s91
    %p100 = scmp.eq.s32.totalorder %s17, 0
    %p101 = por %p99, %p100
    %p102 = scmp.ne.s32.totalorder %s90, %s91
    %p103 = scmp.eq.s32.totalorder %s18, 1
    %p104 = por %p102, %p103
    %p106 = scmp.ne.s32.totalorder %s91, %s105
    %p107 = scmp.eq.s32.totalorder %s18, 0
    %p108 = por %p106, %p107
    %s109 = ssub.s32 %s12, %s19
    %p110 = scmp.eq.s32.totalorder %s109, 0
    %s112 = sadd.s32 %s111, 1
    %s113 = scalar_select %p110, %s111, %s112
    %p116 = pneg %p110
    %p117 = scmp.eq.s32.totalorder %s12, 1
    %p118 = por %p116, %p117
    %p119 = scmp.ne.s32.totalorder %s111, %s114
    %p120 = scmp.eq.s32.totalorder %s12, 0
    %p121 = por %p119, %p120
    %p122 = scmp.ne.s32.totalorder %s111, %s114
    %p123 = scmp.eq.s32.totalorder %s17, 1
    %p124 = por %p122, %p123
    %p125 = scmp.ne.s32.totalorder %s114, %s115
    %p126 = scmp.eq.s32.totalorder %s17, 0
    %p127 = por %p125, %p126
    %p128 = scmp.ne.s32.totalorder %s114, %s115
    %p129 = scmp.eq.s32.totalorder %s18, 1
    %p130 = por %p128, %p129
    %p132 = scmp.ne.s32.totalorder %s115, %s131
    %p133 = scmp.eq.s32.totalorder %s18, 0
    %p134 = por %p132, %p133
    %s135 = ssub.s32 %s12, %s19
    %p136 = scmp.eq.s32.totalorder %s135, 0
    %s138 = sadd.s32 %s137, 1
    %s139 = scalar_select %p136, %s137, %s138
    %p142 = pneg %p136
    %p143 = scmp.eq.s32.totalorder %s12, 1
    %p144 = por %p142, %p143
    %p145 = scmp.ne.s32.totalorder %s137, %s140
    %p146 = scmp.eq.s32.totalorder %s12, 0
    %p147 = por %p145, %p146
    %p148 = scmp.ne.s32.totalorder %s137, %s140
    %p149 = scmp.eq.s32.totalorder %s17, 1
    %p150 = por %p148, %p149
    %p151 = scmp.ne.s32.totalorder %s140, %s141
    %p152 = scmp.eq.s32.totalorder %s17, 0
    %p153 = por %p151, %p152
    %p154 = scmp.ne.s32.totalorder %s140, %s141
    %p155 = scmp.eq.s32.totalorder %s18, 1
    %p156 = por %p154, %p155
    %p158 = scmp.ne.s32.totalorder %s141, %s157
    %p159 = scmp.eq.s32.totalorder %s18, 0
    %p160 = por %p158, %p159
    %p161 = scmp.le.s32.totalorder 1, %s12
    %p162 = scmp.lt.s32.totalorder %s12, 3
    %p163 = pnand %p161, %p162
    %p164 = pneg %p163
    // Predicated region
    $region9: #{double_conv.3} parent=5 // pred_check
      _
    $region10: #{double_conv.3} parent=5 // pred_check_branch
      %166 = sbr.rel (%p163) target = $region12
    $region11: #{double_conv.3} parent=5 // pred_region
      %s167 = ssub.s32 %s12, 1
      // Predicated region
      $region13: #{double_conv.3} parent=11 // pred_check
        %p168 = pneg %p59
      $region14: #{double_conv.3} parent=11 // pred_check_branch
        %170 = sbr.rel (%p168) target = $region16
      $region15: #{double_conv.3} parent=11 // pred_region
        _
      $region16: #{double_conv.3} parent=11 // pred_fallthru
        _
      // Predicated region
      $region17: #{double_conv.3} parent=11 // pred_check
        %p171 = pneg %p80
      $region18: #{double_conv.3} parent=11 // pred_check_branch
        %173 = sbr.rel (%p171) target = $region20
      $region19: #{double_conv.3} parent=11 // pred_region
        _
      $region20: #{double_conv.3} parent=11 // pred_fallthru
        _
      // Predicated region
      $region21: #{double_conv.3} parent=11 // pred_check
        %p174 = pneg %p101
      $region22: #{double_conv.3} parent=11 // pred_check_branch
        %176 = sbr.rel (%p174) target = $region24
      $region23: #{double_conv.3} parent=11 // pred_region
        _
      $region24: #{double_conv.3} parent=11 // pred_fallthru
        _
    $region12: #{double_conv.3} parent=5 // pred_fallthru
      _
    %p177 = scmp.lt.s32.totalorder %s12, 2
    // Predicated region
    $region25: #{double_conv.3} parent=5 // pred_check
      %p178 = pneg %p177
    $region26: #{double_conv.3} parent=5 // pred_check_branch
      %180 = sbr.rel (%p178) target = $region28
    $region27: #{double_conv.3} parent=5 // pred_region
      // Predicated region
      $region29: #{double_conv.3} parent=27 // pred_check
        %p181 = pneg %p32
      $region30: #{double_conv.3} parent=27 // pred_check_branch
        %183 = sbr.rel (%p181) target = $region32
      $region31: #{double_conv.3} parent=27 // pred_region
        %p184 = scmp.lt.s32.totalorder %s12, 1
        %s185 = scalar_select %p184, %s12, 1
        %s186 = smul.addr %s185, 54
        %s187 = smul.addr %s186, 4
        %s188 = scalar_lea.vmem %s0, %s187
      $region32: #{double_conv.3} parent=27 // pred_fallthru
        _
    $region28: #{double_conv.3} parent=5 // pred_fallthru
      _
    %p189 = scmp.le.s32.totalorder 1, %s12
    %p190 = scmp.lt.s32.totalorder %s12, 3
    %p191 = pnand %p189, %p190
    %p192 = pneg %p191
    // Predicated region
    $region33: #{double_conv.3} parent=5 // pred_check
      _
    $region34: #{double_conv.3} parent=5 // pred_check_branch
      %194 = sbr.rel (%p191) target = $region36
    $region35: #{double_conv.3} parent=5 // pred_region
      %s195 = ssub.s32 %s12, 1
      %p196 = scmp.lt.s32.totalorder %s17, 1
      %s197 = scalar_select %p196, %s17, 1
      %s198 = smul.addr %s197, 54
      %s199 = smul.addr %s198, 4
      %s200 = scalar_lea.vmem %s0, %s199
      %p201 = pneg %p38
      %p202 = pneg %p35
      %p203 = pneg %p59
      %p204 = pneg %p56
      %p205 = pneg %p80
      %p206 = pneg %p77
      %p207 = pneg %p101
      %p208 = pneg %p98
      %p209 = pneg %p127
      %p210 = pneg %p124
      %p211 = scmp.lt.s32.totalorder %s17, 1
      %s212 = scalar_select %p211, %s17, 1
      %s213 = smul.addr %s212, 54
      %s214 = smul.addr %s213, 4
      %s215 = scalar_lea.vmem %s4, %s214
      %p216 = pneg %p153
      %p217 = pneg %p150
      %p218 = scmp.lt.s32.totalorder %s17, 1
      %s219 = scalar_select %p218, %s17, 1
      %s220 = smul.addr %s219, 2
      %s221 = scalar_lea.vmem %s5, %s220
      %p222 = scmp.lt.s32.totalorder %s17, 1
      %s223 = scalar_select %p222, %s17, 1
      %s224 = smul.addr %s223, 54
      %s225 = smul.addr %s224, 4
      %s226 = scalar_lea.vmem %s0, %s225
      %p227 = scmp.lt.s32.totalorder %s17, 1
      %s228 = scalar_select %p227, %s17, 1
      %s229 = smul.addr %s228, 54
      %s230 = smul.addr %s229, 4
      %s231 = scalar_lea.vmem %s4, %s230
      %p232 = scmp.lt.s32.totalorder %s17, 1
      %s233 = scalar_select %p232, %s17, 1
      %s234 = smul.addr %s233, 2
      %s235 = scalar_lea.vmem %s5, %s234
      %v237 = vld [vmem:[%s226] sm:$0xf]
      %v238 = vld [vmem:[%s226 + $0x4] sm:$0xf]
      %v239 = vld [vmem:[%s226 + $0x8] sm:$0x1]
      %v240 = vld [vmem:[%s226 + $0xc] sm:$0xf]
      %v241 = vld [vmem:[%s226 + $0x10] sm:$0xf]
      %v242 = vld [vmem:[%s226 + $0x14] sm:$0x1]
      %v243 = vld [vmem:[%s226 + $0x18] sm:$0xf]
      %v244 = vld [vmem:[%s226 + $0x1c] sm:$0xf]
      %v245 = vld [vmem:[%s226 + $0x20] sm:$0x1]
      %v246 = vld [vmem:[%s226 + $0x24] sm:$0xf]
      %v247 = vld [vmem:[%s226 + $0x28] sm:$0xf]
      %v248 = vld [vmem:[%s226 + $0x2c] sm:$0x1]
      %v249 = vld [vmem:[%s226 + $0x30] sm:$0xf]
      %v250 = vld [vmem:[%s226 + $0x34] sm:$0xf]
      %v251 = vld [vmem:[%s226 + $0x38] sm:$0x1]
      %v252 = vld [vmem:[%s226 + $0x3c] sm:$0xf]
      %v253 = vld [vmem:[%s226 + $0x40] sm:$0xf]
      %v254 = vld [vmem:[%s226 + $0x44] sm:$0x1]
      %v255 = vld [vmem:[%s226 + $0x48] sm:$0xf]
      %v256 = vld [vmem:[%s226 + $0x4c] sm:$0xf]
      %v257 = vld [vmem:[%s226 + $0x50] sm:$0x1]
      %v258 = vld [vmem:[%s226 + $0x54] sm:$0xf]
      %v259 = vld [vmem:[%s226 + $0x58] sm:$0xf]
      %v260 = vld [vmem:[%s226 + $0x5c] sm:$0x1]
      %v261 = vld [vmem:[%s226 + $0x60] sm:$0xf]
      %v262 = vld [vmem:[%s226 + $0x64] sm:$0xf]
      %v263 = vld [vmem:[%s226 + $0x68] sm:$0x1]
      %v264 = vld [vmem:[%s226 + $0x6c] sm:$0xf]
      %v265 = vld [vmem:[%s226 + $0x70] sm:$0xf]
      %v266 = vld [vmem:[%s226 + $0x74] sm:$0x1]
      %v267 = vld [vmem:[%s226 + $0x78] sm:$0xf]
      %v268 = vld [vmem:[%s226 + $0x7c] sm:$0xf]
      %v269 = vld [vmem:[%s226 + $0x80] sm:$0x1]
      %v270 = vld [vmem:[%s226 + $0x84] sm:$0xf]
      %v271 = vld [vmem:[%s226 + $0x88] sm:$0xf]
      %v272 = vld [vmem:[%s226 + $0x8c] sm:$0x1]
      %v273 = vld [vmem:[%s226 + $0x90] sm:$0xf]
      %v274 = vld [vmem:[%s226 + $0x94] sm:$0xf]
      %v275 = vld [vmem:[%s226 + $0x98] sm:$0x1]
      %v276 = vld [vmem:[%s226 + $0x9c] sm:$0xf]
      %v277 = vld [vmem:[%s226 + $0xa0] sm:$0xf]
      %v278 = vld [vmem:[%s226 + $0xa4] sm:$0x1]
      %v279 = vld [vmem:[%s226 + $0xa8] sm:$0xf]
      %v280 = vld [vmem:[%s226 + $0xac] sm:$0xf]
      %v281 = vld [vmem:[%s226 + $0xb0] sm:$0x1]
      %v282 = vld [vmem:[%s226 + $0xb4] sm:$0xf]
      %v283 = vld [vmem:[%s226 + $0xb8] sm:$0xf]
      %v284 = vld [vmem:[%s226 + $0xbc] sm:$0x1]
      %v285 = vld [vmem:[%s226 + $0xc0] sm:$0xf]
      %v286 = vld [vmem:[%s226 + $0xc4] sm:$0xf]
      %v287 = vld [vmem:[%s226 + $0xc8] sm:$0x1]
      %v288 = vld [vmem:[%s226 + $0xcc] sm:$0xf]
      %v289 = vld [vmem:[%s226 + $0xd0] sm:$0xf]
      %v290 = vld [vmem:[%s226 + $0xd4] sm:$0x1]
      %v323 = vunpack.c.l.b16 %v237
      %v324 = vunpack.c.l.b16 %v238
      %v325 = vunpack.c.l.b16 %v240
      %v326 = vunpack.c.l.b16 %v241
      %v327 = vunpack.c.l.b16 %v243
      %v328 = vunpack.c.l.b16 %v244
      %v329 = vunpack.c.l.b16 %v246
      %v330 = vunpack.c.l.b16 %v247
      %v331 = vunpack.c.l.b16 %v249
      %v332 = vunpack.c.l.b16 %v250
      %v333 = vunpack.c.l.b16 %v252
      %v334 = vunpack.c.l.b16 %v253
      %v335 = vunpack.c.l.b16 %v255
      %v336 = vunpack.c.l.b16 %v256
      %v337 = vunpack.c.l.b16 %v258
      %v338 = vunpack.c.l.b16 %v259
      %v339 = vunpack.c.l.b16 %v261
      %v340 = vunpack.c.l.b16 %v262
      %v341 = vunpack.c.l.b16 %v264
      %v342 = vunpack.c.l.b16 %v265
      %v343 = vunpack.c.l.b16 %v267
      %v344 = vunpack.c.l.b16 %v268
      %v345 = vunpack.c.l.b16 %v270
      %v346 = vunpack.c.l.b16 %v271
      %v347 = vunpack.c.l.b16 %v273
      %v348 = vunpack.c.l.b16 %v274
      %v349 = vunpack.c.l.b16 %v276
      %v350 = vunpack.c.l.b16 %v277
      %v351 = vunpack.c.l.b16 %v279
      %v352 = vunpack.c.l.b16 %v280
      %v353 = vunpack.c.l.b16 %v282
      %v354 = vunpack.c.l.b16 %v283
      %v355 = vpack.c.b16 %v324, %v323
      %v356 = vpack.c.b16 %v326, %v325
      %v357 = vpack.c.b16 %v328, %v327
      %v358 = vpack.c.b16 %v330, %v329
      %v359 = vpack.c.b16 %v332, %v331
      %v360 = vpack.c.b16 %v334, %v333
      %v361 = vpack.c.b16 %v336, %v335
      %v362 = vpack.c.b16 %v338, %v337
      %v363 = vpack.c.b16 %v340, %v339
      %v364 = vpack.c.b16 %v342, %v341
      %v365 = vpack.c.b16 %v344, %v343
      %v366 = vpack.c.b16 %v346, %v345
      %v367 = vpack.c.b16 %v348, %v347
      %v368 = vpack.c.b16 %v350, %v349
      %v369 = vpack.c.b16 %v352, %v351
      %v370 = vpack.c.b16 %v354, %v353
      %v387 = vunpack.c.l.b16 %v239
      %v388 = vunpack.c.l.b16 %v242
      %v389 = vunpack.c.l.b16 %v245
      %v390 = vunpack.c.l.b16 %v248
      %v391 = vunpack.c.l.b16 %v251
      %v392 = vunpack.c.l.b16 %v254
      %v393 = vunpack.c.l.b16 %v257
      %v394 = vunpack.c.l.b16 %v260
      %v395 = vunpack.c.l.b16 %v263
      %v396 = vunpack.c.l.b16 %v266
      %v397 = vunpack.c.l.b16 %v269
      %v398 = vunpack.c.l.b16 %v272
      %v399 = vunpack.c.l.b16 %v275
      %v400 = vunpack.c.l.b16 %v278
      %v401 = vunpack.c.l.b16 %v281
      %v402 = vunpack.c.l.b16 %v284
      %v403 = vpack.c.b16 %v387, %v387
      %v404 = vpack.c.b16 %v388, %v388
      %v405 = vpack.c.b16 %v389, %v389
      %v406 = vpack.c.b16 %v390, %v390
      %v407 = vpack.c.b16 %v391, %v391
      %v408 = vpack.c.b16 %v392, %v392
      %v409 = vpack.c.b16 %v393, %v393
      %v410 = vpack.c.b16 %v394, %v394
      %v411 = vpack.c.b16 %v395, %v395
      %v412 = vpack.c.b16 %v396, %v396
      %v413 = vpack.c.b16 %v397, %v397
      %v414 = vpack.c.b16 %v398, %v398
      %v415 = vpack.c.b16 %v399, %v399
      %v416 = vpack.c.b16 %v400, %v400
      %v417 = vpack.c.b16 %v401, %v401
      %v418 = vpack.c.b16 %v402, %v402
      %vm419 = vsmask.f32 7424
      %v421 = vshrl.u32 %v355, 16
      %v423 = vshll.u32 %v355, 16
      %v425 = vrot.slane %v423, 1
      %v426 = vor.u32 %v421, %v425
      %v428 = vshll.u32 %v403, 16
      %v430 = vrot.slane %v428, 1
      %v431 = vsel %vm419, %v426, %v430
      %v433 = vshrl.u32 %v356, 16
      %v435 = vshll.u32 %v356, 16
      %v437 = vrot.slane %v435, 1
      %v438 = vor.u32 %v433, %v437
      %v440 = vshll.u32 %v404, 16
      %v442 = vrot.slane %v440, 1
      %v443 = vsel %vm419, %v438, %v442
      %v445 = vshrl.u32 %v357, 16
      %v447 = vshll.u32 %v357, 16
      %v449 = vrot.slane %v447, 1
      %v450 = vor.u32 %v445, %v449
      %v452 = vshll.u32 %v405, 16
      %v454 = vrot.slane %v452, 1
      %v455 = vsel %vm419, %v450, %v454
      %v457 = vshrl.u32 %v358, 16
      %v459 = vshll.u32 %v358, 16
      %v461 = vrot.slane %v459, 1
      %v462 = vor.u32 %v457, %v461
      %v464 = vshll.u32 %v406, 16
      %v466 = vrot.slane %v464, 1
      %v467 = vsel %vm419, %v462, %v466
      %v469 = vshrl.u32 %v359, 16
      %v471 = vshll.u32 %v359, 16
      %v473 = vrot.slane %v471, 1
      %v474 = vor.u32 %v469, %v473
      %v476 = vshll.u32 %v407, 16
      %v478 = vrot.slane %v476, 1
      %v479 = vsel %vm419, %v474, %v478
      %v481 = vshrl.u32 %v360, 16
      %v483 = vshll.u32 %v360, 16
      %v485 = vrot.slane %v483, 1
      %v486 = vor.u32 %v481, %v485
      %v488 = vshll.u32 %v408, 16
      %v490 = vrot.slane %v488, 1
      %v491 = vsel %vm419, %v486, %v490
      %v493 = vshrl.u32 %v361, 16
      %v495 = vshll.u32 %v361, 16
      %v497 = vrot.slane %v495, 1
      %v498 = vor.u32 %v493, %v497
      %v500 = vshll.u32 %v409, 16
      %v502 = vrot.slane %v500, 1
      %v503 = vsel %vm419, %v498, %v502
      %v505 = vshrl.u32 %v362, 16
      %v507 = vshll.u32 %v362, 16
      %v509 = vrot.slane %v507, 1
      %v510 = vor.u32 %v505, %v509
      %v512 = vshll.u32 %v410, 16
      %v514 = vrot.slane %v512, 1
      %v515 = vsel %vm419, %v510, %v514
      %v517 = vshrl.u32 %v363, 16
      %v519 = vshll.u32 %v363, 16
      %v521 = vrot.slane %v519, 1
      %v522 = vor.u32 %v517, %v521
      %v524 = vshll.u32 %v411, 16
      %v526 = vrot.slane %v524, 1
      %v527 = vsel %vm419, %v522, %v526
      %v529 = vshrl.u32 %v364, 16
      %v531 = vshll.u32 %v364, 16
      %v533 = vrot.slane %v531, 1
      %v534 = vor.u32 %v529, %v533
      %v536 = vshll.u32 %v412, 16
      %v538 = vrot.slane %v536, 1
      %v539 = vsel %vm419, %v534, %v538
      %v541 = vshrl.u32 %v365, 16
      %v543 = vshll.u32 %v365, 16
      %v545 = vrot.slane %v543, 1
      %v546 = vor.u32 %v541, %v545
      %v548 = vshll.u32 %v413, 16
      %v550 = vrot.slane %v548, 1
      %v551 = vsel %vm419, %v546, %v550
      %v553 = vshrl.u32 %v366, 16
      %v555 = vshll.u32 %v366, 16
      %v557 = vrot.slane %v555, 1
      %v558 = vor.u32 %v553, %v557
      %v560 = vshll.u32 %v414, 16
      %v562 = vrot.slane %v560, 1
      %v563 = vsel %vm419, %v558, %v562
      %v565 = vshrl.u32 %v367, 16
      %v567 = vshll.u32 %v367, 16
      %v569 = vrot.slane %v567, 1
      %v570 = vor.u32 %v565, %v569
      %v572 = vshll.u32 %v415, 16
      %v574 = vrot.slane %v572, 1
      %v575 = vsel %vm419, %v570, %v574
      %v577 = vshrl.u32 %v368, 16
      %v579 = vshll.u32 %v368, 16
      %v581 = vrot.slane %v579, 1
      %v582 = vor.u32 %v577, %v581
      %v584 = vshll.u32 %v416, 16
      %v586 = vrot.slane %v584, 1
      %v587 = vsel %vm419, %v582, %v586
      %v589 = vshrl.u32 %v369, 16
      %v591 = vshll.u32 %v369, 16
      %v593 = vrot.slane %v591, 1
      %v594 = vor.u32 %v589, %v593
      %v596 = vshll.u32 %v417, 16
      %v598 = vrot.slane %v596, 1
      %v599 = vsel %vm419, %v594, %v598
      %v601 = vshrl.u32 %v370, 16
      %v603 = vshll.u32 %v370, 16
      %v605 = vrot.slane %v603, 1
      %v606 = vor.u32 %v601, %v605
      %v608 = vshll.u32 %v418, 16
      %v610 = vrot.slane %v608, 1
      %v611 = vsel %vm419, %v606, %v610
      %612 = vrot.lane.b32.xlu0 %v431, 4
      %v613 = vpop.permute.xlu0 %612
      %614 = vrot.lane.b32.xlu0 %v443, 4
      %v615 = vpop.permute.xlu0 %614
      %616 = vrot.lane.b32.xlu0 %v455, 4
      %v617 = vpop.permute.xlu0 %616
      %618 = vrot.lane.b32.xlu0 %v467, 4
      %v619 = vpop.permute.xlu0 %618
      %620 = vrot.lane.b32.xlu0 %v479, 4
      %v621 = vpop.permute.xlu0 %620
      %622 = vrot.lane.b32.xlu0 %v491, 4
      %v623 = vpop.permute.xlu0 %622
      %624 = vrot.lane.b32.xlu0 %v503, 4
      %v625 = vpop.permute.xlu0 %624
      %626 = vrot.lane.b32.xlu0 %v515, 4
      %v627 = vpop.permute.xlu0 %626
      %628 = vrot.lane.b32.xlu0 %v527, 4
      %v629 = vpop.permute.xlu0 %628
      %630 = vrot.lane.b32.xlu0 %v539, 4
      %v631 = vpop.permute.xlu0 %630
      %632 = vrot.lane.b32.xlu0 %v551, 4
      %v633 = vpop.permute.xlu0 %632
      %634 = vrot.lane.b32.xlu0 %v563, 4
      %v635 = vpop.permute.xlu0 %634
      %636 = vrot.lane.b32.xlu0 %v575, 4
      %v637 = vpop.permute.xlu0 %636
      %638 = vrot.lane.b32.xlu0 %v587, 4
      %v639 = vpop.permute.xlu0 %638
      %640 = vrot.lane.b32.xlu0 %v599, 4
      %v641 = vpop.permute.xlu0 %640
      %642 = vrot.lane.b32.xlu0 %v611, 4
      %v643 = vpop.permute.xlu0 %642
      %vm644 = vcmask 1046528
      %v645 = vrot.slane %v355, 1
      %v646 = vrot.slane %v403, 1
      %v647 = vsel %vm644, %v645, %v646
      %v648 = vrot.slane %v356, 1
      %v649 = vrot.slane %v404, 1
      %v650 = vsel %vm644, %v648, %v649
      %v651 = vrot.slane %v357, 1
      %v652 = vrot.slane %v405, 1
      %v653 = vsel %vm644, %v651, %v652
      %v654 = vrot.slane %v358, 1
      %v655 = vrot.slane %v406, 1
      %v656 = vsel %vm644, %v654, %v655
      %v657 = vrot.slane %v359, 1
      %v658 = vrot.slane %v407, 1
      %v659 = vsel %vm644, %v657, %v658
      %v660 = vrot.slane %v360, 1
      %v661 = vrot.slane %v408, 1
      %v662 = vsel %vm644, %v660, %v661
      %v663 = vrot.slane %v361, 1
      %v664 = vrot.slane %v409, 1
      %v665 = vsel %vm644, %v663, %v664
      %v666 = vrot.slane %v362, 1
      %v667 = vrot.slane %v410, 1
      %v668 = vsel %vm644, %v666, %v667
      %v669 = vrot.slane %v363, 1
      %v670 = vrot.slane %v411, 1
      %v671 = vsel %vm644, %v669, %v670
      %v672 = vrot.slane %v364, 1
      %v673 = vrot.slane %v412, 1
      %v674 = vsel %vm644, %v672, %v673
      %v675 = vrot.slane %v365, 1
      %v676 = vrot.slane %v413, 1
      %v677 = vsel %vm644, %v675, %v676
      %v678 = vrot.slane %v366, 1
      %v679 = vrot.slane %v414, 1
      %v680 = vsel %vm644, %v678, %v679
      %v681 = vrot.slane %v367, 1
      %v682 = vrot.slane %v415, 1
      %v683 = vsel %vm644, %v681, %v682
      %v684 = vrot.slane %v368, 1
      %v685 = vrot.slane %v416, 1
      %v686 = vsel %vm644, %v684, %v685
      %v687 = vrot.slane %v369, 1
      %v688 = vrot.slane %v417, 1
      %v689 = vsel %vm644, %v687, %v688
      %v690 = vrot.slane %v370, 1
      %v691 = vrot.slane %v418, 1
      %v692 = vsel %vm644, %v690, %v691
      %693 = vrot.lane.b32.xlu0 %v647, 8
      %v694 = vpop.permute.xlu0 %693
      %695 = vrot.lane.b32.xlu0 %v650, 8
      %v696 = vpop.permute.xlu0 %695
      %697 = vrot.lane.b32.xlu0 %v653, 8
      %v698 = vpop.permute.xlu0 %697
      %699 = vrot.lane.b32.xlu0 %v656, 8
      %v700 = vpop.permute.xlu0 %699
      %701 = vrot.lane.b32.xlu0 %v659, 8
      %v702 = vpop.permute.xlu0 %701
      %703 = vrot.lane.b32.xlu0 %v662, 8
      %v704 = vpop.permute.xlu0 %703
      %705 = vrot.lane.b32.xlu0 %v665, 8
      %v706 = vpop.permute.xlu0 %705
      %707 = vrot.lane.b32.xlu0 %v668, 8
      %v708 = vpop.permute.xlu0 %707
      %709 = vrot.lane.b32.xlu0 %v671, 8
      %v710 = vpop.permute.xlu0 %709
      %711 = vrot.lane.b32.xlu0 %v674, 8
      %v712 = vpop.permute.xlu0 %711
      %713 = vrot.lane.b32.xlu0 %v677, 8
      %v714 = vpop.permute.xlu0 %713
      %715 = vrot.lane.b32.xlu0 %v680, 8
      %v716 = vpop.permute.xlu0 %715
      %717 = vrot.lane.b32.xlu0 %v683, 8
      %v718 = vpop.permute.xlu0 %717
      %719 = vrot.lane.b32.xlu0 %v686, 8
      %v720 = vpop.permute.xlu0 %719
      %721 = vrot.lane.b32.xlu0 %v689, 8
      %v722 = vpop.permute.xlu0 %721
      %723 = vrot.lane.b32.xlu0 %v692, 8
      %v724 = vpop.permute.xlu0 %723
      %v727 = vunpack.c.l.b16 %v285
      %v728 = vunpack.c.l.b16 %v286
      %v729 = vpack.c.b16 %v728, %v727
      %730 = vrot.lane.b32.xlu0 %v356, 12
      %v731 = vpop.permute.xlu0 %730
      %732 = vrot.lane.b32.xlu0 %v357, 12
      %v733 = vpop.permute.xlu0 %732
      %734 = vrot.lane.b32.xlu0 %v358, 12
      %v735 = vpop.permute.xlu0 %734
      %736 = vrot.lane.b32.xlu0 %v359, 12
      %v737 = vpop.permute.xlu0 %736
      %738 = vrot.lane.b32.xlu0 %v360, 12
      %v739 = vpop.permute.xlu0 %738
      %740 = vrot.lane.b32.xlu0 %v361, 12
      %v741 = vpop.permute.xlu0 %740
      %742 = vrot.lane.b32.xlu0 %v362, 12
      %v743 = vpop.permute.xlu0 %742
      %744 = vrot.lane.b32.xlu0 %v363, 12
      %v745 = vpop.permute.xlu0 %744
      %746 = vrot.lane.b32.xlu0 %v364, 12
      %v747 = vpop.permute.xlu0 %746
      %748 = vrot.lane.b32.xlu0 %v365, 12
      %v749 = vpop.permute.xlu0 %748
      %750 = vrot.lane.b32.xlu0 %v366, 12
      %v751 = vpop.permute.xlu0 %750
      %752 = vrot.lane.b32.xlu0 %v367, 12
      %v753 = vpop.permute.xlu0 %752
      %754 = vrot.lane.b32.xlu0 %v368, 12
      %v755 = vpop.permute.xlu0 %754
      %756 = vrot.lane.b32.xlu0 %v369, 12
      %v757 = vpop.permute.xlu0 %756
      %758 = vrot.lane.b32.xlu0 %v370, 12
      %v759 = vpop.permute.xlu0 %758
      %760 = vrot.lane.b32.xlu0 %v729, 12
      %v761 = vpop.permute.xlu0 %760
      %v763 = vunpack.c.l.b16 %v287
      %v764 = vpack.c.b16 %v763, %v763
      %v766 = vshrl.u32 %v729, 16
      %v768 = vshll.u32 %v729, 16
      %v770 = vrot.slane %v768, 1
      %v771 = vor.u32 %v766, %v770
      %v773 = vshll.u32 %v764, 16
      %v775 = vrot.slane %v773, 1
      %v776 = vsel %vm419, %v771, %v775
      %777 = vrot.lane.b32.xlu0 %v443, 16
      %v778 = vpop.permute.xlu0 %777
      %779 = vrot.lane.b32.xlu0 %v455, 16
      %v780 = vpop.permute.xlu0 %779
      %781 = vrot.lane.b32.xlu0 %v467, 16
      %v782 = vpop.permute.xlu0 %781
      %783 = vrot.lane.b32.xlu0 %v479, 16
      %v784 = vpop.permute.xlu0 %783
      %785 = vrot.lane.b32.xlu0 %v491, 16
      %v786 = vpop.permute.xlu0 %785
      %787 = vrot.lane.b32.xlu0 %v503, 16
      %v788 = vpop.permute.xlu0 %787
      %789 = vrot.lane.b32.xlu0 %v515, 16
      %v790 = vpop.permute.xlu0 %789
      %791 = vrot.lane.b32.xlu0 %v527, 16
      %v792 = vpop.permute.xlu0 %791
      %793 = vrot.lane.b32.xlu0 %v539, 16
      %v794 = vpop.permute.xlu0 %793
      %795 = vrot.lane.b32.xlu0 %v551, 16
      %v796 = vpop.permute.xlu0 %795
      %797 = vrot.lane.b32.xlu0 %v563, 16
      %v798 = vpop.permute.xlu0 %797
      %799 = vrot.lane.b32.xlu0 %v575, 16
      %v800 = vpop.permute.xlu0 %799
      %801 = vrot.lane.b32.xlu0 %v587, 16
      %v802 = vpop.permute.xlu0 %801
      %803 = vrot.lane.b32.xlu0 %v599, 16
      %v804 = vpop.permute.xlu0 %803
      %805 = vrot.lane.b32.xlu0 %v611, 16
      %v806 = vpop.permute.xlu0 %805
      %807 = vrot.lane.b32.xlu0 %v776, 16
      %v808 = vpop.permute.xlu0 %807
      %v809 = vrot.slane %v729, 1
      %v810 = vrot.slane %v764, 1
      %v811 = vsel %vm644, %v809, %v810
      %812 = vrot.lane.b32.xlu0 %v650, 20
      %v813 = vpop.permute.xlu0 %812
      %814 = vrot.lane.b32.xlu0 %v653, 20
      %v815 = vpop.permute.xlu0 %814
      %816 = vrot.lane.b32.xlu0 %v656, 20
      %v817 = vpop.permute.xlu0 %816
      %818 = vrot.lane.b32.xlu0 %v659, 20
      %v819 = vpop.permute.xlu0 %818
      %820 = vrot.lane.b32.xlu0 %v662, 20
      %v821 = vpop.permute.xlu0 %820
      %822 = vrot.lane.b32.xlu0 %v665, 20
      %v823 = vpop.permute.xlu0 %822
      %824 = vrot.lane.b32.xlu0 %v668, 20
      %v825 = vpop.permute.xlu0 %824
      %826 = vrot.lane.b32.xlu0 %v671, 20
      %v827 = vpop.permute.xlu0 %826
      %828 = vrot.lane.b32.xlu0 %v674, 20
      %v829 = vpop.permute.xlu0 %828
      %830 = vrot.lane.b32.xlu0 %v677, 20
      %v831 = vpop.permute.xlu0 %830
      %832 = vrot.lane.b32.xlu0 %v680, 20
      %v833 = vpop.permute.xlu0 %832
      %834 = vrot.lane.b32.xlu0 %v683, 20
      %v835 = vpop.permute.xlu0 %834
      %836 = vrot.lane.b32.xlu0 %v686, 20
      %v837 = vpop.permute.xlu0 %836
      %838 = vrot.lane.b32.xlu0 %v689, 20
      %v839 = vpop.permute.xlu0 %838
      %840 = vrot.lane.b32.xlu0 %v692, 20
      %v841 = vpop.permute.xlu0 %840
      %842 = vrot.lane.b32.xlu0 %v811, 20
      %v843 = vpop.permute.xlu0 %842
      %v846 = vunpack.c.l.b16 %v288
      %v847 = vunpack.c.l.b16 %v289
      %v848 = vpack.c.b16 %v847, %v846
      %849 = vrot.lane.b32.xlu0 %v357, 24
      %v850 = vpop.permute.xlu0 %849
      %851 = vrot.lane.b32.xlu0 %v358, 24
      %v852 = vpop.permute.xlu0 %851
      %853 = vrot.lane.b32.xlu0 %v359, 24
      %v854 = vpop.permute.xlu0 %853
      %855 = vrot.lane.b32.xlu0 %v360, 24
      %v856 = vpop.permute.xlu0 %855
      %857 = vrot.lane.b32.xlu0 %v361, 24
      %v858 = vpop.permute.xlu0 %857
      %859 = vrot.lane.b32.xlu0 %v362, 24
      %v860 = vpop.permute.xlu0 %859
      %861 = vrot.lane.b32.xlu0 %v363, 24
      %v862 = vpop.permute.xlu0 %861
      %863 = vrot.lane.b32.xlu0 %v364, 24
      %v864 = vpop.permute.xlu0 %863
      %865 = vrot.lane.b32.xlu0 %v365, 24
      %v866 = vpop.permute.xlu0 %865
      %867 = vrot.lane.b32.xlu0 %v366, 24
      %v868 = vpop.permute.xlu0 %867
      %869 = vrot.lane.b32.xlu0 %v367, 24
      %v870 = vpop.permute.xlu0 %869
      %871 = vrot.lane.b32.xlu0 %v368, 24
      %v872 = vpop.permute.xlu0 %871
      %873 = vrot.lane.b32.xlu0 %v369, 24
      %v874 = vpop.permute.xlu0 %873
      %875 = vrot.lane.b32.xlu0 %v370, 24
      %v876 = vpop.permute.xlu0 %875
      %877 = vrot.lane.b32.xlu0 %v729, 24
      %v878 = vpop.permute.xlu0 %877
      %879 = vrot.lane.b32.xlu0 %v848, 24
      %v880 = vpop.permute.xlu0 %879
      %v882 = vunpack.c.l.b16 %v290
      %v883 = vpack.c.b16 %v882, %v882
      %v885 = vshrl.u32 %v848, 16
      %v887 = vshll.u32 %v848, 16
      %v889 = vrot.slane %v887, 1
      %v890 = vor.u32 %v885, %v889
      %v892 = vshll.u32 %v883, 16
      %v894 = vrot.slane %v892, 1
      %v895 = vsel %vm419, %v890, %v894
      %896 = vrot.lane.b32.xlu0 %v455, 28
      %v897 = vpop.permute.xlu0 %896
      %898 = vrot.lane.b32.xlu0 %v467, 28
      %v899 = vpop.permute.xlu0 %898
      %900 = vrot.lane.b32.xlu0 %v479, 28
      %v901 = vpop.permute.xlu0 %900
      %902 = vrot.lane.b32.xlu0 %v491, 28
      %v903 = vpop.permute.xlu0 %902
      %904 = vrot.lane.b32.xlu0 %v503, 28
      %v905 = vpop.permute.xlu0 %904
      %906 = vrot.lane.b32.xlu0 %v515, 28
      %v907 = vpop.permute.xlu0 %906
      %908 = vrot.lane.b32.xlu0 %v527, 28
      %v909 = vpop.permute.xlu0 %908
      %910 = vrot.lane.b32.xlu0 %v539, 28
      %v911 = vpop.permute.xlu0 %910
      %912 = vrot.lane.b32.xlu0 %v551, 28
      %v913 = vpop.permute.xlu0 %912
      %914 = vrot.lane.b32.xlu0 %v563, 28
      %v915 = vpop.permute.xlu0 %914
      %916 = vrot.lane.b32.xlu0 %v575, 28
      %v917 = vpop.permute.xlu0 %916
      %918 = vrot.lane.b32.xlu0 %v587, 28
      %v919 = vpop.permute.xlu0 %918
      %920 = vrot.lane.b32.xlu0 %v599, 28
      %v921 = vpop.permute.xlu0 %920
      %922 = vrot.lane.b32.xlu0 %v611, 28
      %v923 = vpop.permute.xlu0 %922
      %924 = vrot.lane.b32.xlu0 %v776, 28
      %v925 = vpop.permute.xlu0 %924
      %926 = vrot.lane.b32.xlu0 %v895, 28
      %v927 = vpop.permute.xlu0 %926
      %v928 = vrot.slane %v848, 1
      %v929 = vrot.slane %v883, 1
      %v930 = vsel %vm644, %v928, %v929
      %931 = vrot.lane.b32.xlu0 %v653, 32
      %v932 = vpop.permute.xlu0 %931
      %933 = vrot.lane.b32.xlu0 %v656, 32
      %v934 = vpop.permute.xlu0 %933
      %935 = vrot.lane.b32.xlu0 %v659, 32
      %v936 = vpop.permute.xlu0 %935
      %937 = vrot.lane.b32.xlu0 %v662, 32
      %v938 = vpop.permute.xlu0 %937
      %939 = vrot.lane.b32.xlu0 %v665, 32
      %v940 = vpop.permute.xlu0 %939
      %941 = vrot.lane.b32.xlu0 %v668, 32
      %v942 = vpop.permute.xlu0 %941
      %943 = vrot.lane.b32.xlu0 %v671, 32
      %v944 = vpop.permute.xlu0 %943
      %945 = vrot.lane.b32.xlu0 %v674, 32
      %v946 = vpop.permute.xlu0 %945
      %947 = vrot.lane.b32.xlu0 %v677, 32
      %v948 = vpop.permute.xlu0 %947
      %949 = vrot.lane.b32.xlu0 %v680, 32
      %v950 = vpop.permute.xlu0 %949
      %951 = vrot.lane.b32.xlu0 %v683, 32
      %v952 = vpop.permute.xlu0 %951
      %953 = vrot.lane.b32.xlu0 %v686, 32
      %v954 = vpop.permute.xlu0 %953
      %955 = vrot.lane.b32.xlu0 %v689, 32
      %v956 = vpop.permute.xlu0 %955
      %957 = vrot.lane.b32.xlu0 %v692, 32
      %v958 = vpop.permute.xlu0 %957
      %959 = vrot.lane.b32.xlu0 %v811, 32
      %v960 = vpop.permute.xlu0 %959
      %961 = vrot.lane.b32.xlu0 %v930, 32
      %v962 = vpop.permute.xlu0 %961
      %vm963 = vcmask 31744
      %v965 = vsel %vm963, %v355, %v613
      %v967 = vsel %vm963, %v356, %v615
      %v969 = vsel %vm963, %v357, %v617
      %v971 = vsel %vm963, %v358, %v619
      %v973 = vsel %vm963, %v359, %v621
      %v975 = vsel %vm963, %v360, %v623
      %v977 = vsel %vm963, %v361, %v625
      %v979 = vsel %vm963, %v362, %v627
      %v981 = vsel %vm963, %v363, %v629
      %v983 = vsel %vm963, %v364, %v631
      %v985 = vsel %vm963, %v365, %v633
      %v987 = vsel %vm963, %v366, %v635
      %v989 = vsel %vm963, %v367, %v637
      %v991 = vsel %vm963, %v368, %v639
      %v993 = vsel %vm963, %v369, %v641
      %v995 = vsel %vm963, %v370, %v643
      %vm996 = vcmask 64512
      %v998 = vsel %vm996, %v965, %v694
      %v1000 = vsel %vm996, %v967, %v696
      %v1002 = vsel %vm996, %v969, %v698
      %v1004 = vsel %vm996, %v971, %v700
      %v1006 = vsel %vm996, %v973, %v702
      %v1008 = vsel %vm996, %v975, %v704
      %v1010 = vsel %vm996, %v977, %v706
      %v1012 = vsel %vm996, %v979, %v708
      %v1014 = vsel %vm996, %v981, %v710
      %v1016 = vsel %vm996, %v983, %v712
      %v1018 = vsel %vm996, %v985, %v714
      %v1020 = vsel %vm996, %v987, %v716
      %v1022 = vsel %vm996, %v989, %v718
      %v1024 = vsel %vm996, %v991, %v720
      %v1026 = vsel %vm996, %v993, %v722
      %v1028 = vsel %vm996, %v995, %v724
      %vm1029 = vcmask 97280
      %v1031 = vsel %vm1029, %v998, %v731
      %v1033 = vsel %vm1029, %v1000, %v733
      %v1035 = vsel %vm1029, %v1002, %v735
      %v1037 = vsel %vm1029, %v1004, %v737
      %v1039 = vsel %vm1029, %v1006, %v739
      %v1041 = vsel %vm1029, %v1008, %v741
      %v1043 = vsel %vm1029, %v1010, %v743
      %v1045 = vsel %vm1029, %v1012, %v745
      %v1047 = vsel %vm1029, %v1014, %v747
      %v1049 = vsel %vm1029, %v1016, %v749
      %v1051 = vsel %vm1029, %v1018, %v751
      %v1053 = vsel %vm1029, %v1020, %v753
      %v1055 = vsel %vm1029, %v1022, %v755
      %v1057 = vsel %vm1029, %v1024, %v757
      %v1059 = vsel %vm1029, %v1026, %v759
      %v1061 = vsel %vm1029, %v1028, %v761
      %vm1062 = vcmask 130048
      %v1064 = vsel %vm1062, %v1031, %v778
      %v1066 = vsel %vm1062, %v1033, %v780
      %v1068 = vsel %vm1062, %v1035, %v782
      %v1070 = vsel %vm1062, %v1037, %v784
      %v1072 = vsel %vm1062, %v1039, %v786
      %v1074 = vsel %vm1062, %v1041, %v788
      %v1076 = vsel %vm1062, %v1043, %v790
      %v1078 = vsel %vm1062, %v1045, %v792
      %v1080 = vsel %vm1062, %v1047, %v794
      %v1082 = vsel %vm1062, %v1049, %v796
      %v1084 = vsel %vm1062, %v1051, %v798
      %v1086 = vsel %vm1062, %v1053, %v800
      %v1088 = vsel %vm1062, %v1055, %v802
      %v1090 = vsel %vm1062, %v1057, %v804
      %v1092 = vsel %vm1062, %v1059, %v806
      %v1094 = vsel %vm1062, %v1061, %v808
      %vm1095 = vcmask 162816
      %v1097 = vsel %vm1095, %v1064, %v813
      %v1099 = vsel %vm1095, %v1066, %v815
      %v1101 = vsel %vm1095, %v1068, %v817
      %v1103 = vsel %vm1095, %v1070, %v819
      %v1105 = vsel %vm1095, %v1072, %v821
      %v1107 = vsel %vm1095, %v1074, %v823
      %v1109 = vsel %vm1095, %v1076, %v825
      %v1111 = vsel %vm1095, %v1078, %v827
      %v1113 = vsel %vm1095, %v1080, %v829
      %v1115 = vsel %vm1095, %v1082, %v831
      %v1117 = vsel %vm1095, %v1084, %v833
      %v1119 = vsel %vm1095, %v1086, %v835
      %v1121 = vsel %vm1095, %v1088, %v837
      %v1123 = vsel %vm1095, %v1090, %v839
      %v1125 = vsel %vm1095, %v1092, %v841
      %v1127 = vsel %vm1095, %v1094, %v843
      %vm1128 = vcmask 195584
      %v1130 = vsel %vm1128, %v1097, %v850
      %v1132 = vsel %vm1128, %v1099, %v852
      %v1134 = vsel %vm1128, %v1101, %v854
      %v1136 = vsel %vm1128, %v1103, %v856
      %v1138 = vsel %vm1128, %v1105, %v858
      %v1140 = vsel %vm1128, %v1107, %v860
      %v1142 = vsel %vm1128, %v1109, %v862
      %v1144 = vsel %vm1128, %v1111, %v864
      %v1146 = vsel %vm1128, %v1113, %v866
      %v1148 = vsel %vm1128, %v1115, %v868
      %v1150 = vsel %vm1128, %v1117, %v870
      %v1152 = vsel %vm1128, %v1119, %v872
      %v1154 = vsel %vm1128, %v1121, %v874
      %v1156 = vsel %vm1128, %v1123, %v876
      %v1158 = vsel %vm1128, %v1125, %v878
      %v1160 = vsel %vm1128, %v1127, %v880
      %vm1161 = vcmask 228352
      %v1163 = vsel %vm1161, %v1130, %v897
      %v1165 = vsel %vm1161, %v1132, %v899
      %v1167 = vsel %vm1161, %v1134, %v901
      %v1169 = vsel %vm1161, %v1136, %v903
      %v1171 = vsel %vm1161, %v1138, %v905
      %v1173 = vsel %vm1161, %v1140, %v907
      %v1175 = vsel %vm1161, %v1142, %v909
      %v1177 = vsel %vm1161, %v1144, %v911
      %v1179 = vsel %vm1161, %v1146, %v913
      %v1181 = vsel %vm1161, %v1148, %v915
      %v1183 = vsel %vm1161, %v1150, %v917
      %v1185 = vsel %vm1161, %v1152, %v919
      %v1187 = vsel %vm1161, %v1154, %v921
      %v1189 = vsel %vm1161, %v1156, %v923
      %v1191 = vsel %vm1161, %v1158, %v925
      %v1193 = vsel %vm1161, %v1160, %v927
      %vm1194 = vcmask 261120
      %v1196 = vsel %vm1194, %v1163, %v932
      %v1198 = vsel %vm1194, %v1165, %v934
      %v1200 = vsel %vm1194, %v1167, %v936
      %v1202 = vsel %vm1194, %v1169, %v938
      %v1204 = vsel %vm1194, %v1171, %v940
      %v1206 = vsel %vm1194, %v1173, %v942
      %v1208 = vsel %vm1194, %v1175, %v944
      %v1210 = vsel %vm1194, %v1177, %v946
      %v1212 = vsel %vm1194, %v1179, %v948
      %v1214 = vsel %vm1194, %v1181, %v950
      %v1216 = vsel %vm1194, %v1183, %v952
      %v1218 = vsel %vm1194, %v1185, %v954
      %v1220 = vsel %vm1194, %v1187, %v956
      %v1222 = vsel %vm1194, %v1189, %v958
      %v1224 = vsel %vm1194, %v1191, %v960
      %v1226 = vsel %vm1194, %v1193, %v962
      %v1227 = vld [vmem:[%s3] sm:$0xf]
      %v1228 = vld [vmem:[%s3 + $0x4] sm:$0xf]
      %v1229 = vld [vmem:[%s3 + $0x8] sm:$0xf]
      %v1230 = vld [vmem:[%s3 + $0xc] sm:$0xf]
      %v1231 = vld [vmem:[%s3 + $0x10] sm:$0x3]
      %v1237 = vunpack.c.l.b16 %v1227
      %v1238 = vunpack.c.l.b16 %v1228
      %v1239 = vunpack.c.l.b16 %v1229
      %v1240 = vunpack.c.l.b16 %v1230
      %v1241 = vunpack.c.l.b16 %v1231
      %v1242 = vpack.c.b16 %v1238, %v1237
      %v1243 = vpack.c.b16 %v1240, %v1239
      %v1244 = vpack.c.b16 %v1241, %v1241
      %vm1247 = vcmask 293888
      %v1248 = vsel %vm1247, %v1196, 0
      %v1250 = vsel %vm1247, %v1198, 0
      %v1252 = vsel %vm1247, %v1200, 0
      %v1254 = vsel %vm1247, %v1202, 0
      %v1256 = vsel %vm1247, %v1204, 0
      %v1258 = vsel %vm1247, %v1206, 0
      %v1260 = vsel %vm1247, %v1208, 0
      %v1262 = vsel %vm1247, %v1210, 0
      %v1264 = vsel %vm1247, %v1212, 0
      %v1266 = vsel %vm1247, %v1214, 0
      %v1268 = vsel %vm1247, %v1216, 0
      %v1270 = vsel %vm1247, %v1218, 0
      %v1272 = vsel %vm1247, %v1220, 0
      %v1274 = vsel %vm1247, %v1222, 0
      %v1276 = vsel %vm1247, %v1224, 0
      %v1278 = vsel %vm1247, %v1226, 0
      %vm1280 = vcmask 1041408
      %v1282 = vsel %vm1280, %v1244, 0
      %1284 = vmatprep.subr.bf16.mxu0 0
      %1285 = vmatpush1.bf16.msra.mxu0 0
      %1286 = vmatprep.subr.bf16.mxu0 0
      %1287 = vmatpush1.bf16.msra.mxu0 0
      %1288 = vmatprep.subr.bf16.mxu0 0
      %1289 = vmatpush1.bf16.msra.mxu0 0
      %1290 = vmatprep.subr.bf16.mxu0 0
      %1291 = vmatpush1.bf16.msra.mxu0 0
      %1292 = vmatprep.subr.bf16.mxu0 0
      %1293 = vmatpush1.bf16.msra.mxu0 0
      %1294 = vmatprep.subr.bf16.mxu0 0
      %1295 = vmatpush1.bf16.msra.mxu0 %v1282
      %1296 = vmatprep.subr.bf16.mxu0 0
      %1297 = vmatpush1.bf16.msra.mxu0 %v1243
      %1298 = vmatprep.subr.bf16.mxu0 0
      %1299 = vmatpush1.bf16.msra.mxu0 %v1242
      %1300 = vmatprep.subr.bf16.mxu0 0
      %1301 = vmatpush2.bf16.msra.mxu0 0
      %1302 = vmatprep.subr.bf16.mxu0 0
      %1303 = vmatpush2.bf16.msra.mxu0 0
      %1304 = vmatprep.subr.bf16.mxu0 0
      %1305 = vmatpush2.bf16.msra.mxu0 0
      %1306 = vmatprep.subr.bf16.mxu0 0
      %1307 = vmatpush2.bf16.msra.mxu0 0
      %1308 = vmatprep.subr.bf16.mxu0 0
      %1309 = vmatpush2.bf16.msra.mxu0 0
      %1310 = vmatprep.subr.bf16.mxu0 0
      %1311 = vmatpush2.bf16.msra.mxu0 0
      %1312 = vmatprep.subr.bf16.mxu0 0
      %1313 = vmatpush2.bf16.msra.mxu0 0
      %1314 = vmatprep.subr.bf16.mxu0 0
      %1315 = vmatpush2.bf16.msra.mxu0 0
      %1316 = vmatprep.mubr.bf16.mxu0 0
      %1317 = vmatmul.mubr.bf16.gmra.mxu0 %v1248
      %v1318 = vpop.f32.mrf.mxu0
      %v1319 = vadd.f32 0.0, %v1318
      %v1320 = vpop.f32.mrf.mxu0
      %v1321 = vpop.f32.mrf.mxu0
      %v1322 = vadd.f32 0.0, %v1321
      %v1323 = vpop.f32.mrf.mxu0
      %1324 = vmatprep.mubr.bf16.mxu0 0
      %1325 = vmatmul.mubr.bf16.gmra.mxu0 %v1250
      %v1326 = vpop.f32.mrf.mxu0
      %v1327 = vadd.f32 0.0, %v1326
      %v1328 = vpop.f32.mrf.mxu0
      %v1329 = vpop.f32.mrf.mxu0
      %v1330 = vadd.f32 0.0, %v1329
      %v1331 = vpop.f32.mrf.mxu0
      %1332 = vmatprep.mubr.bf16.mxu0 0
      %1333 = vmatmul.mubr.bf16.gmra.mxu0 %v1252
      %v1334 = vpop.f32.mrf.mxu0
      %v1335 = vadd.f32 0.0, %v1334
      %v1336 = vpop.f32.mrf.mxu0
      %v1337 = vpop.f32.mrf.mxu0
      %v1338 = vadd.f32 0.0, %v1337
      %v1339 = vpop.f32.mrf.mxu0
      %1340 = vmatprep.mubr.bf16.mxu0 0
      %1341 = vmatmul.mubr.bf16.gmra.mxu0 %v1254
      %v1342 = vpop.f32.mrf.mxu0
      %v1343 = vadd.f32 0.0, %v1342
      %v1344 = vpop.f32.mrf.mxu0
      %v1345 = vpop.f32.mrf.mxu0
      %v1346 = vadd.f32 0.0, %v1345
      %v1347 = vpop.f32.mrf.mxu0
      %1348 = vmatprep.mubr.bf16.mxu0 0
      %1349 = vmatmul.mubr.bf16.gmra.mxu0 %v1256
      %v1350 = vpop.f32.mrf.mxu0
      %v1351 = vadd.f32 0.0, %v1350
      %v1352 = vpop.f32.mrf.mxu0
      %v1353 = vpop.f32.mrf.mxu0
      %v1354 = vadd.f32 0.0, %v1353
      %v1355 = vpop.f32.mrf.mxu0
      %1356 = vmatprep.mubr.bf16.mxu0 0
      %1357 = vmatmul.mubr.bf16.gmra.mxu0 %v1258
      %v1358 = vpop.f32.mrf.mxu0
      %v1359 = vadd.f32 0.0, %v1358
      %v1360 = vpop.f32.mrf.mxu0
      %v1361 = vpop.f32.mrf.mxu0
      %v1362 = vadd.f32 0.0, %v1361
      %v1363 = vpop.f32.mrf.mxu0
      %1364 = vmatprep.mubr.bf16.mxu0 0
      %1365 = vmatmul.mubr.bf16.gmra.mxu0 %v1260
      %v1366 = vpop.f32.mrf.mxu0
      %v1367 = vadd.f32 0.0, %v1366
      %v1368 = vpop.f32.mrf.mxu0
      %v1369 = vpop.f32.mrf.mxu0
      %v1370 = vadd.f32 0.0, %v1369
      %v1371 = vpop.f32.mrf.mxu0
      %1372 = vmatprep.mubr.bf16.mxu0 0
      %1373 = vmatmul.mubr.bf16.gmra.mxu0 %v1262
      %v1374 = vpop.f32.mrf.mxu0
      %v1375 = vadd.f32 0.0, %v1374
      %v1376 = vpop.f32.mrf.mxu0
      %v1377 = vpop.f32.mrf.mxu0
      %v1378 = vadd.f32 0.0, %v1377
      %v1379 = vpop.f32.mrf.mxu0
      %1380 = vmatprep.mubr.bf16.mxu0 0
      %1381 = vmatmul.mubr.bf16.gmra.mxu0 %v1264
      %v1382 = vpop.f32.mrf.mxu0
      %v1383 = vadd.f32 0.0, %v1382
      %v1384 = vpop.f32.mrf.mxu0
      %v1385 = vpop.f32.mrf.mxu0
      %v1386 = vadd.f32 0.0, %v1385
      %v1387 = vpop.f32.mrf.mxu0
      %1388 = vmatprep.mubr.bf16.mxu0 0
      %1389 = vmatmul.mubr.bf16.gmra.mxu0 %v1266
      %v1390 = vpop.f32.mrf.mxu0
      %v1391 = vadd.f32 0.0, %v1390
      %v1392 = vpop.f32.mrf.mxu0
      %v1393 = vpop.f32.mrf.mxu0
      %v1394 = vadd.f32 0.0, %v1393
      %v1395 = vpop.f32.mrf.mxu0
      %1396 = vmatprep.mubr.bf16.mxu0 0
      %1397 = vmatmul.mubr.bf16.gmra.mxu0 %v1268
      %v1398 = vpop.f32.mrf.mxu0
      %v1399 = vadd.f32 0.0, %v1398
      %v1400 = vpop.f32.mrf.mxu0
      %v1401 = vpop.f32.mrf.mxu0
      %v1402 = vadd.f32 0.0, %v1401
      %v1403 = vpop.f32.mrf.mxu0
      %1404 = vmatprep.mubr.bf16.mxu0 0
      %1405 = vmatmul.mubr.bf16.gmra.mxu0 %v1270
      %v1406 = vpop.f32.mrf.mxu0
      %v1407 = vadd.f32 0.0, %v1406
      %v1408 = vpop.f32.mrf.mxu0
      %v1409 = vpop.f32.mrf.mxu0
      %v1410 = vadd.f32 0.0, %v1409
      %v1411 = vpop.f32.mrf.mxu0
      %1412 = vmatprep.mubr.bf16.mxu0 0
      %1413 = vmatmul.mubr.bf16.gmra.mxu0 %v1272
      %v1414 = vpop.f32.mrf.mxu0
      %v1415 = vadd.f32 0.0, %v1414
      %v1416 = vpop.f32.mrf.mxu0
      %v1417 = vpop.f32.mrf.mxu0
      %v1418 = vadd.f32 0.0, %v1417
      %v1419 = vpop.f32.mrf.mxu0
      %1420 = vmatprep.mubr.bf16.mxu0 0
      %1421 = vmatmul.mubr.bf16.gmra.mxu0 %v1274
      %v1422 = vpop.f32.mrf.mxu0
      %v1423 = vadd.f32 0.0, %v1422
      %v1424 = vpop.f32.mrf.mxu0
      %v1425 = vpop.f32.mrf.mxu0
      %v1426 = vadd.f32 0.0, %v1425
      %v1427 = vpop.f32.mrf.mxu0
      %1428 = vmatprep.mubr.bf16.mxu0 0
      %1429 = vmatmul.mubr.bf16.gmra.mxu0 %v1276
      %v1430 = vpop.f32.mrf.mxu0
      %v1431 = vadd.f32 0.0, %v1430
      %v1432 = vpop.f32.mrf.mxu0
      %v1433 = vpop.f32.mrf.mxu0
      %v1434 = vadd.f32 0.0, %v1433
      %v1435 = vpop.f32.mrf.mxu0
      %1436 = vmatprep.mubr.bf16.mxu0 0
      %1437 = vmatmul.mubr.bf16.gmra.mxu0 %v1278
      %v1438 = vpop.f32.mrf.mxu0
      %v1439 = vadd.f32 0.0, %v1438
      %v1440 = vpop.f32.mrf.mxu0
      %v1441 = vpop.f32.mrf.mxu0
      %v1442 = vadd.f32 0.0, %v1441
      %v1443 = vpop.f32.mrf.mxu0
      %1444 = vdwg.mxu0
      %v1445 = vadd.f32 %v1319, %v1322
      %v1446 = vadd.f32 %v1445, %v1327
      %v1447 = vadd.f32 %v1446, %v1330
      %v1448 = vadd.f32 %v1447, %v1335
      %v1449 = vadd.f32 %v1448, %v1338
      %v1450 = vadd.f32 %v1449, %v1343
      %v1451 = vadd.f32 %v1450, %v1346
      %v1452 = vadd.f32 %v1451, %v1351
      %v1453 = vadd.f32 %v1452, %v1354
      %v1454 = vadd.f32 %v1453, %v1359
      %v1455 = vadd.f32 %v1454, %v1362
      %v1456 = vadd.f32 %v1455, %v1367
      %v1457 = vadd.f32 %v1456, %v1370
      %v1458 = vadd.f32 %v1457, %v1375
      %v1459 = vadd.f32 %v1458, %v1378
      %v1460 = vadd.f32 %v1459, %v1383
      %v1461 = vadd.f32 %v1460, %v1386
      %v1462 = vadd.f32 %v1461, %v1391
      %v1463 = vadd.f32 %v1462, %v1394
      %v1464 = vadd.f32 %v1463, %v1399
      %v1465 = vadd.f32 %v1464, %v1402
      %v1466 = vadd.f32 %v1465, %v1407
      %v1467 = vadd.f32 %v1466, %v1410
      %v1468 = vadd.f32 %v1467, %v1415
      %v1469 = vadd.f32 %v1468, %v1418
      %v1470 = vadd.f32 %v1469, %v1423
      %v1471 = vadd.f32 %v1470, %v1426
      %v1472 = vadd.f32 %v1471, %v1431
      %v1473 = vadd.f32 %v1472, %v1434
      %v1474 = vadd.f32 %v1473, %v1439
      %v1475 = vadd.f32 %v1474, %v1442
      %v1476 = vrot.slane %v1475, 4
      %v1477 = vadd.f32 %v1475, %v1476
      %v1478 = vrot.slane %v1477, 2
      %v1479 = vadd.f32 %v1477, %v1478
      %v1480 = vrot.slane %v1479, 1
      %v1481 = vadd.f32 %v1479, %v1480
      %1482 = vst [vmem:[%s235] sm:$0x1] %v1481
      %v1483 = vmul.f32 %v1319, %v1319
      %v1484 = vmul.f32 %v1322, %v1322
      %v1485 = vmul.f32 %v1327, %v1327
      %v1486 = vmul.f32 %v1330, %v1330
      %v1487 = vmul.f32 %v1335, %v1335
      %v1488 = vmul.f32 %v1338, %v1338
      %v1489 = vmul.f32 %v1343, %v1343
      %v1490 = vmul.f32 %v1346, %v1346
      %v1491 = vmul.f32 %v1351, %v1351
      %v1492 = vmul.f32 %v1354, %v1354
      %v1493 = vmul.f32 %v1359, %v1359
      %v1494 = vmul.f32 %v1362, %v1362
      %v1495 = vmul.f32 %v1367, %v1367
      %v1496 = vmul.f32 %v1370, %v1370
      %v1497 = vmul.f32 %v1375, %v1375
      %v1498 = vmul.f32 %v1378, %v1378
      %v1499 = vmul.f32 %v1383, %v1383
      %v1500 = vmul.f32 %v1386, %v1386
      %v1501 = vmul.f32 %v1391, %v1391
      %v1502 = vmul.f32 %v1394, %v1394
      %v1503 = vmul.f32 %v1399, %v1399
      %v1504 = vmul.f32 %v1402, %v1402
      %v1505 = vmul.f32 %v1407, %v1407
      %v1506 = vmul.f32 %v1410, %v1410
      %v1507 = vmul.f32 %v1415, %v1415
      %v1508 = vmul.f32 %v1418, %v1418
      %v1509 = vmul.f32 %v1423, %v1423
      %v1510 = vmul.f32 %v1426, %v1426
      %v1511 = vmul.f32 %v1431, %v1431
      %v1512 = vmul.f32 %v1434, %v1434
      %v1513 = vmul.f32 %v1439, %v1439
      %v1514 = vmul.f32 %v1442, %v1442
      %v1515 = vadd.f32 %v1483, %v1484
      %v1516 = vadd.f32 %v1515, %v1485
      %v1517 = vadd.f32 %v1516, %v1486
      %v1518 = vadd.f32 %v1517, %v1487
      %v1519 = vadd.f32 %v1518, %v1488
      %v1520 = vadd.f32 %v1519, %v1489
      %v1521 = vadd.f32 %v1520, %v1490
      %v1522 = vadd.f32 %v1521, %v1491
      %v1523 = vadd.f32 %v1522, %v1492
      %v1524 = vadd.f32 %v1523, %v1493
      %v1525 = vadd.f32 %v1524, %v1494
      %v1526 = vadd.f32 %v1525, %v1495
      %v1527 = vadd.f32 %v1526, %v1496
      %v1528 = vadd.f32 %v1527, %v1497
      %v1529 = vadd.f32 %v1528, %v1498
      %v1530 = vadd.f32 %v1529, %v1499
      %v1531 = vadd.f32 %v1530, %v1500
      %v1532 = vadd.f32 %v1531, %v1501
      %v1533 = vadd.f32 %v1532, %v1502
      %v1534 = vadd.f32 %v1533, %v1503
      %v1535 = vadd.f32 %v1534, %v1504
      %v1536 = vadd.f32 %v1535, %v1505
      %v1537 = vadd.f32 %v1536, %v1506
      %v1538 = vadd.f32 %v1537, %v1507
      %v1539 = vadd.f32 %v1538, %v1508
      %v1540 = vadd.f32 %v1539, %v1509
      %v1541 = vadd.f32 %v1540, %v1510
      %v1542 = vadd.f32 %v1541, %v1511
      %v1543 = vadd.f32 %v1542, %v1512
      %v1544 = vadd.f32 %v1543, %v1513
      %v1545 = vadd.f32 %v1544, %v1514
      %v1546 = vrot.slane %v1545, 4
      %v1547 = vadd.f32 %v1545, %v1546
      %v1548 = vrot.slane %v1547, 2
      %v1549 = vadd.f32 %v1547, %v1548
      %v1550 = vrot.slane %v1549, 1
      %v1551 = vadd.f32 %v1549, %v1550
      %1552 = vst [vmem:[%s235 + $0x1] sm:$0x1] %v1551
      %1553 = vst [vmem:[%s231] sm:$0xf] 0
      %1554 = vst [vmem:[%s231 + $0x4] sm:$0xf] 0
      %1555 = vst [vmem:[%s231 + $0x8] sm:$0x1] 0
      %1556 = vst [vmem:[%s231 + $0xc] sm:$0xf] 0
      %1557 = vst [vmem:[%s231 + $0x10] sm:$0xf] 0
      %1558 = vst [vmem:[%s231 + $0x14] sm:$0x1] 0
      %1559 = vst [vmem:[%s231 + $0x18] sm:$0xf] 0
      %1560 = vst [vmem:[%s231 + $0x1c] sm:$0xf] 0
      %1561 = vst [vmem:[%s231 + $0x20] sm:$0x1] 0
      %1562 = vst [vmem:[%s231 + $0x24] sm:$0xf] 0
      %1563 = vst [vmem:[%s231 + $0x28] sm:$0xf] 0
      %1564 = vst [vmem:[%s231 + $0x2c] sm:$0x1] 0
      %1565 = vst [vmem:[%s231 + $0x30] sm:$0xf] 0
      %1566 = vst [vmem:[%s231 + $0x34] sm:$0xf] 0
      %1567 = vst [vmem:[%s231 + $0x38] sm:$0x1] 0
      %1568 = vst [vmem:[%s231 + $0x3c] sm:$0xf] 0
      %1569 = vst [vmem:[%s231 + $0x40] sm:$0xf] 0
      %1570 = vst [vmem:[%s231 + $0x44] sm:$0x1] 0
      %1571 = vst [vmem:[%s231 + $0x48] sm:$0xf] 0
      %1572 = vst [vmem:[%s231 + $0x4c] sm:$0xf] 0
      %1573 = vst [vmem:[%s231 + $0x50] sm:$0x1] 0
      %1574 = vst [vmem:[%s231 + $0x54] sm:$0xf] 0
      %1575 = vst [vmem:[%s231 + $0x58] sm:$0xf] 0
      %1576 = vst [vmem:[%s231 + $0x5c] sm:$0x1] 0
      %1577 = vst [vmem:[%s231 + $0x60] sm:$0xf] 0
      %1578 = vst [vmem:[%s231 + $0x64] sm:$0xf] 0
      %1579 = vst [vmem:[%s231 + $0x68] sm:$0x1] 0
      %1580 = vst [vmem:[%s231 + $0x6c] sm:$0xf] 0
      %1581 = vst [vmem:[%s231 + $0x70] sm:$0xf] 0
      %1582 = vst [vmem:[%s231 + $0x74] sm:$0x1] 0
      %1583 = vst [vmem:[%s231 + $0x78] sm:$0xf] 0
      %1584 = vst [vmem:[%s231 + $0x7c] sm:$0xf] 0
      %1585 = vst [vmem:[%s231 + $0x80] sm:$0x1] 0
      %1586 = vst [vmem:[%s231 + $0x84] sm:$0xf] 0
      %1587 = vst [vmem:[%s231 + $0x88] sm:$0xf] 0
      %1588 = vst [vmem:[%s231 + $0x8c] sm:$0x1] 0
      %1589 = vst [vmem:[%s231 + $0x90] sm:$0xf] 0
      %1590 = vst [vmem:[%s231 + $0x94] sm:$0xf] 0
      %1591 = vst [vmem:[%s231 + $0x98] sm:$0x1] 0
      %1592 = vst [vmem:[%s231 + $0x9c] sm:$0xf] 0
      %1593 = vst [vmem:[%s231 + $0xa0] sm:$0xf] 0
      %1594 = vst [vmem:[%s231 + $0xa4] sm:$0x1] 0
      %1595 = vst [vmem:[%s231 + $0xa8] sm:$0xf] 0
      %1596 = vst [vmem:[%s231 + $0xac] sm:$0xf] 0
      %1597 = vst [vmem:[%s231 + $0xb0] sm:$0x1] 0
      %1598 = vst [vmem:[%s231 + $0xb4] sm:$0xf] 0
      %1599 = vst [vmem:[%s231 + $0xb8] sm:$0xf] 0
      %1600 = vst [vmem:[%s231 + $0xbc] sm:$0x1] 0
      %1601 = vst [vmem:[%s231 + $0xc0] sm:$0xf] 0
      %1602 = vst [vmem:[%s231 + $0xc4] sm:$0xf] 0
      %1603 = vst [vmem:[%s231 + $0xc8] sm:$0x1] 0
      %1604 = vst [vmem:[%s231 + $0xcc] sm:$0xf] 0
      %1605 = vst [vmem:[%s231 + $0xd0] sm:$0xf] 0
      %1606 = vst [vmem:[%s231 + $0xd4] sm:$0x1] 0
      %v1607 = vpack.c.bf16 %v1322, %v1319
      %v1608 = vpack.c.bf16 %v1330, %v1327
      %v1609 = vpack.c.bf16 %v1338, %v1335
      %v1610 = vpack.c.bf16 %v1346, %v1343
      %v1611 = vpack.c.bf16 %v1354, %v1351
      %v1612 = vpack.c.bf16 %v1362, %v1359
      %v1613 = vpack.c.bf16 %v1370, %v1367
      %v1614 = vpack.c.bf16 %v1378, %v1375
      %v1615 = vpack.c.bf16 %v1386, %v1383
      %v1616 = vpack.c.bf16 %v1394, %v1391
      %v1617 = vpack.c.bf16 %v1402, %v1399
      %v1618 = vpack.c.bf16 %v1410, %v1407
      %v1619 = vpack.c.bf16 %v1418, %v1415
      %v1620 = vpack.c.bf16 %v1426, %v1423
      %v1621 = vpack.c.bf16 %v1434, %v1431
      %v1622 = vpack.c.bf16 %v1442, %v1439
      %v1639 = vunpack.c.l.b16 %v1607
      %v1640 = vunpack.c.h.b16 %v1607
      %v1641 = vunpack.c.l.b16 %v1608
      %v1642 = vunpack.c.h.b16 %v1608
      %v1643 = vunpack.c.l.b16 %v1609
      %v1644 = vunpack.c.h.b16 %v1609
      %v1645 = vunpack.c.l.b16 %v1610
      %v1646 = vunpack.c.h.b16 %v1610
      %v1647 = vunpack.c.l.b16 %v1611
      %v1648 = vunpack.c.h.b16 %v1611
      %v1649 = vunpack.c.l.b16 %v1612
      %v1650 = vunpack.c.h.b16 %v1612
      %v1651 = vunpack.c.l.b16 %v1613
      %v1652 = vunpack.c.h.b16 %v1613
      %v1653 = vunpack.c.l.b16 %v1614
      %v1654 = vunpack.c.h.b16 %v1614
      %v1655 = vunpack.c.l.b16 %v1615
      %v1656 = vunpack.c.h.b16 %v1615
      %v1657 = vunpack.c.l.b16 %v1616
      %v1658 = vunpack.c.h.b16 %v1616
      %v1659 = vunpack.c.l.b16 %v1617
      %v1660 = vunpack.c.h.b16 %v1617
      %v1661 = vunpack.c.l.b16 %v1618
      %v1662 = vunpack.c.h.b16 %v1618
      %v1663 = vunpack.c.l.b16 %v1619
      %v1664 = vunpack.c.h.b16 %v1619
      %v1665 = vunpack.c.l.b16 %v1620
      %v1666 = vunpack.c.h.b16 %v1620
      %v1667 = vunpack.c.l.b16 %v1621
      %v1668 = vunpack.c.h.b16 %v1621
      %v1669 = vunpack.c.l.b16 %v1622
      %v1670 = vunpack.c.h.b16 %v1622
      %v1671 = vpack.c.b16 %v1639, %v1639
      %v1672 = vpack.c.b16 %v1640, %v1640
      %v1673 = vpack.c.b16 %v1641, %v1641
      %v1674 = vpack.c.b16 %v1642, %v1642
      %v1675 = vpack.c.b16 %v1643, %v1643
      %v1676 = vpack.c.b16 %v1644, %v1644
      %v1677 = vpack.c.b16 %v1645, %v1645
      %v1678 = vpack.c.b16 %v1646, %v1646
      %v1679 = vpack.c.b16 %v1647, %v1647
      %v1680 = vpack.c.b16 %v1648, %v1648
      %v1681 = vpack.c.b16 %v1649, %v1649
      %v1682 = vpack.c.b16 %v1650, %v1650
      %v1683 = vpack.c.b16 %v1651, %v1651
      %v1684 = vpack.c.b16 %v1652, %v1652
      %v1685 = vpack.c.b16 %v1653, %v1653
      %v1686 = vpack.c.b16 %v1654, %v1654
      %v1687 = vpack.c.b16 %v1655, %v1655
      %v1688 = vpack.c.b16 %v1656, %v1656
      %v1689 = vpack.c.b16 %v1657, %v1657
      %v1690 = vpack.c.b16 %v1658, %v1658
      %v1691 = vpack.c.b16 %v1659, %v1659
      %v1692 = vpack.c.b16 %v1660, %v1660
      %v1693 = vpack.c.b16 %v1661, %v1661
      %v1694 = vpack.c.b16 %v1662, %v1662
      %v1695 = vpack.c.b16 %v1663, %v1663
      %v1696 = vpack.c.b16 %v1664, %v1664
      %v1697 = vpack.c.b16 %v1665, %v1665
      %v1698 = vpack.c.b16 %v1666, %v1666
      %v1699 = vpack.c.b16 %v1667, %v1667
      %v1700 = vpack.c.b16 %v1668, %v1668
      %v1701 = vpack.c.b16 %v1669, %v1669
      %v1702 = vpack.c.b16 %v1670, %v1670
      %vm1703 = vsmask.f32 256
      %vm1704 = vsmask.f32 4368
      %vm1705 = vmor %vm1703, %vm1704
      %v1707 = vshrl.u32 %v1671, 16
      %v1709 = vrot.slane %v1707, 7
      %v1710 = vshll.u32 %v1671, 16
      %v1712 = vor.u32 %v1709, %v1710
      %v1713 = vrot.slane %v1709, 4
      %v1715 = vshrl.u32 %v1672, 16
      %v1717 = vrot.slane %v1715, 7
      %v1718 = vshll.u32 %v1672, 16
      %v1720 = vor.u32 %v1717, %v1718
      %v1721 = vsel %vm1705, %v1713, %v1720
      %v1722 = vrot.slane %v1717, 4
      %v1724 = vshrl.u32 %v1673, 16
      %v1726 = vrot.slane %v1724, 7
      %v1727 = vshll.u32 %v1673, 16
      %v1729 = vor.u32 %v1726, %v1727
      %v1730 = vrot.slane %v1726, 4
      %v1732 = vshrl.u32 %v1674, 16
      %v1734 = vrot.slane %v1732, 7
      %v1735 = vshll.u32 %v1674, 16
      %v1737 = vor.u32 %v1734, %v1735
      %v1738 = vsel %vm1705, %v1730, %v1737
      %v1739 = vrot.slane %v1734, 4
      %v1741 = vshrl.u32 %v1675, 16
      %v1743 = vrot.slane %v1741, 7
      %v1744 = vshll.u32 %v1675, 16
      %v1746 = vor.u32 %v1743, %v1744
      %v1747 = vrot.slane %v1743, 4
      %v1749 = vshrl.u32 %v1676, 16
      %v1751 = vrot.slane %v1749, 7
      %v1752 = vshll.u32 %v1676, 16
      %v1754 = vor.u32 %v1751, %v1752
      %v1755 = vsel %vm1705, %v1747, %v1754
      %v1756 = vrot.slane %v1751, 4
      %v1758 = vshrl.u32 %v1677, 16
      %v1760 = vrot.slane %v1758, 7
      %v1761 = vshll.u32 %v1677, 16
      %v1763 = vor.u32 %v1760, %v1761
      %v1764 = vrot.slane %v1760, 4
      %v1766 = vshrl.u32 %v1678, 16
      %v1768 = vrot.slane %v1766, 7
      %v1769 = vshll.u32 %v1678, 16
      %v1771 = vor.u32 %v1768, %v1769
      %v1772 = vsel %vm1705, %v1764, %v1771
      %v1773 = vrot.slane %v1768, 4
      %v1775 = vshrl.u32 %v1679, 16
      %v1777 = vrot.slane %v1775, 7
      %v1778 = vshll.u32 %v1679, 16
      %v1780 = vor.u32 %v1777, %v1778
      %v1781 = vrot.slane %v1777, 4
      %v1783 = vshrl.u32 %v1680, 16
      %v1785 = vrot.slane %v1783, 7
      %v1786 = vshll.u32 %v1680, 16
      %v1788 = vor.u32 %v1785, %v1786
      %v1789 = vsel %vm1705, %v1781, %v1788
      %v1790 = vrot.slane %v1785, 4
      %v1792 = vshrl.u32 %v1681, 16
      %v1794 = vrot.slane %v1792, 7
      %v1795 = vshll.u32 %v1681, 16
      %v1797 = vor.u32 %v1794, %v1795
      %v1798 = vrot.slane %v1794, 4
      %v1800 = vshrl.u32 %v1682, 16
      %v1802 = vrot.slane %v1800, 7
      %v1803 = vshll.u32 %v1682, 16
      %v1805 = vor.u32 %v1802, %v1803
      %v1806 = vsel %vm1705, %v1798, %v1805
      %v1807 = vrot.slane %v1802, 4
      %v1809 = vshrl.u32 %v1683, 16
      %v1811 = vrot.slane %v1809, 7
      %v1812 = vshll.u32 %v1683, 16
      %v1814 = vor.u32 %v1811, %v1812
      %v1815 = vrot.slane %v1811, 4
      %v1817 = vshrl.u32 %v1684, 16
      %v1819 = vrot.slane %v1817, 7
      %v1820 = vshll.u32 %v1684, 16
      %v1822 = vor.u32 %v1819, %v1820
      %v1823 = vsel %vm1705, %v1815, %v1822
      %v1824 = vrot.slane %v1819, 4
      %v1826 = vshrl.u32 %v1685, 16
      %v1828 = vrot.slane %v1826, 7
      %v1829 = vshll.u32 %v1685, 16
      %v1831 = vor.u32 %v1828, %v1829
      %v1832 = vrot.slane %v1828, 4
      %v1834 = vshrl.u32 %v1686, 16
      %v1836 = vrot.slane %v1834, 7
      %v1837 = vshll.u32 %v1686, 16
      %v1839 = vor.u32 %v1836, %v1837
      %v1840 = vsel %vm1705, %v1832, %v1839
      %v1841 = vrot.slane %v1836, 4
      %v1843 = vshrl.u32 %v1687, 16
      %v1845 = vrot.slane %v1843, 7
      %v1846 = vshll.u32 %v1687, 16
      %v1848 = vor.u32 %v1845, %v1846
      %v1849 = vrot.slane %v1845, 4
      %v1851 = vshrl.u32 %v1688, 16
      %v1853 = vrot.slane %v1851, 7
      %v1854 = vshll.u32 %v1688, 16
      %v1856 = vor.u32 %v1853, %v1854
      %v1857 = vsel %vm1705, %v1849, %v1856
      %v1858 = vrot.slane %v1853, 4
      %v1860 = vshrl.u32 %v1689, 16
      %v1862 = vrot.slane %v1860, 7
      %v1863 = vshll.u32 %v1689, 16
      %v1865 = vor.u32 %v1862, %v1863
      %v1866 = vrot.slane %v1862, 4
      %v1868 = vshrl.u32 %v1690, 16
      %v1870 = vrot.slane %v1868, 7
      %v1871 = vshll.u32 %v1690, 16
      %v1873 = vor.u32 %v1870, %v1871
      %v1874 = vsel %vm1705, %v1866, %v1873
      %v1875 = vrot.slane %v1870, 4
      %v1877 = vshrl.u32 %v1691, 16
      %v1879 = vrot.slane %v1877, 7
      %v1880 = vshll.u32 %v1691, 16
      %v1882 = vor.u32 %v1879, %v1880
      %v1883 = vrot.slane %v1879, 4
      %v1885 = vshrl.u32 %v1692, 16
      %v1887 = vrot.slane %v1885, 7
      %v1888 = vshll.u32 %v1692, 16
      %v1890 = vor.u32 %v1887, %v1888
      %v1891 = vsel %vm1705, %v1883, %v1890
      %v1892 = vrot.slane %v1887, 4
      %v1894 = vshrl.u32 %v1693, 16
      %v1896 = vrot.slane %v1894, 7
      %v1897 = vshll.u32 %v1693, 16
      %v1899 = vor.u32 %v1896, %v1897
      %v1900 = vrot.slane %v1896, 4
      %v1902 = vshrl.u32 %v1694, 16
      %v1904 = vrot.slane %v1902, 7
      %v1905 = vshll.u32 %v1694, 16
      %v1907 = vor.u32 %v1904, %v1905
      %v1908 = vsel %vm1705, %v1900, %v1907
      %v1909 = vrot.slane %v1904, 4
      %v1911 = vshrl.u32 %v1695, 16
      %v1913 = vrot.slane %v1911, 7
      %v1914 = vshll.u32 %v1695, 16
      %v1916 = vor.u32 %v1913, %v1914
      %v1917 = vrot.slane %v1913, 4
      %v1919 = vshrl.u32 %v1696, 16
      %v1921 = vrot.slane %v1919, 7
      %v1922 = vshll.u32 %v1696, 16
      %v1924 = vor.u32 %v1921, %v1922
      %v1925 = vsel %vm1705, %v1917, %v1924
      %v1926 = vrot.slane %v1921, 4
      %v1928 = vshrl.u32 %v1697, 16
      %v1930 = vrot.slane %v1928, 7
      %v1931 = vshll.u32 %v1697, 16
      %v1933 = vor.u32 %v1930, %v1931
      %v1934 = vrot.slane %v1930, 4
      %v1936 = vshrl.u32 %v1698, 16
      %v1938 = vrot.slane %v1936, 7
      %v1939 = vshll.u32 %v1698, 16
      %v1941 = vor.u32 %v1938, %v1939
      %v1942 = vsel %vm1705, %v1934, %v1941
      %v1943 = vrot.slane %v1938, 4
      %v1945 = vshrl.u32 %v1699, 16
      %v1947 = vrot.slane %v1945, 7
      %v1948 = vshll.u32 %v1699, 16
      %v1950 = vor.u32 %v1947, %v1948
      %v1951 = vrot.slane %v1947, 4
      %v1953 = vshrl.u32 %v1700, 16
      %v1955 = vrot.slane %v1953, 7
      %v1956 = vshll.u32 %v1700, 16
      %v1958 = vor.u32 %v1955, %v1956
      %v1959 = vsel %vm1705, %v1951, %v1958
      %v1960 = vrot.slane %v1955, 4
      %v1962 = vshrl.u32 %v1701, 16
      %v1964 = vrot.slane %v1962, 7
      %v1965 = vshll.u32 %v1701, 16
      %v1967 = vor.u32 %v1964, %v1965
      %v1968 = vrot.slane %v1964, 4
      %v1970 = vshrl.u32 %v1702, 16
      %v1972 = vrot.slane %v1970, 7
      %v1973 = vshll.u32 %v1702, 16
      %v1975 = vor.u32 %v1972, %v1973
      %v1976 = vsel %vm1705, %v1968, %v1975
      %v1977 = vrot.slane %v1972, 4
      %s2026 = scalar_lea.vmem %s231, 12
      %vm2027 = vcmask 1043456
      %vm2028 = vsmask.f32 7938
      %vm2029 = vmand %vm2027, %vm2028
      %v2030 = vld [vmem:[%s2026] sm:$0xf]
      %v2031 = vsel %vm2029, %v1712, %v2030
      %2032 = vst [vmem:[%s2026] sm:$0xf] %v2031
      %2033 = vst [vmem:[%s2026 + $0x4] sm:$0xf] %v1721
      %vm2034 = vcmask 1040384
      %vm2035 = vmand %vm2034, %vm1703
      %v2036 = vld [vmem:[%s2026 + $0x8] sm:$0x1]
      %v2037 = vsel %vm2035, %v1722, %v2036
      %2038 = vst [vmem:[%s2026 + $0x8] sm:$0x1] %v2037
      %v2039 = vld [vmem:[%s2026 + $0xc] sm:$0xf]
      %v2040 = vsel %vm2029, %v1729, %v2039
      %2041 = vst [vmem:[%s2026 + $0xc] sm:$0xf] %v2040
      %2042 = vst [vmem:[%s2026 + $0x10] sm:$0xf] %v1738
      %v2043 = vld [vmem:[%s2026 + $0x14] sm:$0x1]
      %v2044 = vsel %vm2035, %v1739, %v2043
      %2045 = vst [vmem:[%s2026 + $0x14] sm:$0x1] %v2044
      %v2046 = vld [vmem:[%s2026 + $0x18] sm:$0xf]
      %v2047 = vsel %vm2029, %v1746, %v2046
      %2048 = vst [vmem:[%s2026 + $0x18] sm:$0xf] %v2047
      %2049 = vst [vmem:[%s2026 + $0x1c] sm:$0xf] %v1755
      %v2050 = vld [vmem:[%s2026 + $0x20] sm:$0x1]
      %v2051 = vsel %vm2035, %v1756, %v2050
      %2052 = vst [vmem:[%s2026 + $0x20] sm:$0x1] %v2051
      %v2053 = vld [vmem:[%s2026 + $0x24] sm:$0xf]
      %v2054 = vsel %vm2029, %v1763, %v2053
      %2055 = vst [vmem:[%s2026 + $0x24] sm:$0xf] %v2054
      %2056 = vst [vmem:[%s2026 + $0x28] sm:$0xf] %v1772
      %v2057 = vld [vmem:[%s2026 + $0x2c] sm:$0x1]
      %v2058 = vsel %vm2035, %v1773, %v2057
      %2059 = vst [vmem:[%s2026 + $0x2c] sm:$0x1] %v2058
      %v2060 = vld [vmem:[%s2026 + $0x30] sm:$0xf]
      %v2061 = vsel %vm2029, %v1780, %v2060
      %2062 = vst [vmem:[%s2026 + $0x30] sm:$0xf] %v2061
      %2063 = vst [vmem:[%s2026 + $0x34] sm:$0xf] %v1789
      %v2064 = vld [vmem:[%s2026 + $0x38] sm:$0x1]
      %v2065 = vsel %vm2035, %v1790, %v2064
      %2066 = vst [vmem:[%s2026 + $0x38] sm:$0x1] %v2065
      %v2067 = vld [vmem:[%s2026 + $0x3c] sm:$0xf]
      %v2068 = vsel %vm2029, %v1797, %v2067
      %2069 = vst [vmem:[%s2026 + $0x3c] sm:$0xf] %v2068
      %2070 = vst [vmem:[%s2026 + $0x40] sm:$0xf] %v1806
      %v2071 = vld [vmem:[%s2026 + $0x44] sm:$0x1]
      %v2072 = vsel %vm2035, %v1807, %v2071
      %2073 = vst [vmem:[%s2026 + $0x44] sm:$0x1] %v2072
      %v2074 = vld [vmem:[%s2026 + $0x48] sm:$0xf]
      %v2075 = vsel %vm2029, %v1814, %v2074
      %2076 = vst [vmem:[%s2026 + $0x48] sm:$0xf] %v2075
      %2077 = vst [vmem:[%s2026 + $0x4c] sm:$0xf] %v1823
      %v2078 = vld [vmem:[%s2026 + $0x50] sm:$0x1]
      %v2079 = vsel %vm2035, %v1824, %v2078
      %2080 = vst [vmem:[%s2026 + $0x50] sm:$0x1] %v2079
      %v2081 = vld [vmem:[%s2026 + $0x54] sm:$0xf]
      %v2082 = vsel %vm2029, %v1831, %v2081
      %2083 = vst [vmem:[%s2026 + $0x54] sm:$0xf] %v2082
      %2084 = vst [vmem:[%s2026 + $0x58] sm:$0xf] %v1840
      %v2085 = vld [vmem:[%s2026 + $0x5c] sm:$0x1]
      %v2086 = vsel %vm2035, %v1841, %v2085
      %2087 = vst [vmem:[%s2026 + $0x5c] sm:$0x1] %v2086
      %v2088 = vld [vmem:[%s2026 + $0x60] sm:$0xf]
      %v2089 = vsel %vm2029, %v1848, %v2088
      %2090 = vst [vmem:[%s2026 + $0x60] sm:$0xf] %v2089
      %2091 = vst [vmem:[%s2026 + $0x64] sm:$0xf] %v1857
      %v2092 = vld [vmem:[%s2026 + $0x68] sm:$0x1]
      %v2093 = vsel %vm2035, %v1858, %v2092
      %2094 = vst [vmem:[%s2026 + $0x68] sm:$0x1] %v2093
      %v2095 = vld [vmem:[%s2026 + $0x6c] sm:$0xf]
      %v2096 = vsel %vm2029, %v1865, %v2095
      %2097 = vst [vmem:[%s2026 + $0x6c] sm:$0xf] %v2096
      %2098 = vst [vmem:[%s2026 + $0x70] sm:$0xf] %v1874
      %v2099 = vld [vmem:[%s2026 + $0x74] sm:$0x1]
      %v2100 = vsel %vm2035, %v1875, %v2099
      %2101 = vst [vmem:[%s2026 + $0x74] sm:$0x1] %v2100
      %v2102 = vld [vmem:[%s2026 + $0x78] sm:$0xf]
      %v2103 = vsel %vm2029, %v1882, %v2102
      %2104 = vst [vmem:[%s2026 + $0x78] sm:$0xf] %v2103
      %2105 = vst [vmem:[%s2026 + $0x7c] sm:$0xf] %v1891
      %v2106 = vld [vmem:[%s2026 + $0x80] sm:$0x1]
      %v2107 = vsel %vm2035, %v1892, %v2106
      %2108 = vst [vmem:[%s2026 + $0x80] sm:$0x1] %v2107
      %v2109 = vld [vmem:[%s2026 + $0x84] sm:$0xf]
      %v2110 = vsel %vm2029, %v1899, %v2109
      %2111 = vst [vmem:[%s2026 + $0x84] sm:$0xf] %v2110
      %2112 = vst [vmem:[%s2026 + $0x88] sm:$0xf] %v1908
      %v2113 = vld [vmem:[%s2026 + $0x8c] sm:$0x1]
      %v2114 = vsel %vm2035, %v1909, %v2113
      %2115 = vst [vmem:[%s2026 + $0x8c] sm:$0x1] %v2114
      %v2116 = vld [vmem:[%s2026 + $0x90] sm:$0xf]
      %v2117 = vsel %vm2029, %v1916, %v2116
      %2118 = vst [vmem:[%s2026 + $0x90] sm:$0xf] %v2117
      %2119 = vst [vmem:[%s2026 + $0x94] sm:$0xf] %v1925
      %v2120 = vld [vmem:[%s2026 + $0x98] sm:$0x1]
      %v2121 = vsel %vm2035, %v1926, %v2120
      %2122 = vst [vmem:[%s2026 + $0x98] sm:$0x1] %v2121
      %v2123 = vld [vmem:[%s2026 + $0x9c] sm:$0xf]
      %v2124 = vsel %vm2029, %v1933, %v2123
      %2125 = vst [vmem:[%s2026 + $0x9c] sm:$0xf] %v2124
      %2126 = vst [vmem:[%s2026 + $0xa0] sm:$0xf] %v1942
      %v2127 = vld [vmem:[%s2026 + $0xa4] sm:$0x1]
      %v2128 = vsel %vm2035, %v1943, %v2127
      %2129 = vst [vmem:[%s2026 + $0xa4] sm:$0x1] %v2128
      %v2130 = vld [vmem:[%s2026 + $0xa8] sm:$0xf]
      %v2131 = vsel %vm2029, %v1950, %v2130
      %2132 = vst [vmem:[%s2026 + $0xa8] sm:$0xf] %v2131
      %2133 = vst [vmem:[%s2026 + $0xac] sm:$0xf] %v1959
      %v2134 = vld [vmem:[%s2026 + $0xb0] sm:$0x1]
      %v2135 = vsel %vm2035, %v1960, %v2134
      %2136 = vst [vmem:[%s2026 + $0xb0] sm:$0x1] %v2135
      %v2137 = vld [vmem:[%s2026 + $0xb4] sm:$0xf]
      %v2138 = vsel %vm2029, %v1967, %v2137
      %2139 = vst [vmem:[%s2026 + $0xb4] sm:$0xf] %v2138
      %2140 = vst [vmem:[%s2026 + $0xb8] sm:$0xf] %v1976
      %v2141 = vld [vmem:[%s2026 + $0xbc] sm:$0x1]
      %v2142 = vsel %vm2035, %v1977, %v2141
      %2143 = vst [vmem:[%s2026 + $0xbc] sm:$0x1] %v2142
      %p2144 = scmp.lt.s32.totalorder %s17, 1
      %s2145 = scalar_select %p2144, %s17, 1
      %s2146 = smul.addr %s2145, 54
      %s2147 = smul.addr %s2146, 4
      %s2148 = scalar_lea.vmem %s4, %s2147
      %p2149 = scmp.lt.s32.totalorder %s17, 1
      %s2150 = scalar_select %p2149, %s17, 1
      %s2151 = smul.addr %s2150, 2
      %s2152 = scalar_lea.vmem %s5, %s2151
      // Predicated region
      $region37: #{double_conv.3} parent=35 // pred_check
        %p2153 = pneg %p124
      $region38: #{double_conv.3} parent=35 // pred_check_branch
        %2155 = sbr.rel (%p2153) target = $region40
      $region39: #{double_conv.3} parent=35 // pred_region
        _
      $region40: #{double_conv.3} parent=35 // pred_fallthru
        _
      // Predicated region
      $region41: #{double_conv.3} parent=35 // pred_check
        %p2156 = pneg %p150
      $region42: #{double_conv.3} parent=35 // pred_check_branch
        %2158 = sbr.rel (%p2156) target = $region44
      $region43: #{double_conv.3} parent=35 // pred_region
        _
      $region44: #{double_conv.3} parent=35 // pred_fallthru
        _
    $region36: #{double_conv.3} parent=5 // pred_fallthru
      _
    %p2159 = scmp.le.s32.totalorder 2, %s12
    // Predicated region
    $region45: #{double_conv.3} parent=5 // pred_check
      %p2160 = pneg %p2159
    $region46: #{double_conv.3} parent=5 // pred_check_branch
      %2162 = sbr.rel (%p2160) target = $region48
    $region47: #{double_conv.3} parent=5 // pred_region
      %s2163 = ssub.s32 %s12, 2
      // Predicated region
      $region49: #{double_conv.3} parent=47 // pred_check
        %p2164 = pneg %p130
      $region50: #{double_conv.3} parent=47 // pred_check_branch
        %2166 = sbr.rel (%p2164) target = $region52
      $region51: #{double_conv.3} parent=47 // pred_region
        %p2167 = scmp.lt.s32.totalorder %s18, 1
        %s2168 = scalar_select %p2167, %s18, 1
        %s2169 = smul.addr %s2168, 54
        %s2170 = smul.addr %s2169, 4
        %s2171 = scalar_lea.vmem %s4, %s2170
      $region52: #{double_conv.3} parent=47 // pred_fallthru
        _
      // Predicated region
      $region53: #{double_conv.3} parent=47 // pred_check
        %p2172 = pneg %p156
      $region54: #{double_conv.3} parent=47 // pred_check_branch
        %2174 = sbr.rel (%p2172) target = $region56
      $region55: #{double_conv.3} parent=47 // pred_region
        %p2175 = scmp.lt.s32.totalorder %s18, 1
        %s2176 = scalar_select %p2175, %s18, 1
        %s2177 = smul.addr %s2176, 2
        %s2178 = scalar_lea.vmem %s5, %s2177
      $region56: #{double_conv.3} parent=47 // pred_fallthru
        _
    $region48: #{double_conv.3} parent=5 // pred_fallthru
      _
  $region6: #{double_conv.3} parent=0 // loop_footer
    %s16 = sadd.s32 1, %s12
  $region7: #{double_conv.3} parent=0 // loop_footer_branch
    %11 = sbr.rel target = $region3
  $region8: #{double_conv.3} parent=0 // loop_exit
    _

// kernel: double_conv.4
$region0: #{double_conv.4}
  #allocation0 [shape = 'u32[]', space=smem, size = 0x4, offset = 0x4, fixed_abs, tag = 'smem constant byte address 0x4 - core index']
  #allocation1 [shape = 'u32[144,128]{1,0:T(1,128)}', space=vmem, size = 0x12000, scoped, tag = 'internal scratch']
  %s0 = inlined_call_operand.vmem [shape: bf16[2,18,18,128], index: 0, kind: input, shape index: {}]
  %s1 = inlined_call_operand.vmem [shape: f32[1,128], index: 1, kind: input, shape index: {}]
  %s2 = inlined_call_operand.vmem [shape: f32[1,128], index: 2, kind: input, shape index: {}]
  %s3 = inlined_call_operand.vmem [shape: bf16[1152,128], index: 3, kind: input, shape index: {}]
  %s4 = inlined_call_operand.vmem [shape: bf16[2,18,18,128], index: 4, kind: output, shape index: {0}]
  %s5 = inlined_call_operand.vmem [shape: f32[2,2,128], index: 5, kind: output, shape index: {1}]
  %6 = xla_tuple %s4, %s5
  %s7 = sld [smem:[#allocation0]]
  $region57: #{double_conv.4} parent=0
    _
  %s9 = ssub.s32 1, %s7
  %s10 = scalar_select 0, %s9, %s7
  loop: start=0, step=1, limit=4
  $region2: #{double_conv.4} parent=0 // loop_pre_header
    _
  $region3: #{double_conv.4} parent=0 // loop_header
    %s12 = sphi 0, %s16
    %p13 = scmp.ge.s32.totalorder %s12, 4
    %s22 = sphi 0, %s24
    %s25 = sphi 0, %s22
    %s26 = sphi 0, %s25
    %s42 = sphi 0, %s26
    %s46 = sphi 0, %s46
    %s48 = sphi 0, %s46
    %s49 = sphi 0, %s48
    %s63 = sphi 0, %s49
    %s67 = sphi 0, %s67
    %s69 = sphi 0, %s67
    %s70 = sphi 0, %s69
    %s84 = sphi 0, %s70
    %s88 = sphi 0, %s88
    %s90 = sphi 0, %s88
    %s91 = sphi 0, %s90
    %s105 = sphi 0, %s91
    %s111 = sphi 0, %s113
    %s114 = sphi 0, %s111
    %s115 = sphi 0, %s114
    %s131 = sphi 0, %s115
    %s137 = sphi 0, %s139
    %s140 = sphi 0, %s137
    %s141 = sphi 0, %s140
    %s157 = sphi 0, %s141
  $region4: #{double_conv.4} parent=0 // loop_header_branch
    %15 = sbr.rel (%p13) target = $region8
  $region5: #{double_conv.4} parent=0 // loop_body
    %s17 = ssub.s32 %s12, 1
    %s18 = ssub.s32 %s12, 2
    %s19 = sadd.s32 %s12, 1
    %s20 = ssub.s32 %s12, %s19
    %p21 = scmp.eq.s32.totalorder %s20, 0
    %s23 = sadd.s32 %s22, 1
    %s24 = scalar_select %p21, %s22, %s23
    %p27 = pneg %p21
    %p28 = scmp.eq.s32.totalorder %s12, 1
    %p29 = por %p27, %p28
    %p30 = scmp.ne.s32.totalorder %s22, %s25
    %p31 = scmp.eq.s32.totalorder %s12, 0
    %p32 = por %p30, %p31
    %p33 = scmp.ne.s32.totalorder %s22, %s25
    %p34 = scmp.eq.s32.totalorder %s17, 1
    %p35 = por %p33, %p34
    %p36 = scmp.ne.s32.totalorder %s25, %s26
    %p37 = scmp.eq.s32.totalorder %s17, 0
    %p38 = por %p36, %p37
    %p39 = scmp.ne.s32.totalorder %s25, %s26
    %p40 = scmp.eq.s32.totalorder %s18, 1
    %p41 = por %p39, %p40
    %p43 = scmp.ne.s32.totalorder %s26, %s42
    %p44 = scmp.eq.s32.totalorder %s18, 0
    %p45 = por %p43, %p44
    %s47 = sadd.s32 %s46, 1
    %p50 = scmp.eq.s32.totalorder %s12, 1
    %p51 = scmp.ne.s32.totalorder %s46, %s48
    %p52 = scmp.eq.s32.totalorder %s12, 0
    %p53 = por %p51, %p52
    %p54 = scmp.ne.s32.totalorder %s46, %s48
    %p55 = scmp.eq.s32.totalorder %s17, 1
    %p56 = por %p54, %p55
    %p57 = scmp.ne.s32.totalorder %s48, %s49
    %p58 = scmp.eq.s32.totalorder %s17, 0
    %p59 = por %p57, %p58
    %p60 = scmp.ne.s32.totalorder %s48, %s49
    %p61 = scmp.eq.s32.totalorder %s18, 1
    %p62 = por %p60, %p61
    %p64 = scmp.ne.s32.totalorder %s49, %s63
    %p65 = scmp.eq.s32.totalorder %s18, 0
    %p66 = por %p64, %p65
    %s68 = sadd.s32 %s67, 1
    %p71 = scmp.eq.s32.totalorder %s12, 1
    %p72 = scmp.ne.s32.totalorder %s67, %s69
    %p73 = scmp.eq.s32.totalorder %s12, 0
    %p74 = por %p72, %p73
    %p75 = scmp.ne.s32.totalorder %s67, %s69
    %p76 = scmp.eq.s32.totalorder %s17, 1
    %p77 = por %p75, %p76
    %p78 = scmp.ne.s32.totalorder %s69, %s70
    %p79 = scmp.eq.s32.totalorder %s17, 0
    %p80 = por %p78, %p79
    %p81 = scmp.ne.s32.totalorder %s69, %s70
    %p82 = scmp.eq.s32.totalorder %s18, 1
    %p83 = por %p81, %p82
    %p85 = scmp.ne.s32.totalorder %s70, %s84
    %p86 = scmp.eq.s32.totalorder %s18, 0
    %p87 = por %p85, %p86
    %s89 = sadd.s32 %s88, 1
    %p92 = scmp.eq.s32.totalorder %s12, 1
    %p93 = scmp.ne.s32.totalorder %s88, %s90
    %p94 = scmp.eq.s32.totalorder %s12, 0
    %p95 = por %p93, %p94
    %p96 = scmp.ne.s32.totalorder %s88, %s90
    %p97 = scmp.eq.s32.totalorder %s17, 1
    %p98 = por %p96, %p97
    %p99 = scmp.ne.s32.totalorder %s90, %s91
    %p100 = scmp.eq.s32.totalorder %s17, 0
    %p101 = por %p99, %p100
    %p102 = scmp.ne.s32.totalorder %s90, %s91
    %p103 = scmp.eq.s32.totalorder %s18, 1
    %p104 = por %p102, %p103
    %p106 = scmp.ne.s32.totalorder %s91, %s105
    %p107 = scmp.eq.s32.totalorder %s18, 0
    %p108 = por %p106, %p107
    %s109 = ssub.s32 %s12, %s19
    %p110 = scmp.eq.s32.totalorder %s109, 0
    %s112 = sadd.s32 %s111, 1
    %s113 = scalar_select %p110, %s111, %s112
    %p116 = pneg %p110
    %p117 = scmp.eq.s32.totalorder %s12, 1
    %p118 = por %p116, %p117
    %p119 = scmp.ne.s32.totalorder %s111, %s114
    %p120 = scmp.eq.s32.totalorder %s12, 0
    %p121 = por %p119, %p120
    %p122 = scmp.ne.s32.totalorder %s111, %s114
    %p123 = scmp.eq.s32.totalorder %s17, 1
    %p124 = por %p122, %p123
    %p125 = scmp.ne.s32.totalorder %s114, %s115
    %p126 = scmp.eq.s32.totalorder %s17, 0
    %p127 = por %p125, %p126
    %p128 = scmp.ne.s32.totalorder %s114, %s115
    %p129 = scmp.eq.s32.totalorder %s18, 1
    %p130 = por %p128, %p129
    %p132 = scmp.ne.s32.totalorder %s115, %s131
    %p133 = scmp.eq.s32.totalorder %s18, 0
    %p134 = por %p132, %p133
    %s135 = ssub.s32 %s12, %s19
    %p136 = scmp.eq.s32.totalorder %s135, 0
    %s138 = sadd.s32 %s137, 1
    %s139 = scalar_select %p136, %s137, %s138
    %p142 = pneg %p136
    %p143 = scmp.eq.s32.totalorder %s12, 1
    %p144 = por %p142, %p143
    %p145 = scmp.ne.s32.totalorder %s137, %s140
    %p146 = scmp.eq.s32.totalorder %s12, 0
    %p147 = por %p145, %p146
    %p148 = scmp.ne.s32.totalorder %s137, %s140
    %p149 = scmp.eq.s32.totalorder %s17, 1
    %p150 = por %p148, %p149
    %p151 = scmp.ne.s32.totalorder %s140, %s141
    %p152 = scmp.eq.s32.totalorder %s17, 0
    %p153 = por %p151, %p152
    %p154 = scmp.ne.s32.totalorder %s140, %s141
    %p155 = scmp.eq.s32.totalorder %s18, 1
    %p156 = por %p154, %p155
    %p158 = scmp.ne.s32.totalorder %s141, %s157
    %p159 = scmp.eq.s32.totalorder %s18, 0
    %p160 = por %p158, %p159
    %p161 = scmp.le.s32.totalorder 1, %s12
    %p162 = scmp.lt.s32.totalorder %s12, 3
    %p163 = pnand %p161, %p162
    %p164 = pneg %p163
    // Predicated region
    $region9: #{double_conv.4} parent=5 // pred_check
      _
    $region10: #{double_conv.4} parent=5 // pred_check_branch
      %166 = sbr.rel (%p163) target = $region12
    $region11: #{double_conv.4} parent=5 // pred_region
      %s167 = ssub.s32 %s12, 1
      // Predicated region
      $region13: #{double_conv.4} parent=11 // pred_check
        %p168 = pneg %p59
      $region14: #{double_conv.4} parent=11 // pred_check_branch
        %170 = sbr.rel (%p168) target = $region16
      $region15: #{double_conv.4} parent=11 // pred_region
        _
      $region16: #{double_conv.4} parent=11 // pred_fallthru
        _
      // Predicated region
      $region17: #{double_conv.4} parent=11 // pred_check
        %p171 = pneg %p80
      $region18: #{double_conv.4} parent=11 // pred_check_branch
        %173 = sbr.rel (%p171) target = $region20
      $region19: #{double_conv.4} parent=11 // pred_region
        _
      $region20: #{double_conv.4} parent=11 // pred_fallthru
        _
      // Predicated region
      $region21: #{double_conv.4} parent=11 // pred_check
        %p174 = pneg %p101
      $region22: #{double_conv.4} parent=11 // pred_check_branch
        %176 = sbr.rel (%p174) target = $region24
      $region23: #{double_conv.4} parent=11 // pred_region
        _
      $region24: #{double_conv.4} parent=11 // pred_fallthru
        _
    $region12: #{double_conv.4} parent=5 // pred_fallthru
      _
    %p177 = scmp.lt.s32.totalorder %s12, 2
    // Predicated region
    $region25: #{double_conv.4} parent=5 // pred_check
      %p178 = pneg %p177
    $region26: #{double_conv.4} parent=5 // pred_check_branch
      %180 = sbr.rel (%p178) target = $region28
    $region27: #{double_conv.4} parent=5 // pred_region
      // Predicated region
      $region29: #{double_conv.4} parent=27 // pred_check
        %p181 = pneg %p32
      $region30: #{double_conv.4} parent=27 // pred_check_branch
        %183 = sbr.rel (%p181) target = $region32
      $region31: #{double_conv.4} parent=27 // pred_region
        %p184 = scmp.lt.s32.totalorder %s12, 1
        %s185 = scalar_select %p184, %s12, 1
        %s186 = smul.addr %s185, 54
        %s187 = smul.addr %s186, 4
        %s188 = scalar_lea.vmem %s0, %s187
      $region32: #{double_conv.4} parent=27 // pred_fallthru
        _
    $region28: #{double_conv.4} parent=5 // pred_fallthru
      _
    %p189 = scmp.le.s32.totalorder 1, %s12
    %p190 = scmp.lt.s32.totalorder %s12, 3
    %p191 = pnand %p189, %p190
    %p192 = pneg %p191
    // Predicated region
    $region33: #{double_conv.4} parent=5 // pred_check
      _
    $region34: #{double_conv.4} parent=5 // pred_check_branch
      %194 = sbr.rel (%p191) target = $region36
    $region35: #{double_conv.4} parent=5 // pred_region
      %s195 = ssub.s32 %s12, 1
      %p196 = scmp.lt.s32.totalorder %s17, 1
      %s197 = scalar_select %p196, %s17, 1
      %s198 = smul.addr %s197, 54
      %s199 = smul.addr %s198, 4
      %s200 = scalar_lea.vmem %s0, %s199
      %p201 = pneg %p38
      %p202 = pneg %p35
      %p203 = pneg %p59
      %p204 = pneg %p56
      %p205 = pneg %p80
      %p206 = pneg %p77
      %p207 = pneg %p101
      %p208 = pneg %p98
      %p209 = pneg %p127
      %p210 = pneg %p124
      %p211 = scmp.lt.s32.totalorder %s17, 1
      %s212 = scalar_select %p211, %s17, 1
      %s213 = smul.addr %s212, 54
      %s214 = smul.addr %s213, 4
      %s215 = scalar_lea.vmem %s4, %s214
      %p216 = pneg %p153
      %p217 = pneg %p150
      %p218 = scmp.lt.s32.totalorder %s17, 1
      %s219 = scalar_select %p218, %s17, 1
      %s220 = smul.addr %s219, 2
      %s221 = scalar_lea.vmem %s5, %s220
      %p222 = scmp.lt.s32.totalorder %s17, 1
      %s223 = scalar_select %p222, %s17, 1
      %s224 = smul.addr %s223, 54
      %s225 = smul.addr %s224, 4
      %s226 = scalar_lea.vmem %s0, %s225
      %p227 = scmp.lt.s32.totalorder %s17, 1
      %s228 = scalar_select %p227, %s17, 1
      %s229 = smul.addr %s228, 54
      %s230 = smul.addr %s229, 4
      %s231 = scalar_lea.vmem %s4, %s230
      %p232 = scmp.lt.s32.totalorder %s17, 1
      %s233 = scalar_select %p232, %s17, 1
      %s234 = smul.addr %s233, 2
      %s235 = scalar_lea.vmem %s5, %s234
      %v237 = vld [vmem:[%s226] sm:$0xf]
      %v238 = vld [vmem:[%s226 + $0x4] sm:$0xf]
      %v239 = vld [vmem:[%s226 + $0x8] sm:$0x1]
      %v240 = vld [vmem:[%s226 + $0xc] sm:$0xf]
      %v241 = vld [vmem:[%s226 + $0x10] sm:$0xf]
      %v242 = vld [vmem:[%s226 + $0x14] sm:$0x1]
      %v243 = vld [vmem:[%s226 + $0x18] sm:$0xf]
      %v244 = vld [vmem:[%s226 + $0x1c] sm:$0xf]
      %v245 = vld [vmem:[%s226 + $0x20] sm:$0x1]
      %v246 = vld [vmem:[%s226 + $0x24] sm:$0xf]
      %v247 = vld [vmem:[%s226 + $0x28] sm:$0xf]
      %v248 = vld [vmem:[%s226 + $0x2c] sm:$0x1]
      %v249 = vld [vmem:[%s226 + $0x30] sm:$0xf]
      %v250 = vld [vmem:[%s226 + $0x34] sm:$0xf]
      %v251 = vld [vmem:[%s226 + $0x38] sm:$0x1]
      %v252 = vld [vmem:[%s226 + $0x3c] sm:$0xf]
      %v253 = vld [vmem:[%s226 + $0x40] sm:$0xf]
      %v254 = vld [vmem:[%s226 + $0x44] sm:$0x1]
      %v255 = vld [vmem:[%s226 + $0x48] sm:$0xf]
      %v256 = vld [vmem:[%s226 + $0x4c] sm:$0xf]
      %v257 = vld [vmem:[%s226 + $0x50] sm:$0x1]
      %v258 = vld [vmem:[%s226 + $0x54] sm:$0xf]
      %v259 = vld [vmem:[%s226 + $0x58] sm:$0xf]
      %v260 = vld [vmem:[%s226 + $0x5c] sm:$0x1]
      %v261 = vld [vmem:[%s226 + $0x60] sm:$0xf]
      %v262 = vld [vmem:[%s226 + $0x64] sm:$0xf]
      %v263 = vld [vmem:[%s226 + $0x68] sm:$0x1]
      %v264 = vld [vmem:[%s226 + $0x6c] sm:$0xf]
      %v265 = vld [vmem:[%s226 + $0x70] sm:$0xf]
      %v266 = vld [vmem:[%s226 + $0x74] sm:$0x1]
      %v267 = vld [vmem:[%s226 + $0x78] sm:$0xf]
      %v268 = vld [vmem:[%s226 + $0x7c] sm:$0xf]
      %v269 = vld [vmem:[%s226 + $0x80] sm:$0x1]
      %v270 = vld [vmem:[%s226 + $0x84] sm:$0xf]
      %v271 = vld [vmem:[%s226 + $0x88] sm:$0xf]
      %v272 = vld [vmem:[%s226 + $0x8c] sm:$0x1]
      %v273 = vld [vmem:[%s226 + $0x90] sm:$0xf]
      %v274 = vld [vmem:[%s226 + $0x94] sm:$0xf]
      %v275 = vld [vmem:[%s226 + $0x98] sm:$0x1]
      %v276 = vld [vmem:[%s226 + $0x9c] sm:$0xf]
      %v277 = vld [vmem:[%s226 + $0xa0] sm:$0xf]
      %v278 = vld [vmem:[%s226 + $0xa4] sm:$0x1]
      %v279 = vld [vmem:[%s226 + $0xa8] sm:$0xf]
      %v280 = vld [vmem:[%s226 + $0xac] sm:$0xf]
      %v281 = vld [vmem:[%s226 + $0xb0] sm:$0x1]
      %v282 = vld [vmem:[%s226 + $0xb4] sm:$0xf]
      %v283 = vld [vmem:[%s226 + $0xb8] sm:$0xf]
      %v284 = vld [vmem:[%s226 + $0xbc] sm:$0x1]
      %v285 = vld [vmem:[%s226 + $0xc0] sm:$0xf]
      %v286 = vld [vmem:[%s226 + $0xc4] sm:$0xf]
      %v287 = vld [vmem:[%s226 + $0xc8] sm:$0x1]
      %v288 = vld [vmem:[%s226 + $0xcc] sm:$0xf]
      %v289 = vld [vmem:[%s226 + $0xd0] sm:$0xf]
      %v290 = vld [vmem:[%s226 + $0xd4] sm:$0x1]
      %v291 = vunpack.c.l.bf16 %v237
      %v292 = vunpack.c.l.bf16 %v238
      %v293 = vunpack.c.l.bf16 %v239
      %v294 = vunpack.c.l.bf16 %v240
      %v295 = vunpack.c.l.bf16 %v241
      %v296 = vunpack.c.l.bf16 %v242
      %v297 = vunpack.c.l.bf16 %v243
      %v298 = vunpack.c.l.bf16 %v244
      %v299 = vunpack.c.l.bf16 %v245
      %v300 = vunpack.c.l.bf16 %v246
      %v301 = vunpack.c.l.bf16 %v247
      %v302 = vunpack.c.l.bf16 %v248
      %v303 = vunpack.c.l.bf16 %v249
      %v304 = vunpack.c.l.bf16 %v250
      %v305 = vunpack.c.l.bf16 %v251
      %v306 = vunpack.c.l.bf16 %v252
      %v307 = vunpack.c.l.bf16 %v253
      %v308 = vunpack.c.l.bf16 %v254
      %v309 = vunpack.c.l.bf16 %v255
      %v310 = vunpack.c.l.bf16 %v256
      %v311 = vunpack.c.l.bf16 %v257
      %v312 = vunpack.c.l.bf16 %v258
      %v313 = vunpack.c.l.bf16 %v259
      %v314 = vunpack.c.l.bf16 %v260
      %v315 = vunpack.c.l.bf16 %v261
      %v316 = vunpack.c.l.bf16 %v262
      %v317 = vunpack.c.l.bf16 %v263
      %v318 = vunpack.c.l.bf16 %v264
      %v319 = vunpack.c.l.bf16 %v265
      %v320 = vunpack.c.l.bf16 %v266
      %v321 = vunpack.c.l.bf16 %v267
      %v322 = vunpack.c.l.bf16 %v268
      %v323 = vunpack.c.l.bf16 %v269
      %v324 = vunpack.c.l.bf16 %v270
      %v325 = vunpack.c.l.bf16 %v271
      %v326 = vunpack.c.l.bf16 %v272
      %v327 = vunpack.c.l.bf16 %v273
      %v328 = vunpack.c.l.bf16 %v274
      %v329 = vunpack.c.l.bf16 %v275
      %v330 = vunpack.c.l.bf16 %v276
      %v331 = vunpack.c.l.bf16 %v277
      %v332 = vunpack.c.l.bf16 %v278
      %v333 = vunpack.c.l.bf16 %v279
      %v334 = vunpack.c.l.bf16 %v280
      %v335 = vunpack.c.l.bf16 %v281
      %v336 = vunpack.c.l.bf16 %v282
      %v337 = vunpack.c.l.bf16 %v283
      %v338 = vunpack.c.l.bf16 %v284
      %v339 = vunpack.c.l.bf16 %v285
      %v340 = vunpack.c.l.bf16 %v286
      %v341 = vunpack.c.l.bf16 %v287
      %v342 = vunpack.c.l.bf16 %v288
      %v343 = vunpack.c.l.bf16 %v289
      %v344 = vunpack.c.l.bf16 %v290
      %v345 = vld [vmem:[%s1] sm:$0x1]
      %v347 = vlaneseq
      %v348 = vshrl.u32 %v347, 7
      %v349 = vsub.s32 0, %v348
      %v350 = vrot.slane %v345, %v349
      %v352 = vmul.f32 %v291, %v350
      %v353 = vmul.f32 %v292, %v350
      %v354 = vmul.f32 %v293, %v350
      %v355 = vmul.f32 %v294, %v350
      %v356 = vmul.f32 %v295, %v350
      %v357 = vmul.f32 %v296, %v350
      %v358 = vmul.f32 %v297, %v350
      %v359 = vmul.f32 %v298, %v350
      %v360 = vmul.f32 %v299, %v350
      %v361 = vmul.f32 %v300, %v350
      %v362 = vmul.f32 %v301, %v350
      %v363 = vmul.f32 %v302, %v350
      %v364 = vmul.f32 %v303, %v350
      %v365 = vmul.f32 %v304, %v350
      %v366 = vmul.f32 %v305, %v350
      %v367 = vmul.f32 %v306, %v350
      %v368 = vmul.f32 %v307, %v350
      %v369 = vmul.f32 %v308, %v350
      %v370 = vmul.f32 %v309, %v350
      %v371 = vmul.f32 %v310, %v350
      %v372 = vmul.f32 %v311, %v350
      %v373 = vmul.f32 %v312, %v350
      %v374 = vmul.f32 %v313, %v350
      %v375 = vmul.f32 %v314, %v350
      %v376 = vmul.f32 %v315, %v350
      %v377 = vmul.f32 %v316, %v350
      %v378 = vmul.f32 %v317, %v350
      %v379 = vmul.f32 %v318, %v350
      %v380 = vmul.f32 %v319, %v350
      %v381 = vmul.f32 %v320, %v350
      %v382 = vmul.f32 %v321, %v350
      %v383 = vmul.f32 %v322, %v350
      %v384 = vmul.f32 %v323, %v350
      %v385 = vmul.f32 %v324, %v350
      %v386 = vmul.f32 %v325, %v350
      %v387 = vmul.f32 %v326, %v350
      %v388 = vmul.f32 %v327, %v350
      %v389 = vmul.f32 %v328, %v350
      %v390 = vmul.f32 %v329, %v350
      %v391 = vmul.f32 %v330, %v350
      %v392 = vmul.f32 %v331, %v350
      %v393 = vmul.f32 %v332, %v350
      %v394 = vmul.f32 %v333, %v350
      %v395 = vmul.f32 %v334, %v350
      %v396 = vmul.f32 %v335, %v350
      %v397 = vmul.f32 %v336, %v350
      %v398 = vmul.f32 %v337, %v350
      %v399 = vmul.f32 %v338, %v350
      %v400 = vmul.f32 %v339, %v350
      %v401 = vmul.f32 %v340, %v350
      %v402 = vmul.f32 %v341, %v350
      %v403 = vmul.f32 %v342, %v350
      %v404 = vmul.f32 %v343, %v350
      %v405 = vmul.f32 %v344, %v350
      %v406 = vld [vmem:[%s2] sm:$0x1]
      %v408 = vlaneseq
      %v409 = vshrl.u32 %v408, 7
      %v410 = vsub.s32 0, %v409
      %v411 = vrot.slane %v406, %v410
      %v413 = vadd.f32 %v352, %v411
      %v414 = vadd.f32 %v353, %v411
      %v415 = vadd.f32 %v354, %v411
      %v416 = vadd.f32 %v355, %v411
      %v417 = vadd.f32 %v356, %v411
      %v418 = vadd.f32 %v357, %v411
      %v419 = vadd.f32 %v358, %v411
      %v420 = vadd.f32 %v359, %v411
      %v421 = vadd.f32 %v360, %v411
      %v422 = vadd.f32 %v361, %v411
      %v423 = vadd.f32 %v362, %v411
      %v424 = vadd.f32 %v363, %v411
      %v425 = vadd.f32 %v364, %v411
      %v426 = vadd.f32 %v365, %v411
      %v427 = vadd.f32 %v366, %v411
      %v428 = vadd.f32 %v367, %v411
      %v429 = vadd.f32 %v368, %v411
      %v430 = vadd.f32 %v369, %v411
      %v431 = vadd.f32 %v370, %v411
      %v432 = vadd.f32 %v371, %v411
      %v433 = vadd.f32 %v372, %v411
      %v434 = vadd.f32 %v373, %v411
      %v435 = vadd.f32 %v374, %v411
      %v436 = vadd.f32 %v375, %v411
      %v437 = vadd.f32 %v376, %v411
      %v438 = vadd.f32 %v377, %v411
      %v439 = vadd.f32 %v378, %v411
      %v440 = vadd.f32 %v379, %v411
      %v441 = vadd.f32 %v380, %v411
      %v442 = vadd.f32 %v381, %v411
      %v443 = vadd.f32 %v382, %v411
      %v444 = vadd.f32 %v383, %v411
      %v445 = vadd.f32 %v384, %v411
      %v446 = vadd.f32 %v385, %v411
      %v447 = vadd.f32 %v386, %v411
      %v448 = vadd.f32 %v387, %v411
      %v449 = vadd.f32 %v388, %v411
      %v450 = vadd.f32 %v389, %v411
      %v451 = vadd.f32 %v390, %v411
      %v452 = vadd.f32 %v391, %v411
      %v453 = vadd.f32 %v392, %v411
      %v454 = vadd.f32 %v393, %v411
      %v455 = vadd.f32 %v394, %v411
      %v456 = vadd.f32 %v395, %v411
      %v457 = vadd.f32 %v396, %v411
      %v458 = vadd.f32 %v397, %v411
      %v459 = vadd.f32 %v398, %v411
      %v460 = vadd.f32 %v399, %v411
      %v461 = vadd.f32 %v400, %v411
      %v462 = vadd.f32 %v401, %v411
      %v463 = vadd.f32 %v402, %v411
      %v464 = vadd.f32 %v403, %v411
      %v465 = vadd.f32 %v404, %v411
      %v466 = vadd.f32 %v405, %v411
      %v467 = vmax.f32 %v413, 0.0
      %v468 = vmax.f32 %v414, 0.0
      %v469 = vmax.f32 %v415, 0.0
      %v470 = vmax.f32 %v416, 0.0
      %v471 = vmax.f32 %v417, 0.0
      %v472 = vmax.f32 %v418, 0.0
      %v473 = vmax.f32 %v419, 0.0
      %v474 = vmax.f32 %v420, 0.0
      %v475 = vmax.f32 %v421, 0.0
      %v476 = vmax.f32 %v422, 0.0
      %v477 = vmax.f32 %v423, 0.0
      %v478 = vmax.f32 %v424, 0.0
      %v479 = vmax.f32 %v425, 0.0
      %v480 = vmax.f32 %v426, 0.0
      %v481 = vmax.f32 %v427, 0.0
      %v482 = vmax.f32 %v428, 0.0
      %v483 = vmax.f32 %v429, 0.0
      %v484 = vmax.f32 %v430, 0.0
      %v485 = vmax.f32 %v431, 0.0
      %v486 = vmax.f32 %v432, 0.0
      %v487 = vmax.f32 %v433, 0.0
      %v488 = vmax.f32 %v434, 0.0
      %v489 = vmax.f32 %v435, 0.0
      %v490 = vmax.f32 %v436, 0.0
      %v491 = vmax.f32 %v437, 0.0
      %v492 = vmax.f32 %v438, 0.0
      %v493 = vmax.f32 %v439, 0.0
      %v494 = vmax.f32 %v440, 0.0
      %v495 = vmax.f32 %v441, 0.0
      %v496 = vmax.f32 %v442, 0.0
      %v497 = vmax.f32 %v443, 0.0
      %v498 = vmax.f32 %v444, 0.0
      %v499 = vmax.f32 %v445, 0.0
      %v500 = vmax.f32 %v446, 0.0
      %v501 = vmax.f32 %v447, 0.0
      %v502 = vmax.f32 %v448, 0.0
      %v503 = vmax.f32 %v449, 0.0
      %v504 = vmax.f32 %v450, 0.0
      %v505 = vmax.f32 %v451, 0.0
      %v506 = vmax.f32 %v452, 0.0
      %v507 = vmax.f32 %v453, 0.0
      %v508 = vmax.f32 %v454, 0.0
      %v509 = vmax.f32 %v455, 0.0
      %v510 = vmax.f32 %v456, 0.0
      %v511 = vmax.f32 %v457, 0.0
      %v512 = vmax.f32 %v458, 0.0
      %v513 = vmax.f32 %v459, 0.0
      %v514 = vmax.f32 %v460, 0.0
      %v515 = vmax.f32 %v461, 0.0
      %v516 = vmax.f32 %v462, 0.0
      %v517 = vmax.f32 %v463, 0.0
      %v518 = vmax.f32 %v464, 0.0
      %v519 = vmax.f32 %v465, 0.0
      %v520 = vmax.f32 %v466, 0.0
      %v521 = vlaneseq
      %v522 = vshrl.u32 %v521, 7
      %v523 = vadd.s32 %v522, 8
      %v524 = vadd.s32 %v522, 16
      %vm525 = vcmp.ge.s32.totalorder %v522, 1
      %vm526 = vcmp.ge.s32.totalorder %v523, 1
      %vm527 = vcmp.ge.s32.totalorder %v524, 1
      %vm528 = vmand 0, %vm525
      %vm529 = vmand 0, %vm526
      %vm530 = vmand 0, %vm527
      %vm531 = vmand 1, %vm525
      %vm532 = vmand 1, %vm526
      %vm533 = vmand 1, %vm527
      %vm534 = vcmp.le.s32.totalorder %v522, 16
      %vm535 = vcmp.le.s32.totalorder %v523, 16
      %vm536 = vcmp.le.s32.totalorder %v524, 16
      %vm537 = vmand %vm528, %vm534
      %vm538 = vmand %vm529, %vm535
      %vm539 = vmand %vm530, %vm536
      %vm540 = vmand %vm531, %vm534
      %vm541 = vmand %vm532, %vm535
      %vm542 = vmand %vm533, %vm536
      %v543 = vsel %vm537, 1, 0
      %v544 = vsel %vm538, 1, 0
      %v545 = vsel %vm539, 1, 0
      %v546 = vsel %vm540, 1, 0
      %v547 = vsel %vm541, 1, 0
      %v548 = vsel %vm542, 1, 0
      %vm549 = vcmp.eq.s32.totalorder %v543, 1
      %vm550 = vcmp.eq.s32.totalorder %v544, 1
      %vm551 = vcmp.eq.s32.totalorder %v545, 1
      %vm552 = vcmp.eq.s32.totalorder %v546, 1
      %vm553 = vcmp.eq.s32.totalorder %v547, 1
      %vm554 = vcmp.eq.s32.totalorder %v548, 1
      %v555 = vsel %vm549, %v467, 0.0
      %v556 = vsel %vm550, %v468, 0.0
      %v557 = vsel %vm551, %v469, 0.0
      %v558 = vsel %vm552, %v470, 0.0
      %v559 = vsel %vm553, %v471, 0.0
      %v560 = vsel %vm554, %v472, 0.0
      %v561 = vsel %vm552, %v473, 0.0
      %v562 = vsel %vm553, %v474, 0.0
      %v563 = vsel %vm554, %v475, 0.0
      %v564 = vsel %vm552, %v476, 0.0
      %v565 = vsel %vm553, %v477, 0.0
      %v566 = vsel %vm554, %v478, 0.0
      %v567 = vsel %vm552, %v479, 0.0
      %v568 = vsel %vm553, %v480, 0.0
      %v569 = vsel %vm554, %v481, 0.0
      %v570 = vsel %vm552, %v482, 0.0
      %v571 = vsel %vm553, %v483, 0.0
      %v572 = vsel %vm554, %v484, 0.0
      %v573 = vsel %vm552, %v485, 0.0
      %v574 = vsel %vm553, %v486, 0.0
      %v575 = vsel %vm554, %v487, 0.0
      %v576 = vsel %vm552, %v488, 0.0
      %v577 = vsel %vm553, %v489, 0.0
      %v578 = vsel %vm554, %v490, 0.0
      %v579 = vsel %vm552, %v491, 0.0
      %v580 = vsel %vm553, %v492, 0.0
      %v581 = vsel %vm554, %v493, 0.0
      %v582 = vsel %vm552, %v494, 0.0
      %v583 = vsel %vm553, %v495, 0.0
      %v584 = vsel %vm554, %v496, 0.0
      %v585 = vsel %vm552, %v497, 0.0
      %v586 = vsel %vm553, %v498, 0.0
      %v587 = vsel %vm554, %v499, 0.0
      %v588 = vsel %vm552, %v500, 0.0
      %v589 = vsel %vm553, %v501, 0.0
      %v590 = vsel %vm554, %v502, 0.0
      %v591 = vsel %vm552, %v503, 0.0
      %v592 = vsel %vm553, %v504, 0.0
      %v593 = vsel %vm554, %v505, 0.0
      %v594 = vsel %vm552, %v506, 0.0
      %v595 = vsel %vm553, %v507, 0.0
      %v596 = vsel %vm554, %v508, 0.0
      %v597 = vsel %vm552, %v509, 0.0
      %v598 = vsel %vm553, %v510, 0.0
      %v599 = vsel %vm554, %v511, 0.0
      %v600 = vsel %vm552, %v512, 0.0
      %v601 = vsel %vm553, %v513, 0.0
      %v602 = vsel %vm554, %v514, 0.0
      %v603 = vsel %vm552, %v515, 0.0
      %v604 = vsel %vm553, %v516, 0.0
      %v605 = vsel %vm554, %v517, 0.0
      %v606 = vsel %vm549, %v518, 0.0
      %v607 = vsel %vm550, %v519, 0.0
      %v608 = vsel %vm551, %v520, 0.0
      %v609 = vpack.c.bf16 %v556, %v555
      %v610 = vpack.c.bf16 %v557, %v557
      %v611 = vpack.c.bf16 %v559, %v558
      %v612 = vpack.c.bf16 %v560, %v560
      %v613 = vpack.c.bf16 %v562, %v561
      %v614 = vpack.c.bf16 %v563, %v563
      %v615 = vpack.c.bf16 %v565, %v564
      %v616 = vpack.c.bf16 %v566, %v566
      %v617 = vpack.c.bf16 %v568, %v567
      %v618 = vpack.c.bf16 %v569, %v569
      %v619 = vpack.c.bf16 %v571, %v570
      %v620 = vpack.c.bf16 %v572, %v572
      %v621 = vpack.c.bf16 %v574, %v573
      %v622 = vpack.c.bf16 %v575, %v575
      %v623 = vpack.c.bf16 %v577, %v576
      %v624 = vpack.c.bf16 %v578, %v578
      %v625 = vpack.c.bf16 %v580, %v579
      %v626 = vpack.c.bf16 %v581, %v581
      %v627 = vpack.c.bf16 %v583, %v582
      %v628 = vpack.c.bf16 %v584, %v584
      %v629 = vpack.c.bf16 %v586, %v585
      %v630 = vpack.c.bf16 %v587, %v587
      %v631 = vpack.c.bf16 %v589, %v588
      %v632 = vpack.c.bf16 %v590, %v590
      %v633 = vpack.c.bf16 %v592, %v591
      %v634 = vpack.c.bf16 %v593, %v593
      %v635 = vpack.c.bf16 %v595, %v594
      %v636 = vpack.c.bf16 %v596, %v596
      %v637 = vpack.c.bf16 %v598, %v597
      %v638 = vpack.c.bf16 %v599, %v599
      %v639 = vpack.c.bf16 %v601, %v600
      %v640 = vpack.c.bf16 %v602, %v602
      %v641 = vpack.c.bf16 %v604, %v603
      %v642 = vpack.c.bf16 %v605, %v605
      %v643 = vpack.c.bf16 %v607, %v606
      %v644 = vpack.c.bf16 %v608, %v608
      %vm645 = vsmask.f32 7424
      %v647 = vshrl.u32 %v609, 16
      %v649 = vshll.u32 %v609, 16
      %v651 = vrot.slane %v649, 1
      %v652 = vor.u32 %v647, %v651
      %v654 = vshll.u32 %v610, 16
      %v656 = vrot.slane %v654, 1
      %v657 = vsel %vm645, %v652, %v656
      %v659 = vshrl.u32 %v611, 16
      %v661 = vshll.u32 %v611, 16
      %v663 = vrot.slane %v661, 1
      %v664 = vor.u32 %v659, %v663
      %v666 = vshll.u32 %v612, 16
      %v668 = vrot.slane %v666, 1
      %v669 = vsel %vm645, %v664, %v668
      %v671 = vshrl.u32 %v613, 16
      %v673 = vshll.u32 %v613, 16
      %v675 = vrot.slane %v673, 1
      %v676 = vor.u32 %v671, %v675
      %v678 = vshll.u32 %v614, 16
      %v680 = vrot.slane %v678, 1
      %v681 = vsel %vm645, %v676, %v680
      %v683 = vshrl.u32 %v615, 16
      %v685 = vshll.u32 %v615, 16
      %v687 = vrot.slane %v685, 1
      %v688 = vor.u32 %v683, %v687
      %v690 = vshll.u32 %v616, 16
      %v692 = vrot.slane %v690, 1
      %v693 = vsel %vm645, %v688, %v692
      %v695 = vshrl.u32 %v617, 16
      %v697 = vshll.u32 %v617, 16
      %v699 = vrot.slane %v697, 1
      %v700 = vor.u32 %v695, %v699
      %v702 = vshll.u32 %v618, 16
      %v704 = vrot.slane %v702, 1
      %v705 = vsel %vm645, %v700, %v704
      %v707 = vshrl.u32 %v619, 16
      %v709 = vshll.u32 %v619, 16
      %v711 = vrot.slane %v709, 1
      %v712 = vor.u32 %v707, %v711
      %v714 = vshll.u32 %v620, 16
      %v716 = vrot.slane %v714, 1
      %v717 = vsel %vm645, %v712, %v716
      %v719 = vshrl.u32 %v621, 16
      %v721 = vshll.u32 %v621, 16
      %v723 = vrot.slane %v721, 1
      %v724 = vor.u32 %v719, %v723
      %v726 = vshll.u32 %v622, 16
      %v728 = vrot.slane %v726, 1
      %v729 = vsel %vm645, %v724, %v728
      %v731 = vshrl.u32 %v623, 16
      %v733 = vshll.u32 %v623, 16
      %v735 = vrot.slane %v733, 1
      %v736 = vor.u32 %v731, %v735
      %v738 = vshll.u32 %v624, 16
      %v740 = vrot.slane %v738, 1
      %v741 = vsel %vm645, %v736, %v740
      %v743 = vshrl.u32 %v625, 16
      %v745 = vshll.u32 %v625, 16
      %v747 = vrot.slane %v745, 1
      %v748 = vor.u32 %v743, %v747
      %v750 = vshll.u32 %v626, 16
      %v752 = vrot.slane %v750, 1
      %v753 = vsel %vm645, %v748, %v752
      %v755 = vshrl.u32 %v627, 16
      %v757 = vshll.u32 %v627, 16
      %v759 = vrot.slane %v757, 1
      %v760 = vor.u32 %v755, %v759
      %v762 = vshll.u32 %v628, 16
      %v764 = vrot.slane %v762, 1
      %v765 = vsel %vm645, %v760, %v764
      %v767 = vshrl.u32 %v629, 16
      %v769 = vshll.u32 %v629, 16
      %v771 = vrot.slane %v769, 1
      %v772 = vor.u32 %v767, %v771
      %v774 = vshll.u32 %v630, 16
      %v776 = vrot.slane %v774, 1
      %v777 = vsel %vm645, %v772, %v776
      %v779 = vshrl.u32 %v631, 16
      %v781 = vshll.u32 %v631, 16
      %v783 = vrot.slane %v781, 1
      %v784 = vor.u32 %v779, %v783
      %v786 = vshll.u32 %v632, 16
      %v788 = vrot.slane %v786, 1
      %v789 = vsel %vm645, %v784, %v788
      %v791 = vshrl.u32 %v633, 16
      %v793 = vshll.u32 %v633, 16
      %v795 = vrot.slane %v793, 1
      %v796 = vor.u32 %v791, %v795
      %v798 = vshll.u32 %v634, 16
      %v800 = vrot.slane %v798, 1
      %v801 = vsel %vm645, %v796, %v800
      %v803 = vshrl.u32 %v635, 16
      %v805 = vshll.u32 %v635, 16
      %v807 = vrot.slane %v805, 1
      %v808 = vor.u32 %v803, %v807
      %v810 = vshll.u32 %v636, 16
      %v812 = vrot.slane %v810, 1
      %v813 = vsel %vm645, %v808, %v812
      %v815 = vshrl.u32 %v637, 16
      %v817 = vshll.u32 %v637, 16
      %v819 = vrot.slane %v817, 1
      %v820 = vor.u32 %v815, %v819
      %v822 = vshll.u32 %v638, 16
      %v824 = vrot.slane %v822, 1
      %v825 = vsel %vm645, %v820, %v824
      %v827 = vshrl.u32 %v639, 16
      %v829 = vshll.u32 %v639, 16
      %v831 = vrot.slane %v829, 1
      %v832 = vor.u32 %v827, %v831
      %v834 = vshll.u32 %v640, 16
      %v836 = vrot.slane %v834, 1
      %v837 = vsel %vm645, %v832, %v836
      %vm886 = vcmask 1046528
      %v887 = vrot.slane %v609, 1
      %v888 = vrot.slane %v610, 1
      %v889 = vsel %vm886, %v887, %v888
      %v890 = vrot.slane %v611, 1
      %v891 = vrot.slane %v612, 1
      %v892 = vsel %vm886, %v890, %v891
      %v893 = vrot.slane %v613, 1
      %v894 = vrot.slane %v614, 1
      %v895 = vsel %vm886, %v893, %v894
      %v896 = vrot.slane %v615, 1
      %v897 = vrot.slane %v616, 1
      %v898 = vsel %vm886, %v896, %v897
      %v899 = vrot.slane %v617, 1
      %v900 = vrot.slane %v618, 1
      %v901 = vsel %vm886, %v899, %v900
      %v902 = vrot.slane %v619, 1
      %v903 = vrot.slane %v620, 1
      %v904 = vsel %vm886, %v902, %v903
      %v905 = vrot.slane %v621, 1
      %v906 = vrot.slane %v622, 1
      %v907 = vsel %vm886, %v905, %v906
      %v908 = vrot.slane %v623, 1
      %v909 = vrot.slane %v624, 1
      %v910 = vsel %vm886, %v908, %v909
      %v911 = vrot.slane %v625, 1
      %v912 = vrot.slane %v626, 1
      %v913 = vsel %vm886, %v911, %v912
      %v914 = vrot.slane %v627, 1
      %v915 = vrot.slane %v628, 1
      %v916 = vsel %vm886, %v914, %v915
      %v917 = vrot.slane %v629, 1
      %v918 = vrot.slane %v630, 1
      %v919 = vsel %vm886, %v917, %v918
      %v920 = vrot.slane %v631, 1
      %v921 = vrot.slane %v632, 1
      %v922 = vsel %vm886, %v920, %v921
      %v923 = vrot.slane %v633, 1
      %v924 = vrot.slane %v634, 1
      %v925 = vsel %vm886, %v923, %v924
      %v926 = vrot.slane %v635, 1
      %v927 = vrot.slane %v636, 1
      %v928 = vsel %vm886, %v926, %v927
      %v929 = vrot.slane %v637, 1
      %v930 = vrot.slane %v638, 1
      %v931 = vsel %vm886, %v929, %v930
      %v932 = vrot.slane %v639, 1
      %v933 = vrot.slane %v640, 1
      %v934 = vsel %vm886, %v932, %v933
      %v952 = vshrl.u32 %v641, 16
      %v954 = vshll.u32 %v641, 16
      %v956 = vrot.slane %v954, 1
      %v957 = vor.u32 %v952, %v956
      %v959 = vshll.u32 %v642, 16
      %v961 = vrot.slane %v959, 1
      %v962 = vsel %vm645, %v957, %v961
      %v966 = vrot.slane %v641, 1
      %v967 = vrot.slane %v642, 1
      %v968 = vsel %vm886, %v966, %v967
      %v971 = vshrl.u32 %v643, 16
      %v973 = vshll.u32 %v643, 16
      %v975 = vrot.slane %v973, 1
      %v976 = vor.u32 %v971, %v975
      %v978 = vshll.u32 %v644, 16
      %v980 = vrot.slane %v978, 1
      %v981 = vsel %vm645, %v976, %v980
      %v985 = vrot.slane %v643, 1
      %v986 = vrot.slane %v644, 1
      %v987 = vsel %vm886, %v985, %v986
      %v989 = vld [vmem:[%s3] sm:$0xf]
      %v990 = vld [vmem:[%s3 + $0x4] sm:$0xf]
      %v991 = vld [vmem:[%s3 + $0x8] sm:$0xf]
      %v992 = vld [vmem:[%s3 + $0xc] sm:$0xf]
      %v993 = vld [vmem:[%s3 + $0x10] sm:$0xf]
      %v994 = vld [vmem:[%s3 + $0x14] sm:$0xf]
      %v995 = vld [vmem:[%s3 + $0x18] sm:$0xf]
      %v996 = vld [vmem:[%s3 + $0x1c] sm:$0xf]
      %v997 = vld [vmem:[%s3 + $0x20] sm:$0xf]
      %v998 = vld [vmem:[%s3 + $0x24] sm:$0xf]
      %v999 = vld [vmem:[%s3 + $0x28] sm:$0xf]
      %v1000 = vld [vmem:[%s3 + $0x2c] sm:$0xf]
      %v1001 = vld [vmem:[%s3 + $0x30] sm:$0xf]
      %v1002 = vld [vmem:[%s3 + $0x34] sm:$0xf]
      %v1003 = vld [vmem:[%s3 + $0x38] sm:$0xf]
      %v1004 = vld [vmem:[%s3 + $0x3c] sm:$0xf]
      %v1005 = vld [vmem:[%s3 + $0x40] sm:$0xf]
      %v1006 = vld [vmem:[%s3 + $0x44] sm:$0xf]
      %v1007 = vld [vmem:[%s3 + $0x48] sm:$0xf]
      %v1008 = vld [vmem:[%s3 + $0x4c] sm:$0xf]
      %v1009 = vld [vmem:[%s3 + $0x50] sm:$0xf]
      %v1010 = vld [vmem:[%s3 + $0x54] sm:$0xf]
      %v1011 = vld [vmem:[%s3 + $0x58] sm:$0xf]
      %v1012 = vld [vmem:[%s3 + $0x5c] sm:$0xf]
      %v1013 = vld [vmem:[%s3 + $0x60] sm:$0xf]
      %v1014 = vld [vmem:[%s3 + $0x64] sm:$0xf]
      %v1015 = vld [vmem:[%s3 + $0x68] sm:$0xf]
      %v1016 = vld [vmem:[%s3 + $0x6c] sm:$0xf]
      %v1017 = vld [vmem:[%s3 + $0x70] sm:$0xf]
      %v1018 = vld [vmem:[%s3 + $0x74] sm:$0xf]
      %v1019 = vld [vmem:[%s3 + $0x78] sm:$0xf]
      %v1020 = vld [vmem:[%s3 + $0x7c] sm:$0xf]
      %v1021 = vld [vmem:[%s3 + $0x80] sm:$0xf]
      %v1022 = vld [vmem:[%s3 + $0x84] sm:$0xf]
      %v1023 = vld [vmem:[%s3 + $0x88] sm:$0xf]
      %v1024 = vld [vmem:[%s3 + $0x8c] sm:$0xf]
      %v1025 = vld [vmem:[%s3 + $0x90] sm:$0xf]
      %v1026 = vld [vmem:[%s3 + $0x94] sm:$0xf]
      %v1027 = vld [vmem:[%s3 + $0x98] sm:$0xf]
      %v1028 = vld [vmem:[%s3 + $0x9c] sm:$0xf]
      %v1029 = vld [vmem:[%s3 + $0xa0] sm:$0xf]
      %v1030 = vld [vmem:[%s3 + $0xa4] sm:$0xf]
      %v1031 = vld [vmem:[%s3 + $0xa8] sm:$0xf]
      %v1032 = vld [vmem:[%s3 + $0xac] sm:$0xf]
      %v1033 = vld [vmem:[%s3 + $0xb0] sm:$0xf]
      %v1034 = vld [vmem:[%s3 + $0xb4] sm:$0xf]
      %v1035 = vld [vmem:[%s3 + $0xb8] sm:$0xf]
      %v1036 = vld [vmem:[%s3 + $0xbc] sm:$0xf]
      %v1037 = vld [vmem:[%s3 + $0xc0] sm:$0xf]
      %v1038 = vld [vmem:[%s3 + $0xc4] sm:$0xf]
      %v1039 = vld [vmem:[%s3 + $0xc8] sm:$0xf]
      %v1040 = vld [vmem:[%s3 + $0xcc] sm:$0xf]
      %v1041 = vld [vmem:[%s3 + $0xd0] sm:$0xf]
      %v1042 = vld [vmem:[%s3 + $0xd4] sm:$0xf]
      %v1043 = vld [vmem:[%s3 + $0xd8] sm:$0xf]
      %v1044 = vld [vmem:[%s3 + $0xdc] sm:$0xf]
      %v1045 = vld [vmem:[%s3 + $0xe0] sm:$0xf]
      %v1046 = vld [vmem:[%s3 + $0xe4] sm:$0xf]
      %v1047 = vld [vmem:[%s3 + $0xe8] sm:$0xf]
      %v1048 = vld [vmem:[%s3 + $0xec] sm:$0xf]
      %v1049 = vld [vmem:[%s3 + $0xf0] sm:$0xf]
      %v1050 = vld [vmem:[%s3 + $0xf4] sm:$0xf]
      %v1051 = vld [vmem:[%s3 + $0xf8] sm:$0xf]
      %v1052 = vld [vmem:[%s3 + $0xfc] sm:$0xf]
      %v1053 = vld [vmem:[%s3 + $0x100] sm:$0xf]
      %v1054 = vld [vmem:[%s3 + $0x104] sm:$0xf]
      %v1055 = vld [vmem:[%s3 + $0x108] sm:$0xf]
      %v1056 = vld [vmem:[%s3 + $0x10c] sm:$0xf]
      %v1057 = vld [vmem:[%s3 + $0x110] sm:$0xf]
      %v1058 = vld [vmem:[%s3 + $0x114] sm:$0xf]
      %v1059 = vld [vmem:[%s3 + $0x118] sm:$0xf]
      %v1060 = vld [vmem:[%s3 + $0x11c] sm:$0xf]
      %v1061 = vld [vmem:[%s3 + $0x120] sm:$0xf]
      %v1062 = vld [vmem:[%s3 + $0x124] sm:$0xf]
      %v1063 = vld [vmem:[%s3 + $0x128] sm:$0xf]
      %v1064 = vld [vmem:[%s3 + $0x12c] sm:$0xf]
      %v1065 = vld [vmem:[%s3 + $0x130] sm:$0xf]
      %v1066 = vld [vmem:[%s3 + $0x134] sm:$0xf]
      %v1067 = vld [vmem:[%s3 + $0x138] sm:$0xf]
      %v1068 = vld [vmem:[%s3 + $0x13c] sm:$0xf]
      %v1069 = vld [vmem:[%s3 + $0x140] sm:$0xf]
      %v1070 = vld [vmem:[%s3 + $0x144] sm:$0xf]
      %v1071 = vld [vmem:[%s3 + $0x148] sm:$0xf]
      %v1072 = vld [vmem:[%s3 + $0x14c] sm:$0xf]
      %v1073 = vld [vmem:[%s3 + $0x150] sm:$0xf]
      %v1074 = vld [vmem:[%s3 + $0x154] sm:$0xf]
      %v1075 = vld [vmem:[%s3 + $0x158] sm:$0xf]
      %v1076 = vld [vmem:[%s3 + $0x15c] sm:$0xf]
      %v1077 = vld [vmem:[%s3 + $0x160] sm:$0xf]
      %v1078 = vld [vmem:[%s3 + $0x164] sm:$0xf]
      %v1079 = vld [vmem:[%s3 + $0x168] sm:$0xf]
      %v1080 = vld [vmem:[%s3 + $0x16c] sm:$0xf]
      %v1081 = vld [vmem:[%s3 + $0x170] sm:$0xf]
      %v1082 = vld [vmem:[%s3 + $0x174] sm:$0xf]
      %v1083 = vld [vmem:[%s3 + $0x178] sm:$0xf]
      %v1084 = vld [vmem:[%s3 + $0x17c] sm:$0xf]
      %v1085 = vld [vmem:[%s3 + $0x180] sm:$0xf]
      %v1086 = vld [vmem:[%s3 + $0x184] sm:$0xf]
      %v1087 = vld [vmem:[%s3 + $0x188] sm:$0xf]
      %v1088 = vld [vmem:[%s3 + $0x18c] sm:$0xf]
      %v1089 = vld [vmem:[%s3 + $0x190] sm:$0xf]
      %v1090 = vld [vmem:[%s3 + $0x194] sm:$0xf]
      %v1091 = vld [vmem:[%s3 + $0x198] sm:$0xf]
      %v1092 = vld [vmem:[%s3 + $0x19c] sm:$0xf]
      %v1093 = vld [vmem:[%s3 + $0x1a0] sm:$0xf]
      %v1094 = vld [vmem:[%s3 + $0x1a4] sm:$0xf]
      %v1095 = vld [vmem:[%s3 + $0x1a8] sm:$0xf]
      %v1096 = vld [vmem:[%s3 + $0x1ac] sm:$0xf]
      %v1097 = vld [vmem:[%s3 + $0x1b0] sm:$0xf]
      %v1098 = vld [vmem:[%s3 + $0x1b4] sm:$0xf]
      %v1099 = vld [vmem:[%s3 + $0x1b8] sm:$0xf]
      %v1100 = vld [vmem:[%s3 + $0x1bc] sm:$0xf]
      %v1101 = vld [vmem:[%s3 + $0x1c0] sm:$0xf]
      %v1102 = vld [vmem:[%s3 + $0x1c4] sm:$0xf]
      %v1103 = vld [vmem:[%s3 + $0x1c8] sm:$0xf]
      %v1104 = vld [vmem:[%s3 + $0x1cc] sm:$0xf]
      %v1105 = vld [vmem:[%s3 + $0x1d0] sm:$0xf]
      %v1106 = vld [vmem:[%s3 + $0x1d4] sm:$0xf]
      %v1107 = vld [vmem:[%s3 + $0x1d8] sm:$0xf]
      %v1108 = vld [vmem:[%s3 + $0x1dc] sm:$0xf]
      %v1109 = vld [vmem:[%s3 + $0x1e0] sm:$0xf]
      %v1110 = vld [vmem:[%s3 + $0x1e4] sm:$0xf]
      %v1111 = vld [vmem:[%s3 + $0x1e8] sm:$0xf]
      %v1112 = vld [vmem:[%s3 + $0x1ec] sm:$0xf]
      %v1113 = vld [vmem:[%s3 + $0x1f0] sm:$0xf]
      %v1114 = vld [vmem:[%s3 + $0x1f4] sm:$0xf]
      %v1115 = vld [vmem:[%s3 + $0x1f8] sm:$0xf]
      %v1116 = vld [vmem:[%s3 + $0x1fc] sm:$0xf]
      %v1117 = vld [vmem:[%s3 + $0x200] sm:$0xf]
      %v1118 = vld [vmem:[%s3 + $0x204] sm:$0xf]
      %v1119 = vld [vmem:[%s3 + $0x208] sm:$0xf]
      %v1120 = vld [vmem:[%s3 + $0x20c] sm:$0xf]
      %v1121 = vld [vmem:[%s3 + $0x210] sm:$0xf]
      %v1122 = vld [vmem:[%s3 + $0x214] sm:$0xf]
      %v1123 = vld [vmem:[%s3 + $0x218] sm:$0xf]
      %v1124 = vld [vmem:[%s3 + $0x21c] sm:$0xf]
      %v1125 = vld [vmem:[%s3 + $0x220] sm:$0xf]
      %v1126 = vld [vmem:[%s3 + $0x224] sm:$0xf]
      %v1127 = vld [vmem:[%s3 + $0x228] sm:$0xf]
      %v1128 = vld [vmem:[%s3 + $0x22c] sm:$0xf]
      %v1129 = vld [vmem:[%s3 + $0x230] sm:$0xf]
      %v1130 = vld [vmem:[%s3 + $0x234] sm:$0xf]
      %v1131 = vld [vmem:[%s3 + $0x238] sm:$0xf]
      %v1132 = vld [vmem:[%s3 + $0x23c] sm:$0xf]
      %v1277 = vunpack.c.l.b16 %v989
      %v1278 = vunpack.c.l.b16 %v990
      %v1279 = vunpack.c.l.b16 %v991
      %v1280 = vunpack.c.l.b16 %v992
      %v1281 = vunpack.c.l.b16 %v993
      %v1282 = vunpack.c.l.b16 %v994
      %v1283 = vunpack.c.l.b16 %v995
      %v1284 = vunpack.c.l.b16 %v996
      %v1285 = vunpack.c.l.b16 %v997
      %v1286 = vunpack.c.l.b16 %v998
      %v1287 = vunpack.c.l.b16 %v999
      %v1288 = vunpack.c.l.b16 %v1000
      %v1289 = vunpack.c.l.b16 %v1001
      %v1290 = vunpack.c.l.b16 %v1002
      %v1291 = vunpack.c.l.b16 %v1003
      %v1292 = vunpack.c.l.b16 %v1004
      %v1293 = vunpack.c.l.b16 %v1005
      %v1294 = vunpack.c.l.b16 %v1006
      %v1295 = vunpack.c.l.b16 %v1007
      %v1296 = vunpack.c.l.b16 %v1008
      %v1297 = vunpack.c.l.b16 %v1009
      %v1298 = vunpack.c.l.b16 %v1010
      %v1299 = vunpack.c.l.b16 %v1011
      %v1300 = vunpack.c.l.b16 %v1012
      %v1301 = vunpack.c.l.b16 %v1013
      %v1302 = vunpack.c.l.b16 %v1014
      %v1303 = vunpack.c.l.b16 %v1015
      %v1304 = vunpack.c.l.b16 %v1016
      %v1305 = vunpack.c.l.b16 %v1017
      %v1306 = vunpack.c.l.b16 %v1018
      %v1307 = vunpack.c.l.b16 %v1019
      %v1308 = vunpack.c.l.b16 %v1020
      %v1309 = vunpack.c.l.b16 %v1021
      %v1310 = vunpack.c.l.b16 %v1022
      %v1311 = vunpack.c.l.b16 %v1023
      %v1312 = vunpack.c.l.b16 %v1024
      %v1313 = vunpack.c.l.b16 %v1025
      %v1314 = vunpack.c.l.b16 %v1026
      %v1315 = vunpack.c.l.b16 %v1027
      %v1316 = vunpack.c.l.b16 %v1028
      %v1317 = vunpack.c.l.b16 %v1029
      %v1318 = vunpack.c.l.b16 %v1030
      %v1319 = vunpack.c.l.b16 %v1031
      %v1320 = vunpack.c.l.b16 %v1032
      %v1321 = vunpack.c.l.b16 %v1033
      %v1322 = vunpack.c.l.b16 %v1034
      %v1323 = vunpack.c.l.b16 %v1035
      %v1324 = vunpack.c.l.b16 %v1036
      %v1325 = vunpack.c.l.b16 %v1037
      %v1326 = vunpack.c.l.b16 %v1038
      %v1327 = vunpack.c.l.b16 %v1039
      %v1328 = vunpack.c.l.b16 %v1040
      %v1329 = vunpack.c.l.b16 %v1041
      %v1330 = vunpack.c.l.b16 %v1042
      %v1331 = vunpack.c.l.b16 %v1043
      %v1332 = vunpack.c.l.b16 %v1044
      %v1333 = vunpack.c.l.b16 %v1045
      %v1334 = vunpack.c.l.b16 %v1046
      %v1335 = vunpack.c.l.b16 %v1047
      %v1336 = vunpack.c.l.b16 %v1048
      %v1337 = vunpack.c.l.b16 %v1049
      %v1338 = vunpack.c.l.b16 %v1050
      %v1339 = vunpack.c.l.b16 %v1051
      %v1340 = vunpack.c.l.b16 %v1052
      %v1341 = vunpack.c.l.b16 %v1053
      %v1342 = vunpack.c.l.b16 %v1054
      %v1343 = vunpack.c.l.b16 %v1055
      %v1344 = vunpack.c.l.b16 %v1056
      %v1345 = vunpack.c.l.b16 %v1057
      %v1346 = vunpack.c.l.b16 %v1058
      %v1347 = vunpack.c.l.b16 %v1059
      %v1348 = vunpack.c.l.b16 %v1060
      %v1349 = vunpack.c.l.b16 %v1061
      %v1350 = vunpack.c.l.b16 %v1062
      %v1351 = vunpack.c.l.b16 %v1063
      %v1352 = vunpack.c.l.b16 %v1064
      %v1353 = vunpack.c.l.b16 %v1065
      %v1354 = vunpack.c.l.b16 %v1066
      %v1355 = vunpack.c.l.b16 %v1067
      %v1356 = vunpack.c.l.b16 %v1068
      %v1357 = vunpack.c.l.b16 %v1069
      %v1358 = vunpack.c.l.b16 %v1070
      %v1359 = vunpack.c.l.b16 %v1071
      %v1360 = vunpack.c.l.b16 %v1072
      %v1361 = vunpack.c.l.b16 %v1073
      %v1362 = vunpack.c.l.b16 %v1074
      %v1363 = vunpack.c.l.b16 %v1075
      %v1364 = vunpack.c.l.b16 %v1076
      %v1365 = vunpack.c.l.b16 %v1077
      %v1366 = vunpack.c.l.b16 %v1078
      %v1367 = vunpack.c.l.b16 %v1079
      %v1368 = vunpack.c.l.b16 %v1080
      %v1369 = vunpack.c.l.b16 %v1081
      %v1370 = vunpack.c.l.b16 %v1082
      %v1371 = vunpack.c.l.b16 %v1083
      %v1372 = vunpack.c.l.b16 %v1084
      %v1373 = vunpack.c.l.b16 %v1085
      %v1374 = vunpack.c.l.b16 %v1086
      %v1375 = vunpack.c.l.b16 %v1087
      %v1376 = vunpack.c.l.b16 %v1088
      %v1377 = vunpack.c.l.b16 %v1089
      %v1378 = vunpack.c.l.b16 %v1090
      %v1379 = vunpack.c.l.b16 %v1091
      %v1380 = vunpack.c.l.b16 %v1092
      %v1381 = vunpack.c.l.b16 %v1093
      %v1382 = vunpack.c.l.b16 %v1094
      %v1383 = vunpack.c.l.b16 %v1095
      %v1384 = vunpack.c.l.b16 %v1096
      %v1385 = vunpack.c.l.b16 %v1097
      %v1386 = vunpack.c.l.b16 %v1098
      %v1387 = vunpack.c.l.b16 %v1099
      %v1388 = vunpack.c.l.b16 %v1100
      %v1389 = vunpack.c.l.b16 %v1101
      %v1390 = vunpack.c.l.b16 %v1102
      %v1391 = vunpack.c.l.b16 %v1103
      %v1392 = vunpack.c.l.b16 %v1104
      %v1393 = vunpack.c.l.b16 %v1105
      %v1394 = vunpack.c.l.b16 %v1106
      %v1395 = vunpack.c.l.b16 %v1107
      %v1396 = vunpack.c.l.b16 %v1108
      %v1397 = vunpack.c.l.b16 %v1109
      %v1398 = vunpack.c.l.b16 %v1110
      %v1399 = vunpack.c.l.b16 %v1111
      %v1400 = vunpack.c.l.b16 %v1112
      %v1401 = vunpack.c.l.b16 %v1113
      %v1402 = vunpack.c.l.b16 %v1114
      %v1403 = vunpack.c.l.b16 %v1115
      %v1404 = vunpack.c.l.b16 %v1116
      %v1405 = vunpack.c.l.b16 %v1117
      %v1406 = vunpack.c.l.b16 %v1118
      %v1407 = vunpack.c.l.b16 %v1119
      %v1408 = vunpack.c.l.b16 %v1120
      %v1409 = vunpack.c.l.b16 %v1121
      %v1410 = vunpack.c.l.b16 %v1122
      %v1411 = vunpack.c.l.b16 %v1123
      %v1412 = vunpack.c.l.b16 %v1124
      %v1413 = vunpack.c.l.b16 %v1125
      %v1414 = vunpack.c.l.b16 %v1126
      %v1415 = vunpack.c.l.b16 %v1127
      %v1416 = vunpack.c.l.b16 %v1128
      %v1417 = vunpack.c.l.b16 %v1129
      %v1418 = vunpack.c.l.b16 %v1130
      %v1419 = vunpack.c.l.b16 %v1131
      %v1420 = vunpack.c.l.b16 %v1132
      %v1421 = vpack.c.b16 %v1278, %v1277
      %v1422 = vpack.c.b16 %v1280, %v1279
      %v1423 = vpack.c.b16 %v1282, %v1281
      %v1424 = vpack.c.b16 %v1284, %v1283
      %v1425 = vpack.c.b16 %v1286, %v1285
      %v1426 = vpack.c.b16 %v1288, %v1287
      %v1427 = vpack.c.b16 %v1290, %v1289
      %v1428 = vpack.c.b16 %v1292, %v1291
      %v1429 = vpack.c.b16 %v1294, %v1293
      %v1430 = vpack.c.b16 %v1296, %v1295
      %v1431 = vpack.c.b16 %v1298, %v1297
      %v1432 = vpack.c.b16 %v1300, %v1299
      %v1433 = vpack.c.b16 %v1302, %v1301
      %v1434 = vpack.c.b16 %v1304, %v1303
      %v1435 = vpack.c.b16 %v1306, %v1305
      %v1436 = vpack.c.b16 %v1308, %v1307
      %v1437 = vpack.c.b16 %v1310, %v1309
      %v1438 = vpack.c.b16 %v1312, %v1311
      %v1439 = vpack.c.b16 %v1314, %v1313
      %v1440 = vpack.c.b16 %v1316, %v1315
      %v1441 = vpack.c.b16 %v1318, %v1317
      %v1442 = vpack.c.b16 %v1320, %v1319
      %v1443 = vpack.c.b16 %v1322, %v1321
      %v1444 = vpack.c.b16 %v1324, %v1323
      %v1445 = vpack.c.b16 %v1326, %v1325
      %v1446 = vpack.c.b16 %v1328, %v1327
      %v1447 = vpack.c.b16 %v1330, %v1329
      %v1448 = vpack.c.b16 %v1332, %v1331
      %v1449 = vpack.c.b16 %v1334, %v1333
      %v1450 = vpack.c.b16 %v1336, %v1335
      %v1451 = vpack.c.b16 %v1338, %v1337
      %v1452 = vpack.c.b16 %v1340, %v1339
      %v1453 = vpack.c.b16 %v1342, %v1341
      %v1454 = vpack.c.b16 %v1344, %v1343
      %v1455 = vpack.c.b16 %v1346, %v1345
      %v1456 = vpack.c.b16 %v1348, %v1347
      %v1457 = vpack.c.b16 %v1350, %v1349
      %v1458 = vpack.c.b16 %v1352, %v1351
      %v1459 = vpack.c.b16 %v1354, %v1353
      %v1460 = vpack.c.b16 %v1356, %v1355
      %v1461 = vpack.c.b16 %v1358, %v1357
      %v1462 = vpack.c.b16 %v1360, %v1359
      %v1463 = vpack.c.b16 %v1362, %v1361
      %v1464 = vpack.c.b16 %v1364, %v1363
      %v1465 = vpack.c.b16 %v1366, %v1365
      %v1466 = vpack.c.b16 %v1368, %v1367
      %v1467 = vpack.c.b16 %v1370, %v1369
      %v1468 = vpack.c.b16 %v1372, %v1371
      %v1469 = vpack.c.b16 %v1374, %v1373
      %v1470 = vpack.c.b16 %v1376, %v1375
      %v1471 = vpack.c.b16 %v1378, %v1377
      %v1472 = vpack.c.b16 %v1380, %v1379
      %v1473 = vpack.c.b16 %v1382, %v1381
      %v1474 = vpack.c.b16 %v1384, %v1383
      %v1475 = vpack.c.b16 %v1386, %v1385
      %v1476 = vpack.c.b16 %v1388, %v1387
      %v1477 = vpack.c.b16 %v1390, %v1389
      %v1478 = vpack.c.b16 %v1392, %v1391
      %v1479 = vpack.c.b16 %v1394, %v1393
      %v1480 = vpack.c.b16 %v1396, %v1395
      %v1481 = vpack.c.b16 %v1398, %v1397
      %v1482 = vpack.c.b16 %v1400, %v1399
      %v1483 = vpack.c.b16 %v1402, %v1401
      %v1484 = vpack.c.b16 %v1404, %v1403
      %v1485 = vpack.c.b16 %v1406, %v1405
      %v1486 = vpack.c.b16 %v1408, %v1407
      %v1487 = vpack.c.b16 %v1410, %v1409
      %v1488 = vpack.c.b16 %v1412, %v1411
      %v1489 = vpack.c.b16 %v1414, %v1413
      %v1490 = vpack.c.b16 %v1416, %v1415
      %v1491 = vpack.c.b16 %v1418, %v1417
      %v1492 = vpack.c.b16 %v1420, %v1419
      %1565 = vmatprep.subr.bf16.mxu0 0
      %1566 = vmatpush1.bf16.msra.mxu0 %v1428
      %1567 = vmatprep.subr.bf16.mxu0 0
      %1568 = vmatpush1.bf16.msra.mxu0 %v1427
      %1569 = vmatprep.subr.bf16.mxu0 0
      %1570 = vmatpush1.bf16.msra.mxu0 %v1426
      %1571 = vmatprep.subr.bf16.mxu0 0
      %1572 = vmatpush1.bf16.msra.mxu0 %v1425
      %1573 = vmatprep.subr.bf16.mxu0 0
      %1574 = vmatpush1.bf16.msra.mxu0 %v1424
      %1575 = vmatprep.subr.bf16.mxu0 0
      %1576 = vmatpush1.bf16.msra.mxu0 %v1423
      %1577 = vmatprep.subr.bf16.mxu0 0
      %1578 = vmatpush1.bf16.msra.mxu0 %v1422
      %1579 = vmatprep.subr.bf16.mxu0 0
      %1580 = vmatpush1.bf16.msra.mxu0 %v1421
      %1581 = vmatprep.subr.bf16.mxu0 0
      %1582 = vmatpush2.bf16.msra.mxu0 %v1436
      %1583 = vmatprep.subr.bf16.mxu0 0
      %1584 = vmatpush2.bf16.msra.mxu0 %v1435
      %1585 = vmatprep.subr.bf16.mxu0 0
      %1586 = vmatpush2.bf16.msra.mxu0 %v1434
      %1587 = vmatprep.subr.bf16.mxu0 0
      %1588 = vmatpush2.bf16.msra.mxu0 %v1433
      %1589 = vmatprep.subr.bf16.mxu0 0
      %1590 = vmatpush2.bf16.msra.mxu0 %v1432
      %1591 = vmatprep.subr.bf16.mxu0 0
      %1592 = vmatpush2.bf16.msra.mxu0 %v1431
      %1593 = vmatprep.subr.bf16.mxu0 0
      %1594 = vmatpush2.bf16.msra.mxu0 %v1430
      %1595 = vmatprep.subr.bf16.mxu0 0
      %1596 = vmatpush2.bf16.msra.mxu0 %v1429
      %1597 = vmatprep.mubr.bf16.mxu0 %v657
      %1598 = vmatmul.mubr.bf16.gmra.mxu0 %v609
      %v1599 = vpop.f32.mrf.mxu0
      %v1600 = vadd.f32 0.0, %v1599
      %v1601 = vpop.f32.mrf.mxu0
      %v1602 = vpop.f32.mrf.mxu0
      %v1603 = vadd.f32 0.0, %v1602
      %v1604 = vpop.f32.mrf.mxu0
      %1605 = vmatprep.mubr.bf16.mxu0 %v669
      %1606 = vmatmul.mubr.bf16.gmra.mxu0 %v611
      %v1607 = vpop.f32.mrf.mxu0
      %v1608 = vadd.f32 0.0, %v1607
      %v1609 = vpop.f32.mrf.mxu0
      %v1610 = vpop.f32.mrf.mxu0
      %v1611 = vadd.f32 0.0, %v1610
      %v1612 = vpop.f32.mrf.mxu0
      %1613 = vmatprep.mubr.bf16.mxu0 %v681
      %1614 = vmatmul.mubr.bf16.gmra.mxu0 %v613
      %v1615 = vpop.f32.mrf.mxu0
      %v1616 = vadd.f32 0.0, %v1615
      %v1617 = vpop.f32.mrf.mxu0
      %v1618 = vpop.f32.mrf.mxu0
      %v1619 = vadd.f32 0.0, %v1618
      %v1620 = vpop.f32.mrf.mxu0
      %1621 = vmatprep.mubr.bf16.mxu0 %v693
      %1622 = vmatmul.mubr.bf16.gmra.mxu0 %v615
      %v1623 = vpop.f32.mrf.mxu0
      %v1624 = vadd.f32 0.0, %v1623
      %v1625 = vpop.f32.mrf.mxu0
      %v1626 = vpop.f32.mrf.mxu0
      %v1627 = vadd.f32 0.0, %v1626
      %v1628 = vpop.f32.mrf.mxu0
      %1629 = vmatprep.mubr.bf16.mxu0 %v705
      %1630 = vmatmul.mubr.bf16.gmra.mxu0 %v617
      %v1631 = vpop.f32.mrf.mxu0
      %v1632 = vadd.f32 0.0, %v1631
      %v1633 = vpop.f32.mrf.mxu0
      %v1634 = vpop.f32.mrf.mxu0
      %v1635 = vadd.f32 0.0, %v1634
      %v1636 = vpop.f32.mrf.mxu0
      %1637 = vmatprep.mubr.bf16.mxu0 %v717
      %1638 = vmatmul.mubr.bf16.gmra.mxu0 %v619
      %v1639 = vpop.f32.mrf.mxu0
      %v1640 = vadd.f32 0.0, %v1639
      %v1641 = vpop.f32.mrf.mxu0
      %v1642 = vpop.f32.mrf.mxu0
      %v1643 = vadd.f32 0.0, %v1642
      %v1644 = vpop.f32.mrf.mxu0
      %1645 = vmatprep.mubr.bf16.mxu0 %v729
      %1646 = vmatmul.mubr.bf16.gmra.mxu0 %v621
      %v1647 = vpop.f32.mrf.mxu0
      %v1648 = vadd.f32 0.0, %v1647
      %v1649 = vpop.f32.mrf.mxu0
      %v1650 = vpop.f32.mrf.mxu0
      %v1651 = vadd.f32 0.0, %v1650
      %v1652 = vpop.f32.mrf.mxu0
      %1653 = vmatprep.mubr.bf16.mxu0 %v741
      %1654 = vmatmul.mubr.bf16.gmra.mxu0 %v623
      %v1655 = vpop.f32.mrf.mxu0
      %v1656 = vadd.f32 0.0, %v1655
      %v1657 = vpop.f32.mrf.mxu0
      %v1658 = vpop.f32.mrf.mxu0
      %v1659 = vadd.f32 0.0, %v1658
      %v1660 = vpop.f32.mrf.mxu0
      %1661 = vmatprep.mubr.bf16.mxu0 %v753
      %1662 = vmatmul.mubr.bf16.gmra.mxu0 %v625
      %v1663 = vpop.f32.mrf.mxu0
      %v1664 = vadd.f32 0.0, %v1663
      %v1665 = vpop.f32.mrf.mxu0
      %v1666 = vpop.f32.mrf.mxu0
      %v1667 = vadd.f32 0.0, %v1666
      %v1668 = vpop.f32.mrf.mxu0
      %1669 = vmatprep.mubr.bf16.mxu0 %v765
      %1670 = vmatmul.mubr.bf16.gmra.mxu0 %v627
      %v1671 = vpop.f32.mrf.mxu0
      %v1672 = vadd.f32 0.0, %v1671
      %v1673 = vpop.f32.mrf.mxu0
      %v1674 = vpop.f32.mrf.mxu0
      %v1675 = vadd.f32 0.0, %v1674
      %v1676 = vpop.f32.mrf.mxu0
      %1677 = vmatprep.mubr.bf16.mxu0 %v777
      %1678 = vmatmul.mubr.bf16.gmra.mxu0 %v629
      %v1679 = vpop.f32.mrf.mxu0
      %v1680 = vadd.f32 0.0, %v1679
      %v1681 = vpop.f32.mrf.mxu0
      %v1682 = vpop.f32.mrf.mxu0
      %v1683 = vadd.f32 0.0, %v1682
      %v1684 = vpop.f32.mrf.mxu0
      %1685 = vmatprep.mubr.bf16.mxu0 %v789
      %1686 = vmatmul.mubr.bf16.gmra.mxu0 %v631
      %v1687 = vpop.f32.mrf.mxu0
      %v1688 = vadd.f32 0.0, %v1687
      %v1689 = vpop.f32.mrf.mxu0
      %v1690 = vpop.f32.mrf.mxu0
      %v1691 = vadd.f32 0.0, %v1690
      %v1692 = vpop.f32.mrf.mxu0
      %1693 = vmatprep.mubr.bf16.mxu0 %v801
      %1694 = vmatmul.mubr.bf16.gmra.mxu0 %v633
      %v1695 = vpop.f32.mrf.mxu0
      %v1696 = vadd.f32 0.0, %v1695
      %v1697 = vpop.f32.mrf.mxu0
      %v1698 = vpop.f32.mrf.mxu0
      %v1699 = vadd.f32 0.0, %v1698
      %v1700 = vpop.f32.mrf.mxu0
      %1701 = vmatprep.mubr.bf16.mxu0 %v813
      %1702 = vmatmul.mubr.bf16.gmra.mxu0 %v635
      %v1703 = vpop.f32.mrf.mxu0
      %v1704 = vadd.f32 0.0, %v1703
      %v1705 = vpop.f32.mrf.mxu0
      %v1706 = vpop.f32.mrf.mxu0
      %v1707 = vadd.f32 0.0, %v1706
      %v1708 = vpop.f32.mrf.mxu0
      %1709 = vmatprep.mubr.bf16.mxu0 %v825
      %1710 = vmatmul.mubr.bf16.gmra.mxu0 %v637
      %v1711 = vpop.f32.mrf.mxu0
      %v1712 = vadd.f32 0.0, %v1711
      %v1713 = vpop.f32.mrf.mxu0
      %v1714 = vpop.f32.mrf.mxu0
      %v1715 = vadd.f32 0.0, %v1714
      %v1716 = vpop.f32.mrf.mxu0
      %1717 = vmatprep.mubr.bf16.mxu0 %v837
      %1718 = vmatmul.mubr.bf16.gmra.mxu0 %v639
      %v1719 = vpop.f32.mrf.mxu0
      %v1720 = vadd.f32 0.0, %v1719
      %v1721 = vpop.f32.mrf.mxu0
      %v1722 = vpop.f32.mrf.mxu0
      %v1723 = vadd.f32 0.0, %v1722
      %v1724 = vpop.f32.mrf.mxu0
      %1725 = vdwg.mxu0
      %1726 = vmatprep.subr.bf16.mxu0 0
      %1727 = vmatpush1.bf16.msra.mxu0 %v1444
      %1728 = vmatprep.subr.bf16.mxu0 0
      %1729 = vmatpush1.bf16.msra.mxu0 %v1443
      %1730 = vmatprep.subr.bf16.mxu0 0
      %1731 = vmatpush1.bf16.msra.mxu0 %v1442
      %1732 = vmatprep.subr.bf16.mxu0 0
      %1733 = vmatpush1.bf16.msra.mxu0 %v1441
      %1734 = vmatprep.subr.bf16.mxu0 0
      %1735 = vmatpush1.bf16.msra.mxu0 %v1440
      %1736 = vmatprep.subr.bf16.mxu0 0
      %1737 = vmatpush1.bf16.msra.mxu0 %v1439
      %1738 = vmatprep.subr.bf16.mxu0 0
      %1739 = vmatpush1.bf16.msra.mxu0 %v1438
      %1740 = vmatprep.subr.bf16.mxu0 0
      %1741 = vmatpush1.bf16.msra.mxu0 %v1437
      %1742 = vmatprep.subr.bf16.mxu0 0
      %1743 = vmatpush2.bf16.msra.mxu0 %v1452
      %1744 = vmatprep.subr.bf16.mxu0 0
      %1745 = vmatpush2.bf16.msra.mxu0 %v1451
      %1746 = vmatprep.subr.bf16.mxu0 0
      %1747 = vmatpush2.bf16.msra.mxu0 %v1450
      %1748 = vmatprep.subr.bf16.mxu0 0
      %1749 = vmatpush2.bf16.msra.mxu0 %v1449
      %1750 = vmatprep.subr.bf16.mxu0 0
      %1751 = vmatpush2.bf16.msra.mxu0 %v1448
      %1752 = vmatprep.subr.bf16.mxu0 0
      %1753 = vmatpush2.bf16.msra.mxu0 %v1447
      %1754 = vmatprep.subr.bf16.mxu0 0
      %1755 = vmatpush2.bf16.msra.mxu0 %v1446
      %1756 = vmatprep.subr.bf16.mxu0 0
      %1757 = vmatpush2.bf16.msra.mxu0 %v1445
      %1758 = vmatprep.mubr.bf16.mxu0 %v611
      %1759 = vmatmul.mubr.bf16.gmra.mxu0 %v889
      %v1760 = vpop.f32.mrf.mxu0
      %v1761 = vadd.f32 %v1600, %v1760
      %v1762 = vpop.f32.mrf.mxu0
      %v1763 = vpop.f32.mrf.mxu0
      %v1764 = vadd.f32 %v1603, %v1763
      %v1765 = vpop.f32.mrf.mxu0
      %1766 = vmatprep.mubr.bf16.mxu0 %v613
      %1767 = vmatmul.mubr.bf16.gmra.mxu0 %v892
      %v1768 = vpop.f32.mrf.mxu0
      %v1769 = vadd.f32 %v1608, %v1768
      %v1770 = vpop.f32.mrf.mxu0
      %v1771 = vpop.f32.mrf.mxu0
      %v1772 = vadd.f32 %v1611, %v1771
      %v1773 = vpop.f32.mrf.mxu0
      %1774 = vmatprep.mubr.bf16.mxu0 %v615
      %1775 = vmatmul.mubr.bf16.gmra.mxu0 %v895
      %v1776 = vpop.f32.mrf.mxu0
      %v1777 = vadd.f32 %v1616, %v1776
      %v1778 = vpop.f32.mrf.mxu0
      %v1779 = vpop.f32.mrf.mxu0
      %v1780 = vadd.f32 %v1619, %v1779
      %v1781 = vpop.f32.mrf.mxu0
      %1782 = vmatprep.mubr.bf16.mxu0 %v617
      %1783 = vmatmul.mubr.bf16.gmra.mxu0 %v898
      %v1784 = vpop.f32.mrf.mxu0
      %v1785 = vadd.f32 %v1624, %v1784
      %v1786 = vpop.f32.mrf.mxu0
      %v1787 = vpop.f32.mrf.mxu0
      %v1788 = vadd.f32 %v1627, %v1787
      %v1789 = vpop.f32.mrf.mxu0
      %1790 = vmatprep.mubr.bf16.mxu0 %v619
      %1791 = vmatmul.mubr.bf16.gmra.mxu0 %v901
      %v1792 = vpop.f32.mrf.mxu0
      %v1793 = vadd.f32 %v1632, %v1792
      %v1794 = vpop.f32.mrf.mxu0
      %v1795 = vpop.f32.mrf.mxu0
      %v1796 = vadd.f32 %v1635, %v1795
      %v1797 = vpop.f32.mrf.mxu0
      %1798 = vmatprep.mubr.bf16.mxu0 %v621
      %1799 = vmatmul.mubr.bf16.gmra.mxu0 %v904
      %v1800 = vpop.f32.mrf.mxu0
      %v1801 = vadd.f32 %v1640, %v1800
      %v1802 = vpop.f32.mrf.mxu0
      %v1803 = vpop.f32.mrf.mxu0
      %v1804 = vadd.f32 %v1643, %v1803
      %v1805 = vpop.f32.mrf.mxu0
      %1806 = vmatprep.mubr.bf16.mxu0 %v623
      %1807 = vmatmul.mubr.bf16.gmra.mxu0 %v907
      %v1808 = vpop.f32.mrf.mxu0
      %v1809 = vadd.f32 %v1648, %v1808
      %v1810 = vpop.f32.mrf.mxu0
      %v1811 = vpop.f32.mrf.mxu0
      %v1812 = vadd.f32 %v1651, %v1811
      %v1813 = vpop.f32.mrf.mxu0
      %1814 = vmatprep.mubr.bf16.mxu0 %v625
      %1815 = vmatmul.mubr.bf16.gmra.mxu0 %v910
      %v1816 = vpop.f32.mrf.mxu0
      %v1817 = vadd.f32 %v1656, %v1816
      %v1818 = vpop.f32.mrf.mxu0
      %v1819 = vpop.f32.mrf.mxu0
      %v1820 = vadd.f32 %v1659, %v1819
      %v1821 = vpop.f32.mrf.mxu0
      %1822 = vmatprep.mubr.bf16.mxu0 %v627
      %1823 = vmatmul.mubr.bf16.gmra.mxu0 %v913
      %v1824 = vpop.f32.mrf.mxu0
      %v1825 = vadd.f32 %v1664, %v1824
      %v1826 = vpop.f32.mrf.mxu0
      %v1827 = vpop.f32.mrf.mxu0
      %v1828 = vadd.f32 %v1667, %v1827
      %v1829 = vpop.f32.mrf.mxu0
      %1830 = vmatprep.mubr.bf16.mxu0 %v629
      %1831 = vmatmul.mubr.bf16.gmra.mxu0 %v916
      %v1832 = vpop.f32.mrf.mxu0
      %v1833 = vadd.f32 %v1672, %v1832
      %v1834 = vpop.f32.mrf.mxu0
      %v1835 = vpop.f32.mrf.mxu0
      %v1836 = vadd.f32 %v1675, %v1835
      %v1837 = vpop.f32.mrf.mxu0
      %1838 = vmatprep.mubr.bf16.mxu0 %v631
      %1839 = vmatmul.mubr.bf16.gmra.mxu0 %v919
      %v1840 = vpop.f32.mrf.mxu0
      %v1841 = vadd.f32 %v1680, %v1840
      %v1842 = vpop.f32.mrf.mxu0
      %v1843 = vpop.f32.mrf.mxu0
      %v1844 = vadd.f32 %v1683, %v1843
      %v1845 = vpop.f32.mrf.mxu0
      %1846 = vmatprep.mubr.bf16.mxu0 %v633
      %1847 = vmatmul.mubr.bf16.gmra.mxu0 %v922
      %v1848 = vpop.f32.mrf.mxu0
      %v1849 = vadd.f32 %v1688, %v1848
      %v1850 = vpop.f32.mrf.mxu0
      %v1851 = vpop.f32.mrf.mxu0
      %v1852 = vadd.f32 %v1691, %v1851
      %v1853 = vpop.f32.mrf.mxu0
      %1854 = vmatprep.mubr.bf16.mxu0 %v635
      %1855 = vmatmul.mubr.bf16.gmra.mxu0 %v925
      %v1856 = vpop.f32.mrf.mxu0
      %v1857 = vadd.f32 %v1696, %v1856
      %v1858 = vpop.f32.mrf.mxu0
      %v1859 = vpop.f32.mrf.mxu0
      %v1860 = vadd.f32 %v1699, %v1859
      %v1861 = vpop.f32.mrf.mxu0
      %1862 = vmatprep.mubr.bf16.mxu0 %v637
      %1863 = vmatmul.mubr.bf16.gmra.mxu0 %v928
      %v1864 = vpop.f32.mrf.mxu0
      %v1865 = vadd.f32 %v1704, %v1864
      %v1866 = vpop.f32.mrf.mxu0
      %v1867 = vpop.f32.mrf.mxu0
      %v1868 = vadd.f32 %v1707, %v1867
      %v1869 = vpop.f32.mrf.mxu0
      %1870 = vmatprep.mubr.bf16.mxu0 %v639
      %1871 = vmatmul.mubr.bf16.gmra.mxu0 %v931
      %v1872 = vpop.f32.mrf.mxu0
      %v1873 = vadd.f32 %v1712, %v1872
      %v1874 = vpop.f32.mrf.mxu0
      %v1875 = vpop.f32.mrf.mxu0
      %v1876 = vadd.f32 %v1715, %v1875
      %v1877 = vpop.f32.mrf.mxu0
      %1878 = vmatprep.mubr.bf16.mxu0 %v641
      %1879 = vmatmul.mubr.bf16.gmra.mxu0 %v934
      %v1880 = vpop.f32.mrf.mxu0
      %v1881 = vadd.f32 %v1720, %v1880
      %v1882 = vpop.f32.mrf.mxu0
      %v1883 = vpop.f32.mrf.mxu0
      %v1884 = vadd.f32 %v1723, %v1883
      %v1885 = vpop.f32.mrf.mxu0
      %1886 = vdwg.mxu0
      %1887 = vmatprep.subr.bf16.mxu0 0
      %1888 = vmatpush1.bf16.msra.mxu0 %v1460
      %1889 = vmatprep.subr.bf16.mxu0 0
      %1890 = vmatpush1.bf16.msra.mxu0 %v1459
      %1891 = vmatprep.subr.bf16.mxu0 0
      %1892 = vmatpush1.bf16.msra.mxu0 %v1458
      %1893 = vmatprep.subr.bf16.mxu0 0
      %1894 = vmatpush1.bf16.msra.mxu0 %v1457
      %1895 = vmatprep.subr.bf16.mxu0 0
      %1896 = vmatpush1.bf16.msra.mxu0 %v1456
      %1897 = vmatprep.subr.bf16.mxu0 0
      %1898 = vmatpush1.bf16.msra.mxu0 %v1455
      %1899 = vmatprep.subr.bf16.mxu0 0
      %1900 = vmatpush1.bf16.msra.mxu0 %v1454
      %1901 = vmatprep.subr.bf16.mxu0 0
      %1902 = vmatpush1.bf16.msra.mxu0 %v1453
      %1903 = vmatprep.subr.bf16.mxu0 0
      %1904 = vmatpush2.bf16.msra.mxu0 %v1468
      %1905 = vmatprep.subr.bf16.mxu0 0
      %1906 = vmatpush2.bf16.msra.mxu0 %v1467
      %1907 = vmatprep.subr.bf16.mxu0 0
      %1908 = vmatpush2.bf16.msra.mxu0 %v1466
      %1909 = vmatprep.subr.bf16.mxu0 0
      %1910 = vmatpush2.bf16.msra.mxu0 %v1465
      %1911 = vmatprep.subr.bf16.mxu0 0
      %1912 = vmatpush2.bf16.msra.mxu0 %v1464
      %1913 = vmatprep.subr.bf16.mxu0 0
      %1914 = vmatpush2.bf16.msra.mxu0 %v1463
      %1915 = vmatprep.subr.bf16.mxu0 0
      %1916 = vmatpush2.bf16.msra.mxu0 %v1462
      %1917 = vmatprep.subr.bf16.mxu0 0
      %1918 = vmatpush2.bf16.msra.mxu0 %v1461
      %1919 = vmatprep.mubr.bf16.mxu0 %v892
      %1920 = vmatmul.mubr.bf16.gmra.mxu0 %v669
      %v1921 = vpop.f32.mrf.mxu0
      %v1922 = vadd.f32 %v1761, %v1921
      %v1923 = vpop.f32.mrf.mxu0
      %v1924 = vpop.f32.mrf.mxu0
      %v1925 = vadd.f32 %v1764, %v1924
      %v1926 = vpop.f32.mrf.mxu0
      %1927 = vmatprep.mubr.bf16.mxu0 %v895
      %1928 = vmatmul.mubr.bf16.gmra.mxu0 %v681
      %v1929 = vpop.f32.mrf.mxu0
      %v1930 = vadd.f32 %v1769, %v1929
      %v1931 = vpop.f32.mrf.mxu0
      %v1932 = vpop.f32.mrf.mxu0
      %v1933 = vadd.f32 %v1772, %v1932
      %v1934 = vpop.f32.mrf.mxu0
      %1935 = vmatprep.mubr.bf16.mxu0 %v898
      %1936 = vmatmul.mubr.bf16.gmra.mxu0 %v693
      %v1937 = vpop.f32.mrf.mxu0
      %v1938 = vadd.f32 %v1777, %v1937
      %v1939 = vpop.f32.mrf.mxu0
      %v1940 = vpop.f32.mrf.mxu0
      %v1941 = vadd.f32 %v1780, %v1940
      %v1942 = vpop.f32.mrf.mxu0
      %1943 = vmatprep.mubr.bf16.mxu0 %v901
      %1944 = vmatmul.mubr.bf16.gmra.mxu0 %v705
      %v1945 = vpop.f32.mrf.mxu0
      %v1946 = vadd.f32 %v1785, %v1945
      %v1947 = vpop.f32.mrf.mxu0
      %v1948 = vpop.f32.mrf.mxu0
      %v1949 = vadd.f32 %v1788, %v1948
      %v1950 = vpop.f32.mrf.mxu0
      %1951 = vmatprep.mubr.bf16.mxu0 %v904
      %1952 = vmatmul.mubr.bf16.gmra.mxu0 %v717
      %v1953 = vpop.f32.mrf.mxu0
      %v1954 = vadd.f32 %v1793, %v1953
      %v1955 = vpop.f32.mrf.mxu0
      %v1956 = vpop.f32.mrf.mxu0
      %v1957 = vadd.f32 %v1796, %v1956
      %v1958 = vpop.f32.mrf.mxu0
      %1959 = vmatprep.mubr.bf16.mxu0 %v907
      %1960 = vmatmul.mubr.bf16.gmra.mxu0 %v729
      %v1961 = vpop.f32.mrf.mxu0
      %v1962 = vadd.f32 %v1801, %v1961
      %v1963 = vpop.f32.mrf.mxu0
      %v1964 = vpop.f32.mrf.mxu0
      %v1965 = vadd.f32 %v1804, %v1964
      %v1966 = vpop.f32.mrf.mxu0
      %1967 = vmatprep.mubr.bf16.mxu0 %v910
      %1968 = vmatmul.mubr.bf16.gmra.mxu0 %v741
      %v1969 = vpop.f32.mrf.mxu0
      %v1970 = vadd.f32 %v1809, %v1969
      %v1971 = vpop.f32.mrf.mxu0
      %v1972 = vpop.f32.mrf.mxu0
      %v1973 = vadd.f32 %v1812, %v1972
      %v1974 = vpop.f32.mrf.mxu0
      %1975 = vmatprep.mubr.bf16.mxu0 %v913
      %1976 = vmatmul.mubr.bf16.gmra.mxu0 %v753
      %v1977 = vpop.f32.mrf.mxu0
      %v1978 = vadd.f32 %v1817, %v1977
      %v1979 = vpop.f32.mrf.mxu0
      %v1980 = vpop.f32.mrf.mxu0
      %v1981 = vadd.f32 %v1820, %v1980
      %v1982 = vpop.f32.mrf.mxu0
      %1983 = vmatprep.mubr.bf16.mxu0 %v916
      %1984 = vmatmul.mubr.bf16.gmra.mxu0 %v765
      %v1985 = vpop.f32.mrf.mxu0
      %v1986 = vadd.f32 %v1825, %v1985
      %v1987 = vpop.f32.mrf.mxu0
      %v1988 = vpop.f32.mrf.mxu0
      %v1989 = vadd.f32 %v1828, %v1988
      %v1990 = vpop.f32.mrf.mxu0
      %1991 = vmatprep.mubr.bf16.mxu0 %v919
      %1992 = vmatmul.mubr.bf16.gmra.mxu0 %v777
      %v1993 = vpop.f32.mrf.mxu0
      %v1994 = vadd.f32 %v1833, %v1993
      %v1995 = vpop.f32.mrf.mxu0
      %v1996 = vpop.f32.mrf.mxu0
      %v1997 = vadd.f32 %v1836, %v1996
      %v1998 = vpop.f32.mrf.mxu0
      %1999 = vmatprep.mubr.bf16.mxu0 %v922
      %2000 = vmatmul.mubr.bf16.gmra.mxu0 %v789
      %v2001 = vpop.f32.mrf.mxu0
      %v2002 = vadd.f32 %v1841, %v2001
      %v2003 = vpop.f32.mrf.mxu0
      %v2004 = vpop.f32.mrf.mxu0
      %v2005 = vadd.f32 %v1844, %v2004
      %v2006 = vpop.f32.mrf.mxu0
      %2007 = vmatprep.mubr.bf16.mxu0 %v925
      %2008 = vmatmul.mubr.bf16.gmra.mxu0 %v801
      %v2009 = vpop.f32.mrf.mxu0
      %v2010 = vadd.f32 %v1849, %v2009
      %v2011 = vpop.f32.mrf.mxu0
      %v2012 = vpop.f32.mrf.mxu0
      %v2013 = vadd.f32 %v1852, %v2012
      %v2014 = vpop.f32.mrf.mxu0
      %2015 = vmatprep.mubr.bf16.mxu0 %v928
      %2016 = vmatmul.mubr.bf16.gmra.mxu0 %v813
      %v2017 = vpop.f32.mrf.mxu0
      %v2018 = vadd.f32 %v1857, %v2017
      %v2019 = vpop.f32.mrf.mxu0
      %v2020 = vpop.f32.mrf.mxu0
      %v2021 = vadd.f32 %v1860, %v2020
      %v2022 = vpop.f32.mrf.mxu0
      %2023 = vmatprep.mubr.bf16.mxu0 %v931
      %2024 = vmatmul.mubr.bf16.gmra.mxu0 %v825
      %v2025 = vpop.f32.mrf.mxu0
      %v2026 = vadd.f32 %v1865, %v2025
      %v2027 = vpop.f32.mrf.mxu0
      %v2028 = vpop.f32.mrf.mxu0
      %v2029 = vadd.f32 %v1868, %v2028
      %v2030 = vpop.f32.mrf.mxu0
      %2031 = vmatprep.mubr.bf16.mxu0 %v934
      %2032 = vmatmul.mubr.bf16.gmra.mxu0 %v837
      %v2033 = vpop.f32.mrf.mxu0
      %v2034 = vadd.f32 %v1873, %v2033
      %v2035 = vpop.f32.mrf.mxu0
      %v2036 = vpop.f32.mrf.mxu0
      %v2037 = vadd.f32 %v1876, %v2036
      %v2038 = vpop.f32.mrf.mxu0
      %2039 = vmatprep.mubr.bf16.mxu0 %v968
      %2040 = vmatmul.mubr.bf16.gmra.mxu0 %v962
      %v2041 = vpop.f32.mrf.mxu0
      %v2042 = vadd.f32 %v1881, %v2041
      %v2043 = vpop.f32.mrf.mxu0
      %v2044 = vpop.f32.mrf.mxu0
      %v2045 = vadd.f32 %v1884, %v2044
      %v2046 = vpop.f32.mrf.mxu0
      %2047 = vdwg.mxu0
      %2048 = vmatprep.subr.bf16.mxu0 0
      %2049 = vmatpush1.bf16.msra.mxu0 %v1476
      %2050 = vmatprep.subr.bf16.mxu0 0
      %2051 = vmatpush1.bf16.msra.mxu0 %v1475
      %2052 = vmatprep.subr.bf16.mxu0 0
      %2053 = vmatpush1.bf16.msra.mxu0 %v1474
      %2054 = vmatprep.subr.bf16.mxu0 0
      %2055 = vmatpush1.bf16.msra.mxu0 %v1473
      %2056 = vmatprep.subr.bf16.mxu0 0
      %2057 = vmatpush1.bf16.msra.mxu0 %v1472
      %2058 = vmatprep.subr.bf16.mxu0 0
      %2059 = vmatpush1.bf16.msra.mxu0 %v1471
      %2060 = vmatprep.subr.bf16.mxu0 0
      %2061 = vmatpush1.bf16.msra.mxu0 %v1470
      %2062 = vmatprep.subr.bf16.mxu0 0
      %2063 = vmatpush1.bf16.msra.mxu0 %v1469
      %2064 = vmatprep.subr.bf16.mxu0 0
      %2065 = vmatpush2.bf16.msra.mxu0 %v1484
      %2066 = vmatprep.subr.bf16.mxu0 0
      %2067 = vmatpush2.bf16.msra.mxu0 %v1483
      %2068 = vmatprep.subr.bf16.mxu0 0
      %2069 = vmatpush2.bf16.msra.mxu0 %v1482
      %2070 = vmatprep.subr.bf16.mxu0 0
      %2071 = vmatpush2.bf16.msra.mxu0 %v1481
      %2072 = vmatprep.subr.bf16.mxu0 0
      %2073 = vmatpush2.bf16.msra.mxu0 %v1480
      %2074 = vmatprep.subr.bf16.mxu0 0
      %2075 = vmatpush2.bf16.msra.mxu0 %v1479
      %2076 = vmatprep.subr.bf16.mxu0 0
      %2077 = vmatpush2.bf16.msra.mxu0 %v1478
      %2078 = vmatprep.subr.bf16.mxu0 0
      %2079 = vmatpush2.bf16.msra.mxu0 %v1477
      %2080 = vmatprep.mubr.bf16.mxu0 %v681
      %2081 = vmatmul.mubr.bf16.gmra.mxu0 %v613
      %v2082 = vpop.f32.mrf.mxu0
      %v2083 = vadd.f32 %v1922, %v2082
      %v2084 = vpop.f32.mrf.mxu0
      %v2085 = vpop.f32.mrf.mxu0
      %v2086 = vadd.f32 %v1925, %v2085
      %v2087 = vpop.f32.mrf.mxu0
      %2088 = vmatprep.mubr.bf16.mxu0 %v693
      %2089 = vmatmul.mubr.bf16.gmra.mxu0 %v615
      %v2090 = vpop.f32.mrf.mxu0
      %v2091 = vadd.f32 %v1930, %v2090
      %v2092 = vpop.f32.mrf.mxu0
      %v2093 = vpop.f32.mrf.mxu0
      %v2094 = vadd.f32 %v1933, %v2093
      %v2095 = vpop.f32.mrf.mxu0
      %2096 = vmatprep.mubr.bf16.mxu0 %v705
      %2097 = vmatmul.mubr.bf16.gmra.mxu0 %v617
      %v2098 = vpop.f32.mrf.mxu0
      %v2099 = vadd.f32 %v1938, %v2098
      %v2100 = vpop.f32.mrf.mxu0
      %v2101 = vpop.f32.mrf.mxu0
      %v2102 = vadd.f32 %v1941, %v2101
      %v2103 = vpop.f32.mrf.mxu0
      %2104 = vmatprep.mubr.bf16.mxu0 %v717
      %2105 = vmatmul.mubr.bf16.gmra.mxu0 %v619
      %v2106 = vpop.f32.mrf.mxu0
      %v2107 = vadd.f32 %v1946, %v2106
      %v2108 = vpop.f32.mrf.mxu0
      %v2109 = vpop.f32.mrf.mxu0
      %v2110 = vadd.f32 %v1949, %v2109
      %v2111 = vpop.f32.mrf.mxu0
      %2112 = vmatprep.mubr.bf16.mxu0 %v729
      %2113 = vmatmul.mubr.bf16.gmra.mxu0 %v621
      %v2114 = vpop.f32.mrf.mxu0
      %v2115 = vadd.f32 %v1954, %v2114
      %v2116 = vpop.f32.mrf.mxu0
      %v2117 = vpop.f32.mrf.mxu0
      %v2118 = vadd.f32 %v1957, %v2117
      %v2119 = vpop.f32.mrf.mxu0
      %2120 = vmatprep.mubr.bf16.mxu0 %v741
      %2121 = vmatmul.mubr.bf16.gmra.mxu0 %v623
      %v2122 = vpop.f32.mrf.mxu0
      %v2123 = vadd.f32 %v1962, %v2122
      %v2124 = vpop.f32.mrf.mxu0
      %v2125 = vpop.f32.mrf.mxu0
      %v2126 = vadd.f32 %v1965, %v2125
      %v2127 = vpop.f32.mrf.mxu0
      %2128 = vmatprep.mubr.bf16.mxu0 %v753
      %2129 = vmatmul.mubr.bf16.gmra.mxu0 %v625
      %v2130 = vpop.f32.mrf.mxu0
      %v2131 = vadd.f32 %v1970, %v2130
      %v2132 = vpop.f32.mrf.mxu0
      %v2133 = vpop.f32.mrf.mxu0
      %v2134 = vadd.f32 %v1973, %v2133
      %v2135 = vpop.f32.mrf.mxu0
      %2136 = vmatprep.mubr.bf16.mxu0 %v765
      %2137 = vmatmul.mubr.bf16.gmra.mxu0 %v627
      %v2138 = vpop.f32.mrf.mxu0
      %v2139 = vadd.f32 %v1978, %v2138
      %v2140 = vpop.f32.mrf.mxu0
      %v2141 = vpop.f32.mrf.mxu0
      %v2142 = vadd.f32 %v1981, %v2141
      %v2143 = vpop.f32.mrf.mxu0
      %2144 = vmatprep.mubr.bf16.mxu0 %v777
      %2145 = vmatmul.mubr.bf16.gmra.mxu0 %v629
      %v2146 = vpop.f32.mrf.mxu0
      %v2147 = vadd.f32 %v1986, %v2146
      %v2148 = vpop.f32.mrf.mxu0
      %v2149 = vpop.f32.mrf.mxu0
      %v2150 = vadd.f32 %v1989, %v2149
      %v2151 = vpop.f32.mrf.mxu0
      %2152 = vmatprep.mubr.bf16.mxu0 %v789
      %2153 = vmatmul.mubr.bf16.gmra.mxu0 %v631
      %v2154 = vpop.f32.mrf.mxu0
      %v2155 = vadd.f32 %v1994, %v2154
      %v2156 = vpop.f32.mrf.mxu0
      %v2157 = vpop.f32.mrf.mxu0
      %v2158 = vadd.f32 %v1997, %v2157
      %v2159 = vpop.f32.mrf.mxu0
      %2160 = vmatprep.mubr.bf16.mxu0 %v801
      %2161 = vmatmul.mubr.bf16.gmra.mxu0 %v633
      %v2162 = vpop.f32.mrf.mxu0
      %v2163 = vadd.f32 %v2002, %v2162
      %v2164 = vpop.f32.mrf.mxu0
      %v2165 = vpop.f32.mrf.mxu0
      %v2166 = vadd.f32 %v2005, %v2165
      %v2167 = vpop.f32.mrf.mxu0
      %2168 = vmatprep.mubr.bf16.mxu0 %v813
      %2169 = vmatmul.mubr.bf16.gmra.mxu0 %v635
      %v2170 = vpop.f32.mrf.mxu0
      %v2171 = vadd.f32 %v2010, %v2170
      %v2172 = vpop.f32.mrf.mxu0
      %v2173 = vpop.f32.mrf.mxu0
      %v2174 = vadd.f32 %v2013, %v2173
      %v2175 = vpop.f32.mrf.mxu0
      %2176 = vmatprep.mubr.bf16.mxu0 %v825
      %2177 = vmatmul.mubr.bf16.gmra.mxu0 %v637
      %v2178 = vpop.f32.mrf.mxu0
      %v2179 = vadd.f32 %v2018, %v2178
      %v2180 = vpop.f32.mrf.mxu0
      %v2181 = vpop.f32.mrf.mxu0
      %v2182 = vadd.f32 %v2021, %v2181
      %v2183 = vpop.f32.mrf.mxu0
      %2184 = vmatprep.mubr.bf16.mxu0 %v837
      %2185 = vmatmul.mubr.bf16.gmra.mxu0 %v639
      %v2186 = vpop.f32.mrf.mxu0
      %v2187 = vadd.f32 %v2026, %v2186
      %v2188 = vpop.f32.mrf.mxu0
      %v2189 = vpop.f32.mrf.mxu0
      %v2190 = vadd.f32 %v2029, %v2189
      %v2191 = vpop.f32.mrf.mxu0
      %2192 = vmatprep.mubr.bf16.mxu0 %v962
      %2193 = vmatmul.mubr.bf16.gmra.mxu0 %v641
      %v2194 = vpop.f32.mrf.mxu0
      %v2195 = vadd.f32 %v2034, %v2194
      %v2196 = vpop.f32.mrf.mxu0
      %v2197 = vpop.f32.mrf.mxu0
      %v2198 = vadd.f32 %v2037, %v2197
      %v2199 = vpop.f32.mrf.mxu0
      %2200 = vmatprep.mubr.bf16.mxu0 %v981
      %2201 = vmatmul.mubr.bf16.gmra.mxu0 %v643
      %v2202 = vpop.f32.mrf.mxu0
      %v2203 = vadd.f32 %v2042, %v2202
      %v2204 = vpop.f32.mrf.mxu0
      %v2205 = vpop.f32.mrf.mxu0
      %v2206 = vadd.f32 %v2045, %v2205
      %v2207 = vpop.f32.mrf.mxu0
      %2208 = vdwg.mxu0
      %2209 = vmatprep.subr.bf16.mxu0 0
      %2210 = vmatpush1.bf16.msra.mxu0 %v1492
      %2211 = vmatprep.subr.bf16.mxu0 0
      %2212 = vmatpush1.bf16.msra.mxu0 %v1491
      %2213 = vmatprep.subr.bf16.mxu0 0
      %2214 = vmatpush1.bf16.msra.mxu0 %v1490
      %2215 = vmatprep.subr.bf16.mxu0 0
      %2216 = vmatpush1.bf16.msra.mxu0 %v1489
      %2217 = vmatprep.subr.bf16.mxu0 0
      %2218 = vmatpush1.bf16.msra.mxu0 %v1488
      %2219 = vmatprep.subr.bf16.mxu0 0
      %2220 = vmatpush1.bf16.msra.mxu0 %v1487
      %2221 = vmatprep.subr.bf16.mxu0 0
      %2222 = vmatpush1.bf16.msra.mxu0 %v1486
      %2223 = vmatprep.subr.bf16.mxu0 0
      %2224 = vmatpush1.bf16.msra.mxu0 %v1485
      %2225 = vmatprep.subr.bf16.mxu0 0
      %2226 = vmatpush2.bf16.msra.mxu0 0
      %2227 = vmatprep.subr.bf16.mxu0 0
      %2228 = vmatpush2.bf16.msra.mxu0 0
      %2229 = vmatprep.subr.bf16.mxu0 0
      %2230 = vmatpush2.bf16.msra.mxu0 0
      %2231 = vmatprep.subr.bf16.mxu0 0
      %2232 = vmatpush2.bf16.msra.mxu0 0
      %2233 = vmatprep.subr.bf16.mxu0 0
      %2234 = vmatpush2.bf16.msra.mxu0 0
      %2235 = vmatprep.subr.bf16.mxu0 0
      %2236 = vmatpush2.bf16.msra.mxu0 0
      %2237 = vmatprep.subr.bf16.mxu0 0
      %2238 = vmatpush2.bf16.msra.mxu0 0
      %2239 = vmatprep.subr.bf16.mxu0 0
      %2240 = vmatpush2.bf16.msra.mxu0 0
      %2241 = vmatprep.mubr.bf16.mxu0 0
      %2242 = vmatmul.mubr.bf16.gmra.mxu0 %v895
      %v2243 = vpop.f32.mrf.mxu0
      %v2244 = vadd.f32 %v2083, %v2243
      %v2245 = vpop.f32.mrf.mxu0
      %v2246 = vpop.f32.mrf.mxu0
      %v2247 = vadd.f32 %v2086, %v2246
      %v2248 = vpop.f32.mrf.mxu0
      %2249 = vmatprep.mubr.bf16.mxu0 0
      %2250 = vmatmul.mubr.bf16.gmra.mxu0 %v898
      %v2251 = vpop.f32.mrf.mxu0
      %v2252 = vadd.f32 %v2091, %v2251
      %v2253 = vpop.f32.mrf.mxu0
      %v2254 = vpop.f32.mrf.mxu0
      %v2255 = vadd.f32 %v2094, %v2254
      %v2256 = vpop.f32.mrf.mxu0
      %2257 = vmatprep.mubr.bf16.mxu0 0
      %2258 = vmatmul.mubr.bf16.gmra.mxu0 %v901
      %v2259 = vpop.f32.mrf.mxu0
      %v2260 = vadd.f32 %v2099, %v2259
      %v2261 = vpop.f32.mrf.mxu0
      %v2262 = vpop.f32.mrf.mxu0
      %v2263 = vadd.f32 %v2102, %v2262
      %v2264 = vpop.f32.mrf.mxu0
      %2265 = vmatprep.mubr.bf16.mxu0 0
      %2266 = vmatmul.mubr.bf16.gmra.mxu0 %v904
      %v2267 = vpop.f32.mrf.mxu0
      %v2268 = vadd.f32 %v2107, %v2267
      %v2269 = vpop.f32.mrf.mxu0
      %v2270 = vpop.f32.mrf.mxu0
      %v2271 = vadd.f32 %v2110, %v2270
      %v2272 = vpop.f32.mrf.mxu0
      %2273 = vmatprep.mubr.bf16.mxu0 0
      %2274 = vmatmul.mubr.bf16.gmra.mxu0 %v907
      %v2275 = vpop.f32.mrf.mxu0
      %v2276 = vadd.f32 %v2115, %v2275
      %v2277 = vpop.f32.mrf.mxu0
      %v2278 = vpop.f32.mrf.mxu0
      %v2279 = vadd.f32 %v2118, %v2278
      %v2280 = vpop.f32.mrf.mxu0
      %2281 = vmatprep.mubr.bf16.mxu0 0
      %2282 = vmatmul.mubr.bf16.gmra.mxu0 %v910
      %v2283 = vpop.f32.mrf.mxu0
      %v2284 = vadd.f32 %v2123, %v2283
      %v2285 = vpop.f32.mrf.mxu0
      %v2286 = vpop.f32.mrf.mxu0
      %v2287 = vadd.f32 %v2126, %v2286
      %v2288 = vpop.f32.mrf.mxu0
      %2289 = vmatprep.mubr.bf16.mxu0 0
      %2290 = vmatmul.mubr.bf16.gmra.mxu0 %v913
      %v2291 = vpop.f32.mrf.mxu0
      %v2292 = vadd.f32 %v2131, %v2291
      %v2293 = vpop.f32.mrf.mxu0
      %v2294 = vpop.f32.mrf.mxu0
      %v2295 = vadd.f32 %v2134, %v2294
      %v2296 = vpop.f32.mrf.mxu0
      %2297 = vmatprep.mubr.bf16.mxu0 0
      %2298 = vmatmul.mubr.bf16.gmra.mxu0 %v916
      %v2299 = vpop.f32.mrf.mxu0
      %v2300 = vadd.f32 %v2139, %v2299
      %v2301 = vpop.f32.mrf.mxu0
      %v2302 = vpop.f32.mrf.mxu0
      %v2303 = vadd.f32 %v2142, %v2302
      %v2304 = vpop.f32.mrf.mxu0
      %2305 = vmatprep.mubr.bf16.mxu0 0
      %2306 = vmatmul.mubr.bf16.gmra.mxu0 %v919
      %v2307 = vpop.f32.mrf.mxu0
      %v2308 = vadd.f32 %v2147, %v2307
      %v2309 = vpop.f32.mrf.mxu0
      %v2310 = vpop.f32.mrf.mxu0
      %v2311 = vadd.f32 %v2150, %v2310
      %v2312 = vpop.f32.mrf.mxu0
      %2313 = vmatprep.mubr.bf16.mxu0 0
      %2314 = vmatmul.mubr.bf16.gmra.mxu0 %v922
      %v2315 = vpop.f32.mrf.mxu0
      %v2316 = vadd.f32 %v2155, %v2315
      %v2317 = vpop.f32.mrf.mxu0
      %v2318 = vpop.f32.mrf.mxu0
      %v2319 = vadd.f32 %v2158, %v2318
      %v2320 = vpop.f32.mrf.mxu0
      %2321 = vmatprep.mubr.bf16.mxu0 0
      %2322 = vmatmul.mubr.bf16.gmra.mxu0 %v925
      %v2323 = vpop.f32.mrf.mxu0
      %v2324 = vadd.f32 %v2163, %v2323
      %v2325 = vpop.f32.mrf.mxu0
      %v2326 = vpop.f32.mrf.mxu0
      %v2327 = vadd.f32 %v2166, %v2326
      %v2328 = vpop.f32.mrf.mxu0
      %2329 = vmatprep.mubr.bf16.mxu0 0
      %2330 = vmatmul.mubr.bf16.gmra.mxu0 %v928
      %v2331 = vpop.f32.mrf.mxu0
      %v2332 = vadd.f32 %v2171, %v2331
      %v2333 = vpop.f32.mrf.mxu0
      %v2334 = vpop.f32.mrf.mxu0
      %v2335 = vadd.f32 %v2174, %v2334
      %v2336 = vpop.f32.mrf.mxu0
      %2337 = vmatprep.mubr.bf16.mxu0 0
      %2338 = vmatmul.mubr.bf16.gmra.mxu0 %v931
      %v2339 = vpop.f32.mrf.mxu0
      %v2340 = vadd.f32 %v2179, %v2339
      %v2341 = vpop.f32.mrf.mxu0
      %v2342 = vpop.f32.mrf.mxu0
      %v2343 = vadd.f32 %v2182, %v2342
      %v2344 = vpop.f32.mrf.mxu0
      %2345 = vmatprep.mubr.bf16.mxu0 0
      %2346 = vmatmul.mubr.bf16.gmra.mxu0 %v934
      %v2347 = vpop.f32.mrf.mxu0
      %v2348 = vadd.f32 %v2187, %v2347
      %v2349 = vpop.f32.mrf.mxu0
      %v2350 = vpop.f32.mrf.mxu0
      %v2351 = vadd.f32 %v2190, %v2350
      %v2352 = vpop.f32.mrf.mxu0
      %2353 = vmatprep.mubr.bf16.mxu0 0
      %2354 = vmatmul.mubr.bf16.gmra.mxu0 %v968
      %v2355 = vpop.f32.mrf.mxu0
      %v2356 = vadd.f32 %v2195, %v2355
      %v2357 = vpop.f32.mrf.mxu0
      %v2358 = vpop.f32.mrf.mxu0
      %v2359 = vadd.f32 %v2198, %v2358
      %v2360 = vpop.f32.mrf.mxu0
      %2361 = vmatprep.mubr.bf16.mxu0 0
      %2362 = vmatmul.mubr.bf16.gmra.mxu0 %v987
      %v2363 = vpop.f32.mrf.mxu0
      %v2364 = vadd.f32 %v2203, %v2363
      %v2365 = vpop.f32.mrf.mxu0
      %v2366 = vpop.f32.mrf.mxu0
      %v2367 = vadd.f32 %v2206, %v2366
      %v2368 = vpop.f32.mrf.mxu0
      %2369 = vdwg.mxu0
      %v2370 = vadd.f32 %v2244, %v2247
      %v2371 = vadd.f32 %v2370, %v2252
      %v2372 = vadd.f32 %v2371, %v2255
      %v2373 = vadd.f32 %v2372, %v2260
      %v2374 = vadd.f32 %v2373, %v2263
      %v2375 = vadd.f32 %v2374, %v2268
      %v2376 = vadd.f32 %v2375, %v2271
      %v2377 = vadd.f32 %v2376, %v2276
      %v2378 = vadd.f32 %v2377, %v2279
      %v2379 = vadd.f32 %v2378, %v2284
      %v2380 = vadd.f32 %v2379, %v2287
      %v2381 = vadd.f32 %v2380, %v2292
      %v2382 = vadd.f32 %v2381, %v2295
      %v2383 = vadd.f32 %v2382, %v2300
      %v2384 = vadd.f32 %v2383, %v2303
      %v2385 = vadd.f32 %v2384, %v2308
      %v2386 = vadd.f32 %v2385, %v2311
      %v2387 = vadd.f32 %v2386, %v2316
      %v2388 = vadd.f32 %v2387, %v2319
      %v2389 = vadd.f32 %v2388, %v2324
      %v2390 = vadd.f32 %v2389, %v2327
      %v2391 = vadd.f32 %v2390, %v2332
      %v2392 = vadd.f32 %v2391, %v2335
      %v2393 = vadd.f32 %v2392, %v2340
      %v2394 = vadd.f32 %v2393, %v2343
      %v2395 = vadd.f32 %v2394, %v2348
      %v2396 = vadd.f32 %v2395, %v2351
      %v2397 = vadd.f32 %v2396, %v2356
      %v2398 = vadd.f32 %v2397, %v2359
      %v2399 = vadd.f32 %v2398, %v2364
      %v2400 = vadd.f32 %v2399, %v2367
      %v2401 = vrot.slane %v2400, 4
      %v2402 = vadd.f32 %v2400, %v2401
      %v2403 = vrot.slane %v2402, 2
      %v2404 = vadd.f32 %v2402, %v2403
      %v2405 = vrot.slane %v2404, 1
      %v2406 = vadd.f32 %v2404, %v2405
      %2407 = vst [vmem:[%s235] sm:$0x1] %v2406
      %v2408 = vmul.f32 %v2244, %v2244
      %v2409 = vmul.f32 %v2247, %v2247
      %v2410 = vmul.f32 %v2252, %v2252
      %v2411 = vmul.f32 %v2255, %v2255
      %v2412 = vmul.f32 %v2260, %v2260
      %v2413 = vmul.f32 %v2263, %v2263
      %v2414 = vmul.f32 %v2268, %v2268
      %v2415 = vmul.f32 %v2271, %v2271
      %v2416 = vmul.f32 %v2276, %v2276
      %v2417 = vmul.f32 %v2279, %v2279
      %v2418 = vmul.f32 %v2284, %v2284
      %v2419 = vmul.f32 %v2287, %v2287
      %v2420 = vmul.f32 %v2292, %v2292
      %v2421 = vmul.f32 %v2295, %v2295
      %v2422 = vmul.f32 %v2300, %v2300
      %v2423 = vmul.f32 %v2303, %v2303
      %v2424 = vmul.f32 %v2308, %v2308
      %v2425 = vmul.f32 %v2311, %v2311
      %v2426 = vmul.f32 %v2316, %v2316
      %v2427 = vmul.f32 %v2319, %v2319
      %v2428 = vmul.f32 %v2324, %v2324
      %v2429 = vmul.f32 %v2327, %v2327
      %v2430 = vmul.f32 %v2332, %v2332
      %v2431 = vmul.f32 %v2335, %v2335
      %v2432 = vmul.f32 %v2340, %v2340
      %v2433 = vmul.f32 %v2343, %v2343
      %v2434 = vmul.f32 %v2348, %v2348
      %v2435 = vmul.f32 %v2351, %v2351
      %v2436 = vmul.f32 %v2356, %v2356
      %v2437 = vmul.f32 %v2359, %v2359
      %v2438 = vmul.f32 %v2364, %v2364
      %v2439 = vmul.f32 %v2367, %v2367
      %v2440 = vadd.f32 %v2408, %v2409
      %v2441 = vadd.f32 %v2440, %v2410
      %v2442 = vadd.f32 %v2441, %v2411
      %v2443 = vadd.f32 %v2442, %v2412
      %v2444 = vadd.f32 %v2443, %v2413
      %v2445 = vadd.f32 %v2444, %v2414
      %v2446 = vadd.f32 %v2445, %v2415
      %v2447 = vadd.f32 %v2446, %v2416
      %v2448 = vadd.f32 %v2447, %v2417
      %v2449 = vadd.f32 %v2448, %v2418
      %v2450 = vadd.f32 %v2449, %v2419
      %v2451 = vadd.f32 %v2450, %v2420
      %v2452 = vadd.f32 %v2451, %v2421
      %v2453 = vadd.f32 %v2452, %v2422
      %v2454 = vadd.f32 %v2453, %v2423
      %v2455 = vadd.f32 %v2454, %v2424
      %v2456 = vadd.f32 %v2455, %v2425
      %v2457 = vadd.f32 %v2456, %v2426
      %v2458 = vadd.f32 %v2457, %v2427
      %v2459 = vadd.f32 %v2458, %v2428
      %v2460 = vadd.f32 %v2459, %v2429
      %v2461 = vadd.f32 %v2460, %v2430
      %v2462 = vadd.f32 %v2461, %v2431
      %v2463 = vadd.f32 %v2462, %v2432
      %v2464 = vadd.f32 %v2463, %v2433
      %v2465 = vadd.f32 %v2464, %v2434
      %v2466 = vadd.f32 %v2465, %v2435
      %v2467 = vadd.f32 %v2466, %v2436
      %v2468 = vadd.f32 %v2467, %v2437
      %v2469 = vadd.f32 %v2468, %v2438
      %v2470 = vadd.f32 %v2469, %v2439
      %v2471 = vrot.slane %v2470, 4
      %v2472 = vadd.f32 %v2470, %v2471
      %v2473 = vrot.slane %v2472, 2
      %v2474 = vadd.f32 %v2472, %v2473
      %v2475 = vrot.slane %v2474, 1
      %v2476 = vadd.f32 %v2474, %v2475
      %2477 = vst [vmem:[%s235 + $0x1] sm:$0x1] %v2476
      %2478 = vst [vmem:[%s231] sm:$0xf] 0
      %2479 = vst [vmem:[%s231 + $0x4] sm:$0xf] 0
      %2480 = vst [vmem:[%s231 + $0x8] sm:$0x1] 0
      %2481 = vst [vmem:[%s231 + $0xc] sm:$0xf] 0
      %2482 = vst [vmem:[%s231 + $0x10] sm:$0xf] 0
      %2483 = vst [vmem:[%s231 + $0x14] sm:$0x1] 0
      %2484 = vst [vmem:[%s231 + $0x18] sm:$0xf] 0
      %2485 = vst [vmem:[%s231 + $0x1c] sm:$0xf] 0
      %2486 = vst [vmem:[%s231 + $0x20] sm:$0x1] 0
      %2487 = vst [vmem:[%s231 + $0x24] sm:$0xf] 0
      %2488 = vst [vmem:[%s231 + $0x28] sm:$0xf] 0
      %2489 = vst [vmem:[%s231 + $0x2c] sm:$0x1] 0
      %2490 = vst [vmem:[%s231 + $0x30] sm:$0xf] 0
      %2491 = vst [vmem:[%s231 + $0x34] sm:$0xf] 0
      %2492 = vst [vmem:[%s231 + $0x38] sm:$0x1] 0
      %2493 = vst [vmem:[%s231 + $0x3c] sm:$0xf] 0
      %2494 = vst [vmem:[%s231 + $0x40] sm:$0xf] 0
      %2495 = vst [vmem:[%s231 + $0x44] sm:$0x1] 0
      %2496 = vst [vmem:[%s231 + $0x48] sm:$0xf] 0
      %2497 = vst [vmem:[%s231 + $0x4c] sm:$0xf] 0
      %2498 = vst [vmem:[%s231 + $0x50] sm:$0x1] 0
      %2499 = vst [vmem:[%s231 + $0x54] sm:$0xf] 0
      %2500 = vst [vmem:[%s231 + $0x58] sm:$0xf] 0
      %2501 = vst [vmem:[%s231 + $0x5c] sm:$0x1] 0
      %2502 = vst [vmem:[%s231 + $0x60] sm:$0xf] 0
      %2503 = vst [vmem:[%s231 + $0x64] sm:$0xf] 0
      %2504 = vst [vmem:[%s231 + $0x68] sm:$0x1] 0
      %2505 = vst [vmem:[%s231 + $0x6c] sm:$0xf] 0
      %2506 = vst [vmem:[%s231 + $0x70] sm:$0xf] 0
      %2507 = vst [vmem:[%s231 + $0x74] sm:$0x1] 0
      %2508 = vst [vmem:[%s231 + $0x78] sm:$0xf] 0
      %2509 = vst [vmem:[%s231 + $0x7c] sm:$0xf] 0
      %2510 = vst [vmem:[%s231 + $0x80] sm:$0x1] 0
      %2511 = vst [vmem:[%s231 + $0x84] sm:$0xf] 0
      %2512 = vst [vmem:[%s231 + $0x88] sm:$0xf] 0
      %2513 = vst [vmem:[%s231 + $0x8c] sm:$0x1] 0
      %2514 = vst [vmem:[%s231 + $0x90] sm:$0xf] 0
      %2515 = vst [vmem:[%s231 + $0x94] sm:$0xf] 0
      %2516 = vst [vmem:[%s231 + $0x98] sm:$0x1] 0
      %2517 = vst [vmem:[%s231 + $0x9c] sm:$0xf] 0
      %2518 = vst [vmem:[%s231 + $0xa0] sm:$0xf] 0
      %2519 = vst [vmem:[%s231 + $0xa4] sm:$0x1] 0
      %2520 = vst [vmem:[%s231 + $0xa8] sm:$0xf] 0
      %2521 = vst [vmem:[%s231 + $0xac] sm:$0xf] 0
      %2522 = vst [vmem:[%s231 + $0xb0] sm:$0x1] 0
      %2523 = vst [vmem:[%s231 + $0xb4] sm:$0xf] 0
      %2524 = vst [vmem:[%s231 + $0xb8] sm:$0xf] 0
      %2525 = vst [vmem:[%s231 + $0xbc] sm:$0x1] 0
      %2526 = vst [vmem:[%s231 + $0xc0] sm:$0xf] 0
      %2527 = vst [vmem:[%s231 + $0xc4] sm:$0xf] 0
      %2528 = vst [vmem:[%s231 + $0xc8] sm:$0x1] 0
      %2529 = vst [vmem:[%s231 + $0xcc] sm:$0xf] 0
      %2530 = vst [vmem:[%s231 + $0xd0] sm:$0xf] 0
      %2531 = vst [vmem:[%s231 + $0xd4] sm:$0x1] 0
      %v2532 = vpack.c.bf16 %v2247, %v2244
      %v2533 = vpack.c.bf16 %v2255, %v2252
      %v2534 = vpack.c.bf16 %v2263, %v2260
      %v2535 = vpack.c.bf16 %v2271, %v2268
      %v2536 = vpack.c.bf16 %v2279, %v2276
      %v2537 = vpack.c.bf16 %v2287, %v2284
      %v2538 = vpack.c.bf16 %v2295, %v2292
      %v2539 = vpack.c.bf16 %v2303, %v2300
      %v2540 = vpack.c.bf16 %v2311, %v2308
      %v2541 = vpack.c.bf16 %v2319, %v2316
      %v2542 = vpack.c.bf16 %v2327, %v2324
      %v2543 = vpack.c.bf16 %v2335, %v2332
      %v2544 = vpack.c.bf16 %v2343, %v2340
      %v2545 = vpack.c.bf16 %v2351, %v2348
      %v2546 = vpack.c.bf16 %v2359, %v2356
      %v2547 = vpack.c.bf16 %v2367, %v2364
      %v2564 = vunpack.c.l.b16 %v2532
      %v2565 = vunpack.c.h.b16 %v2532
      %v2566 = vunpack.c.l.b16 %v2533
      %v2567 = vunpack.c.h.b16 %v2533
      %v2568 = vunpack.c.l.b16 %v2534
      %v2569 = vunpack.c.h.b16 %v2534
      %v2570 = vunpack.c.l.b16 %v2535
      %v2571 = vunpack.c.h.b16 %v2535
      %v2572 = vunpack.c.l.b16 %v2536
      %v2573 = vunpack.c.h.b16 %v2536
      %v2574 = vunpack.c.l.b16 %v2537
      %v2575 = vunpack.c.h.b16 %v2537
      %v2576 = vunpack.c.l.b16 %v2538
      %v2577 = vunpack.c.h.b16 %v2538
      %v2578 = vunpack.c.l.b16 %v2539
      %v2579 = vunpack.c.h.b16 %v2539
      %v2580 = vunpack.c.l.b16 %v2540
      %v2581 = vunpack.c.h.b16 %v2540
      %v2582 = vunpack.c.l.b16 %v2541
      %v2583 = vunpack.c.h.b16 %v2541
      %v2584 = vunpack.c.l.b16 %v2542
      %v2585 = vunpack.c.h.b16 %v2542
      %v2586 = vunpack.c.l.b16 %v2543
      %v2587 = vunpack.c.h.b16 %v2543
      %v2588 = vunpack.c.l.b16 %v2544
      %v2589 = vunpack.c.h.b16 %v2544
      %v2590 = vunpack.c.l.b16 %v2545
      %v2591 = vunpack.c.h.b16 %v2545
      %v2592 = vunpack.c.l.b16 %v2546
      %v2593 = vunpack.c.h.b16 %v2546
      %v2594 = vunpack.c.l.b16 %v2547
      %v2595 = vunpack.c.h.b16 %v2547
      %v2596 = vpack.c.b16 %v2564, %v2564
      %v2597 = vpack.c.b16 %v2565, %v2565
      %v2598 = vpack.c.b16 %v2566, %v2566
      %v2599 = vpack.c.b16 %v2567, %v2567
      %v2600 = vpack.c.b16 %v2568, %v2568
      %v2601 = vpack.c.b16 %v2569, %v2569
      %v2602 = vpack.c.b16 %v2570, %v2570
      %v2603 = vpack.c.b16 %v2571, %v2571
      %v2604 = vpack.c.b16 %v2572, %v2572
      %v2605 = vpack.c.b16 %v2573, %v2573
      %v2606 = vpack.c.b16 %v2574, %v2574
      %v2607 = vpack.c.b16 %v2575, %v2575
      %v2608 = vpack.c.b16 %v2576, %v2576
      %v2609 = vpack.c.b16 %v2577, %v2577
      %v2610 = vpack.c.b16 %v2578, %v2578
      %v2611 = vpack.c.b16 %v2579, %v2579
      %v2612 = vpack.c.b16 %v2580, %v2580
      %v2613 = vpack.c.b16 %v2581, %v2581
      %v2614 = vpack.c.b16 %v2582, %v2582
      %v2615 = vpack.c.b16 %v2583, %v2583
      %v2616 = vpack.c.b16 %v2584, %v2584
      %v2617 = vpack.c.b16 %v2585, %v2585
      %v2618 = vpack.c.b16 %v2586, %v2586
      %v2619 = vpack.c.b16 %v2587, %v2587
      %v2620 = vpack.c.b16 %v2588, %v2588
      %v2621 = vpack.c.b16 %v2589, %v2589
      %v2622 = vpack.c.b16 %v2590, %v2590
      %v2623 = vpack.c.b16 %v2591, %v2591
      %v2624 = vpack.c.b16 %v2592, %v2592
      %v2625 = vpack.c.b16 %v2593, %v2593
      %v2626 = vpack.c.b16 %v2594, %v2594
      %v2627 = vpack.c.b16 %v2595, %v2595
      %vm2628 = vsmask.f32 256
      %vm2629 = vsmask.f32 4368
      %vm2630 = vmor %vm2628, %vm2629
      %v2632 = vshrl.u32 %v2596, 16
      %v2634 = vrot.slane %v2632, 7
      %v2635 = vshll.u32 %v2596, 16
      %v2637 = vor.u32 %v2634, %v2635
      %v2638 = vrot.slane %v2634, 4
      %v2640 = vshrl.u32 %v2597, 16
      %v2642 = vrot.slane %v2640, 7
      %v2643 = vshll.u32 %v2597, 16
      %v2645 = vor.u32 %v2642, %v2643
      %v2646 = vsel %vm2630, %v2638, %v2645
      %v2647 = vrot.slane %v2642, 4
      %v2649 = vshrl.u32 %v2598, 16
      %v2651 = vrot.slane %v2649, 7
      %v2652 = vshll.u32 %v2598, 16
      %v2654 = vor.u32 %v2651, %v2652
      %v2655 = vrot.slane %v2651, 4
      %v2657 = vshrl.u32 %v2599, 16
      %v2659 = vrot.slane %v2657, 7
      %v2660 = vshll.u32 %v2599, 16
      %v2662 = vor.u32 %v2659, %v2660
      %v2663 = vsel %vm2630, %v2655, %v2662
      %v2664 = vrot.slane %v2659, 4
      %v2666 = vshrl.u32 %v2600, 16
      %v2668 = vrot.slane %v2666, 7
      %v2669 = vshll.u32 %v2600, 16
      %v2671 = vor.u32 %v2668, %v2669
      %v2672 = vrot.slane %v2668, 4
      %v2674 = vshrl.u32 %v2601, 16
      %v2676 = vrot.slane %v2674, 7
      %v2677 = vshll.u32 %v2601, 16
      %v2679 = vor.u32 %v2676, %v2677
      %v2680 = vsel %vm2630, %v2672, %v2679
      %v2681 = vrot.slane %v2676, 4
      %v2683 = vshrl.u32 %v2602, 16
      %v2685 = vrot.slane %v2683, 7
      %v2686 = vshll.u32 %v2602, 16
      %v2688 = vor.u32 %v2685, %v2686
      %v2689 = vrot.slane %v2685, 4
      %v2691 = vshrl.u32 %v2603, 16
      %v2693 = vrot.slane %v2691, 7
      %v2694 = vshll.u32 %v2603, 16
      %v2696 = vor.u32 %v2693, %v2694
      %v2697 = vsel %vm2630, %v2689, %v2696
      %v2698 = vrot.slane %v2693, 4
      %v2700 = vshrl.u32 %v2604, 16
      %v2702 = vrot.slane %v2700, 7
      %v2703 = vshll.u32 %v2604, 16
      %v2705 = vor.u32 %v2702, %v2703
      %v2706 = vrot.slane %v2702, 4
      %v2708 = vshrl.u32 %v2605, 16
      %v2710 = vrot.slane %v2708, 7
      %v2711 = vshll.u32 %v2605, 16
      %v2713 = vor.u32 %v2710, %v2711
      %v2714 = vsel %vm2630, %v2706, %v2713
      %v2715 = vrot.slane %v2710, 4
      %v2717 = vshrl.u32 %v2606, 16
      %v2719 = vrot.slane %v2717, 7
      %v2720 = vshll.u32 %v2606, 16
      %v2722 = vor.u32 %v2719, %v2720
      %v2723 = vrot.slane %v2719, 4
      %v2725 = vshrl.u32 %v2607, 16
      %v2727 = vrot.slane %v2725, 7
      %v2728 = vshll.u32 %v2607, 16
      %v2730 = vor.u32 %v2727, %v2728
      %v2731 = vsel %vm2630, %v2723, %v2730
      %v2732 = vrot.slane %v2727, 4
      %v2734 = vshrl.u32 %v2608, 16
      %v2736 = vrot.slane %v2734, 7
      %v2737 = vshll.u32 %v2608, 16
      %v2739 = vor.u32 %v2736, %v2737
      %v2740 = vrot.slane %v2736, 4
      %v2742 = vshrl.u32 %v2609, 16
      %v2744 = vrot.slane %v2742, 7
      %v2745 = vshll.u32 %v2609, 16
      %v2747 = vor.u32 %v2744, %v2745
      %v2748 = vsel %vm2630, %v2740, %v2747
      %v2749 = vrot.slane %v2744, 4
      %v2751 = vshrl.u32 %v2610, 16
      %v2753 = vrot.slane %v2751, 7
      %v2754 = vshll.u32 %v2610, 16
      %v2756 = vor.u32 %v2753, %v2754
      %v2757 = vrot.slane %v2753, 4
      %v2759 = vshrl.u32 %v2611, 16
      %v2761 = vrot.slane %v2759, 7
      %v2762 = vshll.u32 %v2611, 16
      %v2764 = vor.u32 %v2761, %v2762
      %v2765 = vsel %vm2630, %v2757, %v2764
      %v2766 = vrot.slane %v2761, 4
      %v2768 = vshrl.u32 %v2612, 16
      %v2770 = vrot.slane %v2768, 7
      %v2771 = vshll.u32 %v2612, 16
      %v2773 = vor.u32 %v2770, %v2771
      %v2774 = vrot.slane %v2770, 4
      %v2776 = vshrl.u32 %v2613, 16
      %v2778 = vrot.slane %v2776, 7
      %v2779 = vshll.u32 %v2613, 16
      %v2781 = vor.u32 %v2778, %v2779
      %v2782 = vsel %vm2630, %v2774, %v2781
      %v2783 = vrot.slane %v2778, 4
      %v2785 = vshrl.u32 %v2614, 16
      %v2787 = vrot.slane %v2785, 7
      %v2788 = vshll.u32 %v2614, 16
      %v2790 = vor.u32 %v2787, %v2788
      %v2791 = vrot.slane %v2787, 4
      %v2793 = vshrl.u32 %v2615, 16
      %v2795 = vrot.slane %v2793, 7
      %v2796 = vshll.u32 %v2615, 16
      %v2798 = vor.u32 %v2795, %v2796
      %v2799 = vsel %vm2630, %v2791, %v2798
      %v2800 = vrot.slane %v2795, 4
      %v2802 = vshrl.u32 %v2616, 16
      %v2804 = vrot.slane %v2802, 7
      %v2805 = vshll.u32 %v2616, 16
      %v2807 = vor.u32 %v2804, %v2805
      %v2808 = vrot.slane %v2804, 4
      %v2810 = vshrl.u32 %v2617, 16
      %v2812 = vrot.slane %v2810, 7
      %v2813 = vshll.u32 %v2617, 16
      %v2815 = vor.u32 %v2812, %v2813
      %v2816 = vsel %vm2630, %v2808, %v2815
      %v2817 = vrot.slane %v2812, 4
      %v2819 = vshrl.u32 %v2618, 16
      %v2821 = vrot.slane %v2819, 7
      %v2822 = vshll.u32 %v2618, 16
      %v2824 = vor.u32 %v2821, %v2822
      %v2825 = vrot.slane %v2821, 4
      %v2827 = vshrl.u32 %v2619, 16
      %v2829 = vrot.slane %v2827, 7
      %v2830 = vshll.u32 %v2619, 16
      %v2832 = vor.u32 %v2829, %v2830
      %v2833 = vsel %vm2630, %v2825, %v2832
      %v2834 = vrot.slane %v2829, 4
      %v2836 = vshrl.u32 %v2620, 16
      %v2838 = vrot.slane %v2836, 7
      %v2839 = vshll.u32 %v2620, 16
      %v2841 = vor.u32 %v2838, %v2839
      %v2842 = vrot.slane %v2838, 4
      %v2844 = vshrl.u32 %v2621, 16
      %v2846 = vrot.slane %v2844, 7
      %v2847 = vshll.u32 %v2621, 16
      %v2849 = vor.u32 %v2846, %v2847
      %v2850 = vsel %vm2630, %v2842, %v2849
      %v2851 = vrot.slane %v2846, 4
      %v2853 = vshrl.u32 %v2622, 16
      %v2855 = vrot.slane %v2853, 7
      %v2856 = vshll.u32 %v2622, 16
      %v2858 = vor.u32 %v2855, %v2856
      %v2859 = vrot.slane %v2855, 4
      %v2861 = vshrl.u32 %v2623, 16
      %v2863 = vrot.slane %v2861, 7
      %v2864 = vshll.u32 %v2623, 16
      %v2866 = vor.u32 %v2863, %v2864
      %v2867 = vsel %vm2630, %v2859, %v2866
      %v2868 = vrot.slane %v2863, 4
      %v2870 = vshrl.u32 %v2624, 16
      %v2872 = vrot.slane %v2870, 7
      %v2873 = vshll.u32 %v2624, 16
      %v2875 = vor.u32 %v2872, %v2873
      %v2876 = vrot.slane %v2872, 4
      %v2878 = vshrl.u32 %v2625, 16
      %v2880 = vrot.slane %v2878, 7
      %v2881 = vshll.u32 %v2625, 16
      %v2883 = vor.u32 %v2880, %v2881
      %v2884 = vsel %vm2630, %v2876, %v2883
      %v2885 = vrot.slane %v2880, 4
      %v2887 = vshrl.u32 %v2626, 16
      %v2889 = vrot.slane %v2887, 7
      %v2890 = vshll.u32 %v2626, 16
      %v2892 = vor.u32 %v2889, %v2890
      %v2893 = vrot.slane %v2889, 4
      %v2895 = vshrl.u32 %v2627, 16
      %v2897 = vrot.slane %v2895, 7
      %v2898 = vshll.u32 %v2627, 16
      %v2900 = vor.u32 %v2897, %v2898
      %v2901 = vsel %vm2630, %v2893, %v2900
      %v2902 = vrot.slane %v2897, 4
      %s2951 = scalar_lea.vmem %s231, 12
      %vm2952 = vcmask 1043456
      %vm2953 = vsmask.f32 7938
      %vm2954 = vmand %vm2952, %vm2953
      %v2955 = vld [vmem:[%s2951] sm:$0xf]
      %v2956 = vsel %vm2954, %v2637, %v2955
      %2957 = vst [vmem:[%s2951] sm:$0xf] %v2956
      %2958 = vst [vmem:[%s2951 + $0x4] sm:$0xf] %v2646
      %vm2959 = vcmask 1040384
      %vm2960 = vmand %vm2959, %vm2628
      %v2961 = vld [vmem:[%s2951 + $0x8] sm:$0x1]
      %v2962 = vsel %vm2960, %v2647, %v2961
      %2963 = vst [vmem:[%s2951 + $0x8] sm:$0x1] %v2962
      %v2964 = vld [vmem:[%s2951 + $0xc] sm:$0xf]
      %v2965 = vsel %vm2954, %v2654, %v2964
      %2966 = vst [vmem:[%s2951 + $0xc] sm:$0xf] %v2965
      %2967 = vst [vmem:[%s2951 + $0x10] sm:$0xf] %v2663
      %v2968 = vld [vmem:[%s2951 + $0x14] sm:$0x1]
      %v2969 = vsel %vm2960, %v2664, %v2968
      %2970 = vst [vmem:[%s2951 + $0x14] sm:$0x1] %v2969
      %v2971 = vld [vmem:[%s2951 + $0x18] sm:$0xf]
      %v2972 = vsel %vm2954, %v2671, %v2971
      %2973 = vst [vmem:[%s2951 + $0x18] sm:$0xf] %v2972
      %2974 = vst [vmem:[%s2951 + $0x1c] sm:$0xf] %v2680
      %v2975 = vld [vmem:[%s2951 + $0x20] sm:$0x1]
      %v2976 = vsel %vm2960, %v2681, %v2975
      %2977 = vst [vmem:[%s2951 + $0x20] sm:$0x1] %v2976
      %v2978 = vld [vmem:[%s2951 + $0x24] sm:$0xf]
      %v2979 = vsel %vm2954, %v2688, %v2978
      %2980 = vst [vmem:[%s2951 + $0x24] sm:$0xf] %v2979
      %2981 = vst [vmem:[%s2951 + $0x28] sm:$0xf] %v2697
      %v2982 = vld [vmem:[%s2951 + $0x2c] sm:$0x1]
      %v2983 = vsel %vm2960, %v2698, %v2982
      %2984 = vst [vmem:[%s2951 + $0x2c] sm:$0x1] %v2983
      %v2985 = vld [vmem:[%s2951 + $0x30] sm:$0xf]
      %v2986 = vsel %vm2954, %v2705, %v2985
      %2987 = vst [vmem:[%s2951 + $0x30] sm:$0xf] %v2986
      %2988 = vst [vmem:[%s2951 + $0x34] sm:$0xf] %v2714
      %v2989 = vld [vmem:[%s2951 + $0x38] sm:$0x1]
      %v2990 = vsel %vm2960, %v2715, %v2989
      %2991 = vst [vmem:[%s2951 + $0x38] sm:$0x1] %v2990
      %v2992 = vld [vmem:[%s2951 + $0x3c] sm:$0xf]
      %v2993 = vsel %vm2954, %v2722, %v2992
      %2994 = vst [vmem:[%s2951 + $0x3c] sm:$0xf] %v2993
      %2995 = vst [vmem:[%s2951 + $0x40] sm:$0xf] %v2731
      %v2996 = vld [vmem:[%s2951 + $0x44] sm:$0x1]
      %v2997 = vsel %vm2960, %v2732, %v2996
      %2998 = vst [vmem:[%s2951 + $0x44] sm:$0x1] %v2997
      %v2999 = vld [vmem:[%s2951 + $0x48] sm:$0xf]
      %v3000 = vsel %vm2954, %v2739, %v2999
      %3001 = vst [vmem:[%s2951 + $0x48] sm:$0xf] %v3000
      %3002 = vst [vmem:[%s2951 + $0x4c] sm:$0xf] %v2748
      %v3003 = vld [vmem:[%s2951 + $0x50] sm:$0x1]
      %v3004 = vsel %vm2960, %v2749, %v3003
      %3005 = vst [vmem:[%s2951 + $0x50] sm:$0x1] %v3004
      %v3006 = vld [vmem:[%s2951 + $0x54] sm:$0xf]
      %v3007 = vsel %vm2954, %v2756, %v3006
      %3008 = vst [vmem:[%s2951 + $0x54] sm:$0xf] %v3007
      %3009 = vst [vmem:[%s2951 + $0x58] sm:$0xf] %v2765
      %v3010 = vld [vmem:[%s2951 + $0x5c] sm:$0x1]
      %v3011 = vsel %vm2960, %v2766, %v3010
      %3012 = vst [vmem:[%s2951 + $0x5c] sm:$0x1] %v3011
      %v3013 = vld [vmem:[%s2951 + $0x60] sm:$0xf]
      %v3014 = vsel %vm2954, %v2773, %v3013
      %3015 = vst [vmem:[%s2951 + $0x60] sm:$0xf] %v3014
      %3016 = vst [vmem:[%s2951 + $0x64] sm:$0xf] %v2782
      %v3017 = vld [vmem:[%s2951 + $0x68] sm:$0x1]
      %v3018 = vsel %vm2960, %v2783, %v3017
      %3019 = vst [vmem:[%s2951 + $0x68] sm:$0x1] %v3018
      %v3020 = vld [vmem:[%s2951 + $0x6c] sm:$0xf]
      %v3021 = vsel %vm2954, %v2790, %v3020
      %3022 = vst [vmem:[%s2951 + $0x6c] sm:$0xf] %v3021
      %3023 = vst [vmem:[%s2951 + $0x70] sm:$0xf] %v2799
      %v3024 = vld [vmem:[%s2951 + $0x74] sm:$0x1]
      %v3025 = vsel %vm2960, %v2800, %v3024
      %3026 = vst [vmem:[%s2951 + $0x74] sm:$0x1] %v3025
      %v3027 = vld [vmem:[%s2951 + $0x78] sm:$0xf]
      %v3028 = vsel %vm2954, %v2807, %v3027
      %3029 = vst [vmem:[%s2951 + $0x78] sm:$0xf] %v3028
      %3030 = vst [vmem:[%s2951 + $0x7c] sm:$0xf] %v2816
      %v3031 = vld [vmem:[%s2951 + $0x80] sm:$0x1]
      %v3032 = vsel %vm2960, %v2817, %v3031
      %3033 = vst [vmem:[%s2951 + $0x80] sm:$0x1] %v3032
      %v3034 = vld [vmem:[%s2951 + $0x84] sm:$0xf]
      %v3035 = vsel %vm2954, %v2824, %v3034
      %3036 = vst [vmem:[%s2951 + $0x84] sm:$0xf] %v3035
      %3037 = vst [vmem:[%s2951 + $0x88] sm:$0xf] %v2833
      %v3038 = vld [vmem:[%s2951 + $0x8c] sm:$0x1]
      %v3039 = vsel %vm2960, %v2834, %v3038
      %3040 = vst [vmem:[%s2951 + $0x8c] sm:$0x1] %v3039
      %v3041 = vld [vmem:[%s2951 + $0x90] sm:$0xf]
      %v3042 = vsel %vm2954, %v2841, %v3041
      %3043 = vst [vmem:[%s2951 + $0x90] sm:$0xf] %v3042
      %3044 = vst [vmem:[%s2951 + $0x94] sm:$0xf] %v2850
      %v3045 = vld [vmem:[%s2951 + $0x98] sm:$0x1]
      %v3046 = vsel %vm2960, %v2851, %v3045
      %3047 = vst [vmem:[%s2951 + $0x98] sm:$0x1] %v3046
      %v3048 = vld [vmem:[%s2951 + $0x9c] sm:$0xf]
      %v3049 = vsel %vm2954, %v2858, %v3048
      %3050 = vst [vmem:[%s2951 + $0x9c] sm:$0xf] %v3049
      %3051 = vst [vmem:[%s2951 + $0xa0] sm:$0xf] %v2867
      %v3052 = vld [vmem:[%s2951 + $0xa4] sm:$0x1]
      %v3053 = vsel %vm2960, %v2868, %v3052
      %3054 = vst [vmem:[%s2951 + $0xa4] sm:$0x1] %v3053
      %v3055 = vld [vmem:[%s2951 + $0xa8] sm:$0xf]
      %v3056 = vsel %vm2954, %v2875, %v3055
      %3057 = vst [vmem:[%s2951 + $0xa8] sm:$0xf] %v3056
      %3058 = vst [vmem:[%s2951 + $0xac] sm:$0xf] %v2884
      %v3059 = vld [vmem:[%s2951 + $0xb0] sm:$0x1]
      %v3060 = vsel %vm2960, %v2885, %v3059
      %3061 = vst [vmem:[%s2951 + $0xb0] sm:$0x1] %v3060
      %v3062 = vld [vmem:[%s2951 + $0xb4] sm:$0xf]
      %v3063 = vsel %vm2954, %v2892, %v3062
      %3064 = vst [vmem:[%s2951 + $0xb4] sm:$0xf] %v3063
      %3065 = vst [vmem:[%s2951 + $0xb8] sm:$0xf] %v2901
      %v3066 = vld [vmem:[%s2951 + $0xbc] sm:$0x1]
      %v3067 = vsel %vm2960, %v2902, %v3066
      %3068 = vst [vmem:[%s2951 + $0xbc] sm:$0x1] %v3067
      %p3069 = scmp.lt.s32.totalorder %s17, 1
      %s3070 = scalar_select %p3069, %s17, 1
      %s3071 = smul.addr %s3070, 54
      %s3072 = smul.addr %s3071, 4
      %s3073 = scalar_lea.vmem %s4, %s3072
      %p3074 = scmp.lt.s32.totalorder %s17, 1
      %s3075 = scalar_select %p3074, %s17, 1
      %s3076 = smul.addr %s3075, 2
      %s3077 = scalar_lea.vmem %s5, %s3076
      // Predicated region
      $region37: #{double_conv.4} parent=35 // pred_check
        %p3078 = pneg %p124
      $region38: #{double_conv.4} parent=35 // pred_check_branch
        %3080 = sbr.rel (%p3078) target = $region40
      $region39: #{double_conv.4} parent=35 // pred_region
        _
      $region40: #{double_conv.4} parent=35 // pred_fallthru
        _
      // Predicated region
      $region41: #{double_conv.4} parent=35 // pred_check
        %p3081 = pneg %p150
      $region42: #{double_conv.4} parent=35 // pred_check_branch
        %3083 = sbr.rel (%p3081) target = $region44
      $region43: #{double_conv.4} parent=35 // pred_region
        _
      $region44: #{double_conv.4} parent=35 // pred_fallthru
        _
    $region36: #{double_conv.4} parent=5 // pred_fallthru
      _
    %p3084 = scmp.le.s32.totalorder 2, %s12
    // Predicated region
    $region45: #{double_conv.4} parent=5 // pred_check
      %p3085 = pneg %p3084
    $region46: #{double_conv.4} parent=5 // pred_check_branch
      %3087 = sbr.rel (%p3085) target = $region48
    $region47: #{double_conv.4} parent=5 // pred_region
      %s3088 = ssub.s32 %s12, 2
      // Predicated region
      $region49: #{double_conv.4} parent=47 // pred_check
        %p3089 = pneg %p130
      $region50: #{double_conv.4} parent=47 // pred_check_branch
        %3091 = sbr.rel (%p3089) target = $region52
      $region51: #{double_conv.4} parent=47 // pred_region
        %p3092 = scmp.lt.s32.totalorder %s18, 1
        %s3093 = scalar_select %p3092, %s18, 1
        %s3094 = smul.addr %s3093, 54
        %s3095 = smul.addr %s3094, 4
        %s3096 = scalar_lea.vmem %s4, %s3095
      $region52: #{double_conv.4} parent=47 // pred_fallthru
        _
      // Predicated region
      $region53: #{double_conv.4} parent=47 // pred_check
        %p3097 = pneg %p156
      $region54: #{double_conv.4} parent=47 // pred_check_branch
        %3099 = sbr.rel (%p3097) target = $region56
      $region55: #{double_conv.4} parent=47 // pred_region
        %p3100 = scmp.lt.s32.totalorder %s18, 1
        %s3101 = scalar_select %p3100, %s18, 1
        %s3102 = smul.addr %s3101, 2
        %s3103 = scalar_lea.vmem %s5, %s3102
      $region56: #{double_conv.4} parent=47 // pred_fallthru
        _
    $region48: #{double_conv.4} parent=5 // pred_fallthru
      _
  $region6: #{double_conv.4} parent=0 // loop_footer
    %s16 = sadd.s32 1, %s12
  $region7: #{double_conv.4} parent=0 // loop_footer_branch
    %11 = sbr.rel target = $region3
  $region8: #{double_conv.4} parent=0 // loop_exit
    _

</llo_original>
